<compile_context>
chip_gen: v7x
topology: tpu7x:2x2x1
jax: 0.10.0
libtpu: 0.0.40
codegen_flags: <defaults>
</compile_context>

<pallas_src>
import functools
import math

import jax
import jax.numpy as jnp
from jax.experimental import pallas as pl
from jax.experimental.pallas import tpu as pltpu


def _layernorm(x, gamma, beta, eps=1e-6):
    mu = jnp.mean(x, axis=-1, keepdims=True)
    var = jnp.mean((x - mu) ** 2, axis=-1, keepdims=True)
    return (x - mu) * jax.lax.rsqrt(var + eps) * gamma + beta


def _gelu_exact(x):
    # erf-based GELU == torch.nn.GELU() default
    return 0.5 * x * (1.0 + jax.lax.erf(x * (1.0 / math.sqrt(2.0))))


def encoder_kernel(
    x_ref,
    g1_ref, b1_ref,
    wq_ref, bq_ref, wkv_ref, bkv_ref, wo_ref, bo_ref,
    g2_ref, b2_ref,
    w1_ref, bm1_ref, w2_ref, bm2_ref,
    o_ref,
    xn_ref, kv_ref,
    *, head_num, head_dim, q_tile,
):
    f32 = jnp.float32
    bf16 = jnp.bfloat16
    D = head_num * head_dim
    qi = pl.program_id(1)

    # ---- once per batch (first query tile): cache LN1(x) and K|V ------------
    @pl.when(qi == 0)
    def _fill_seq_caches():
        xn = _layernorm(x_ref[0].astype(f32), g1_ref[...], b1_ref[...])  # (S, D)
        xn_bf = xn.astype(bf16)
        xn_ref[...] = xn_bf
        # Fused K|V projection for ALL heads, bias added, stored as bf16
        # (matches the reference which casts K/V to bf16 before the attention
        # matmuls).
        kv = jnp.dot(xn_bf, wkv_ref[...], preferred_element_type=f32) + bkv_ref[...]
        kv_ref[...] = kv.astype(bf16)                                    # (S, 2D)

    # ---- query tile --------------------------------------------------------
    row0 = pl.multiple_of(qi * q_tile, q_tile)
    xq = x_ref[0, pl.ds(row0, q_tile), :].astype(f32)    # (tq, D) residual rows
    xq_n = xn_ref[pl.ds(row0, q_tile), :]                # (tq, D) bf16, cached LN1

    # Q projection, full width D (softmax scale already folded into wq/bq).
    q = (jnp.dot(xq_n, wq_ref[...], preferred_element_type=f32)
         + bq_ref[...]).astype(bf16)                     # (tq, D)

    kv = kv_ref[...]                                     # (S, 2D) bf16 (cached)

    # ---- per-head scaled dot-product attention (static unrolled loop) ------
    # TODO(synk): for large head counts, group heads on an extra grid axis /
    # lax.fori_loop to bound vreg live ranges.
    ctx_parts = []
    for h in range(head_num):
        lo = h * head_dim
        q_h = q[:, lo:lo + head_dim]                     # (tq, hd)
        k_h = kv[:, lo:lo + head_dim]                    # (S,  hd)
        v_h = kv[:, D + lo:D + lo + head_dim]            # (S,  hd)
        s = jax.lax.dot_general(q_h, k_h, (((1,), (1,)), ((), ())),
                                preferred_element_type=f32)          # (tq, S)
        s = s - jnp.max(s, axis=-1, keepdims=True)
        p = jnp.exp(s)
        p = p * pl.reciprocal(jnp.sum(p, axis=-1, keepdims=True), approx=True)
        ctx_parts.append(jnp.dot(p.astype(bf16), v_h,
                                 preferred_element_type=f32))        # (tq, hd)

    # Concatenate heads along lanes -> full-width output projection.
    ctx = jnp.concatenate(ctx_parts, axis=-1).astype(bf16)           # (tq, D)
    x1 = (jnp.dot(ctx, wo_ref[...], preferred_element_type=f32)
          + bo_ref[...] + xq)                                        # (tq, D)

    # ---- LN2 + MLP + residual, lane-dense output tile -----------------------
    x1_n = _layernorm(x1, g2_ref[...], b2_ref[...]).astype(bf16)
    m = jnp.dot(x1_n, w1_ref[...], preferred_element_type=f32) + bm1_ref[...]
    m = _gelu_exact(m)
    y = jnp.dot(m.astype(bf16), w2_ref[...], preferred_element_type=f32) + bm2_ref[...]
    o_ref[0] = (y + x1).astype(o_ref.dtype)


def transformer_encoder(x, params, head_num, *, q_tile=128):
    B, S, D = x.shape
    assert D % head_num == 0, "dim must be divisible by head_num"
    hd = D // head_num
    M = params["w1"].shape[1]

    tq = min(q_tile, S)
    assert S % tq == 0 and (tq % 8 == 0 or tq == S), "bad query tile size"
    n_q = S // tq

    bf16, f32 = jnp.bfloat16, jnp.float32
    scale = 1.0 / math.sqrt(hd)

    # Host-side (one time) weight prep: fold softmax scale into wq/bq, fuse
    # K and V into one projection, cast matmul weights to bf16.
    wq = (params["wq"] * scale).astype(bf16)                     # (D, D)
    bq = (params["bq"] * scale).astype(f32)                      # (1, D)
    wkv = jnp.concatenate([params["wk"], params["wv"]], axis=-1).astype(bf16)  # (D, 2D)
    bkv = jnp.concatenate([params["bk"], params["bv"]], axis=-1).astype(f32)   # (1, 2D)
    wo = params["wo"].astype(bf16)                               # (D, D)
    bo = params["bo"].astype(f32)                                # (1, D)
    g1 = params["g1"].astype(f32); b1 = params["b1"].astype(f32)
    g2 = params["g2"].astype(f32); b2 = params["b2"].astype(f32)
    w1 = params["w1"].astype(bf16); bm1 = params["bm1"].astype(f32)
    w2 = params["w2"].astype(bf16); bm2 = params["bm2"].astype(f32)

    weights = (g1, b1, wq, bq, wkv, bkv, wo, bo, g2, b2, w1, bm1, w2, bm2)

    def fixed(arr):              # whole array, same block every grid step
        zeros = (0,) * arr.ndim
        return pl.BlockSpec(arr.shape, lambda b, qi, zeros=zeros: zeros)

    in_specs = [pl.BlockSpec((1, S, D), lambda b, qi: (b, 0, 0))]   # full sequence
    in_specs += [fixed(a) for a in weights]
    out_specs = pl.BlockSpec((1, tq, D), lambda b, qi: (b, qi, 0))  # lane-dense

    # ---- honest VMEM budget (no silent clamp) ------------------------------
    def nbytes(a):
        return int(a.size) * a.dtype.itemsize

    weight_bytes = sum(nbytes(a) for a in weights)
    block_bytes = S * D * x.dtype.itemsize + tq * D * x.dtype.itemsize
    scratch_bytes = 2 * (S * D) + 2 * (S * 2 * D)          # bf16 LN1 + K|V caches
    interm_bytes = 4 * (3 * S * D                          # fill-step f32 temporaries
                        + 2 * tq * S                       # scores + probs (per head)
                        + 2 * tq * M                       # MLP hidden + GELU
                        + 8 * tq * D)                      # q/ctx/x1/x1_n/y etc.
    required = 2 * (weight_bytes + block_bytes) + scratch_bytes + interm_bytes + (2 << 20)
    if required > (100 << 20):
        raise ValueError(
            f"fused encoder kernel needs ~{required >> 20} MiB VMEM; reduce q_tile or "
            "add flash-style KV tiling for this shape (v7x budget ~48 MiB, "
            "v5e/v6e ~100 MiB).")
    vmem_limit = int(max(required, 8 << 20))

    kernel = functools.partial(encoder_kernel, head_num=head_num,
                               head_dim=hd, q_tile=tq)
    return pl.pallas_call(
        kernel,
        out_shape=jax.ShapeDtypeStruct((B, S, D), x.dtype),
        grid=(B, n_q),
        in_specs=in_specs,
        out_specs=out_specs,
        scratch_shapes=[
            pltpu.VMEM((S, D), jnp.bfloat16),       # cached LN1(x), bf16
            pltpu.VMEM((S, 2 * D), jnp.bfloat16),   # cached K|V (all heads), bf16
        ],
        compiler_params=pltpu.CompilerParams(
            # batch parallel (megacore-safe), query-tile arbitrary so the
            # per-batch caches are always filled at qi == 0 on every core.
            dimension_semantics=("parallel", "arbitrary"),
            vmem_limit_bytes=vmem_limit,
        ),
    )(x, *weights)


# ---------------- pure-JAX reference (same bf16/f32 numerics contract) -------
def reference(x, p, head_num):
    B, S, D = x.shape
    hd = D // head_num
    bf16, f32 = jnp.bfloat16, jnp.float32

    def ln(y, g, b, eps=1e-6):
        mu = jnp.mean(y, axis=-1, keepdims=True)
        var = jnp.mean((y - mu) ** 2, axis=-1, keepdims=True)
        return (y - mu) / jnp.sqrt(var + eps) * g + b

    def mm(a, w):
        return jnp.dot(a.astype(bf16), w.astype(bf16), preferred_element_type=f32)

    xn = ln(x, p["g1"], p["b1"])
    q = (mm(xn, p["wq"]) + p["bq"]) / math.sqrt(hd)
    k = mm(xn, p["wk"]) + p["bk"]
    v = mm(xn, p["wv"]) + p["bv"]
    q = q.reshape(B, S, head_num, hd).transpose(0, 2, 1, 3)
    k = k.reshape(B, S, head_num, hd).transpose(0, 2, 1, 3)
    v = v.reshape(B, S, head_num, hd).transpose(0, 2, 1, 3)
    s = jnp.einsum("bhqd,bhkd->bhqk", q.astype(bf16), k.astype(bf16),
                   preferred_element_type=f32)
    pa = jax.nn.softmax(s, axis=-1)
    ctx = jnp.einsum("bhqk,bhkd->bhqd", pa.astype(bf16), v.astype(bf16),
                     preferred_element_type=f32)
    ctx = ctx.transpose(0, 2, 1, 3).reshape(B, S, D)
    x1 = mm(ctx, p["wo"]) + p["bo"] + x
    xn2 = ln(x1, p["g2"], p["b2"])
    m = jax.nn.gelu(mm(xn2, p["w1"]) + p["bm1"], approximate=False)
    return mm(m, p["w2"]) + p["bm2"] + x1


if __name__ == "__main__":
    B, S, D, H, M = 2, 128, 128, 4, 256   # batch, seq, dim (lane-dense), heads, mlp

    key = jax.random.PRNGKey(0)
    ks = jax.random.split(key, 17)

    def rnd(k, shape, scl=0.1):
        return scl * jax.random.normal(k, shape, jnp.float32)

    params = {
        "g1": 1.0 + rnd(ks[12], (1, D)), "b1": rnd(ks[13], (1, D)),
        "wq": rnd(ks[0], (D, D)), "bq": rnd(ks[1], (1, D)),
        "wk": rnd(ks[2], (D, D)), "bk": rnd(ks[3], (1, D)),
        "wv": rnd(ks[4], (D, D)), "bv": rnd(ks[5], (1, D)),
        "wo": rnd(ks[6], (D, D)), "bo": rnd(ks[7], (1, D)),
        "g2": 1.0 + rnd(ks[14], (1, D)), "b2": rnd(ks[15], (1, D)),
        "w1": rnd(ks[8], (D, M)), "bm1": rnd(ks[9], (1, M)),
        "w2": rnd(ks[10], (M, D)), "bm2": rnd(ks[11], (1, D)),
    }
    x = jax.random.normal(ks[16], (B, S, D), jnp.float32)

    # q_tile=64 -> grid (2, 2): exercises the cached-LN1 / cached-KV reuse path.
    out = transformer_encoder(x, params, H, q_tile=64)
    out = jax.block_until_ready(out)

    ref = reference(x, params, H)
    assert out.shape == (B, S, D)
    max_err = float(jnp.max(jnp.abs(out - ref)))
    assert jnp.allclose(out, ref, atol=3e-2, rtol=3e-2), (
        f"mismatch vs reference, max |err| = {max_err}")
    print("KERNEL_OK")
</pallas_src>

<mosaic_0001>
module attributes {stable_mosaic.version = 11 : i64} {
  func.func @encoder_kernel(%arg0: i32, %arg1: i32, %arg2: memref<1x128x128xf32, #tpu.memory_space<vmem>>, %arg3: memref<1x128xf32, #tpu.memory_space<vmem>>, %arg4: memref<1x128xf32, #tpu.memory_space<vmem>>, %arg5: memref<128x128xbf16, #tpu.memory_space<vmem>>, %arg6: memref<1x128xf32, #tpu.memory_space<vmem>>, %arg7: memref<128x256xbf16, #tpu.memory_space<vmem>>, %arg8: memref<1x256xf32, #tpu.memory_space<vmem>>, %arg9: memref<128x128xbf16, #tpu.memory_space<vmem>>, %arg10: memref<1x128xf32, #tpu.memory_space<vmem>>, %arg11: memref<1x128xf32, #tpu.memory_space<vmem>>, %arg12: memref<1x128xf32, #tpu.memory_space<vmem>>, %arg13: memref<128x256xbf16, #tpu.memory_space<vmem>>, %arg14: memref<1x256xf32, #tpu.memory_space<vmem>>, %arg15: memref<256x128xbf16, #tpu.memory_space<vmem>>, %arg16: memref<1x128xf32, #tpu.memory_space<vmem>>, %arg17: memref<1x64x128xf32, #tpu.memory_space<vmem>>, %arg18: memref<128x128xbf16, #tpu.memory_space<vmem>>, %arg19: memref<128x256xbf16, #tpu.memory_space<vmem>>) attributes {dimension_semantics = [#tpu.dimension_semantics<parallel>, #tpu.dimension_semantics<arbitrary>], iteration_bounds = array<i64: 2, 2>, scalar_prefetch = 0 : i64, scratch_operands = 2 : i64, tpu.core_type = #tpu.core_type<tc>, window_params = [{transform_indices = @transform_0, window_bounds = array<i64: 1, 128, 128>}, {pipeline_mode = #tpu.pipeline_mode<synchronous>, transform_indices = @transform_1, window_bounds = array<i64: 1, 128>}, {pipeline_mode = #tpu.pipeline_mode<synchronous>, transform_indices = @transform_2, window_bounds = array<i64: 1, 128>}, {pipeline_mode = #tpu.pipeline_mode<synchronous>, transform_indices = @transform_3, window_bounds = array<i64: 128, 128>}, {pipeline_mode = #tpu.pipeline_mode<synchronous>, transform_indices = @transform_4, window_bounds = array<i64: 1, 128>}, {pipeline_mode = #tpu.pipeline_mode<synchronous>, transform_indices = @transform_5, window_bounds = array<i64: 128, 256>}, {pipeline_mode = #tpu.pipeline_mode<synchronous>, transform_indices = @transform_6, window_bounds = array<i64: 1, 256>}, {pipeline_mode = #tpu.pipeline_mode<synchronous>, transform_indices = @transform_7, window_bounds = array<i64: 128, 128>}, {pipeline_mode = #tpu.pipeline_mode<synchronous>, transform_indices = @transform_8, window_bounds = array<i64: 1, 128>}, {pipeline_mode = #tpu.pipeline_mode<synchronous>, transform_indices = @transform_9, window_bounds = array<i64: 1, 128>}, {pipeline_mode = #tpu.pipeline_mode<synchronous>, transform_indices = @transform_10, window_bounds = array<i64: 1, 128>}, {pipeline_mode = #tpu.pipeline_mode<synchronous>, transform_indices = @transform_11, window_bounds = array<i64: 128, 256>}, {pipeline_mode = #tpu.pipeline_mode<synchronous>, transform_indices = @transform_12, window_bounds = array<i64: 1, 256>}, {pipeline_mode = #tpu.pipeline_mode<synchronous>, transform_indices = @transform_13, window_bounds = array<i64: 256, 128>}, {pipeline_mode = #tpu.pipeline_mode<synchronous>, transform_indices = @transform_14, window_bounds = array<i64: 1, 128>}, {transform_indices = @transform_15, window_bounds = array<i64: 1, 64, 128>}]} {
    %c0_i32 = arith.constant 0 : i32
    %0 = arith.cmpi eq, %arg1, %c0_i32 : i32
    %1 = arith.extui %0 : i1 to i32
    %c0_i32_0 = arith.constant 0 : i32
    %2 = arith.cmpi ne, %1, %c0_i32_0 : i32
    scf.if %2 {
      %c0_55 = arith.constant 0 : index
      %c0_56 = arith.constant 0 : index
      %c0_57 = arith.constant 0 : index
      %137 = vector.load %arg2[%c0_55, %c0_56, %c0_57] : memref<1x128x128xf32, #tpu.memory_space<vmem>>, vector<1x128x128xf32>
      %138 = vector.shape_cast %137 : vector<1x128x128xf32> to vector<128x128xf32>
      %c0_58 = arith.constant 0 : index
      %c0_59 = arith.constant 0 : index
      %139 = vector.load %arg3[%c0_58, %c0_59] : memref<1x128xf32, #tpu.memory_space<vmem>>, vector<1x128xf32>
      %c0_60 = arith.constant 0 : index
      %c0_61 = arith.constant 0 : index
      %140 = vector.load %arg4[%c0_60, %c0_61] : memref<1x128xf32, #tpu.memory_space<vmem>>, vector<1x128xf32>
      %cst_62 = arith.constant dense<0.000000e+00> : vector<128xf32>
      %141 = vector.multi_reduction <add>, %138, %cst_62 [1] : vector<128x128xf32> to vector<128xf32>
      %142 = vector.shape_cast %141 : vector<128xf32> to vector<128x1xf32>
      %cst_63 = arith.constant 1.280000e+02 : f32
      %143 = vector.broadcast %cst_63 : f32 to vector<128x1xf32>
      %144 = arith.divf %142, %143 : vector<128x1xf32>
      %145 = vector.broadcast %144 : vector<128x1xf32> to vector<128x128xf32>
      %146 = arith.subf %138, %145 : vector<128x128xf32>
      %147 = arith.mulf %146, %146 : vector<128x128xf32>
      %cst_64 = arith.constant dense<0.000000e+00> : vector<128xf32>
      %148 = vector.multi_reduction <add>, %147, %cst_64 [1] : vector<128x128xf32> to vector<128xf32>
      %149 = vector.shape_cast %148 : vector<128xf32> to vector<128x1xf32>
      %cst_65 = arith.constant 1.280000e+02 : f32
      %150 = vector.broadcast %cst_65 : f32 to vector<128x1xf32>
      %151 = arith.divf %149, %150 : vector<128x1xf32>
      %152 = vector.broadcast %144 : vector<128x1xf32> to vector<128x128xf32>
      %153 = arith.subf %138, %152 : vector<128x128xf32>
      %cst_66 = arith.constant 9.99999997E-7 : f32
      %154 = vector.broadcast %cst_66 : f32 to vector<128x1xf32>
      %155 = arith.addf %151, %154 : vector<128x1xf32>
      %156 = math.rsqrt %155 : vector<128x1xf32>
      %157 = vector.broadcast %156 : vector<128x1xf32> to vector<128x128xf32>
      %158 = arith.mulf %153, %157 : vector<128x128xf32>
      %159 = vector.broadcast %139 : vector<1x128xf32> to vector<128x128xf32>
      %160 = arith.mulf %158, %159 : vector<128x128xf32>
      %161 = vector.broadcast %140 : vector<1x128xf32> to vector<128x128xf32>
      %162 = arith.addf %160, %161 : vector<128x128xf32>
      %163 = arith.truncf %162 : vector<128x128xf32> to vector<128x128xbf16>
      %c0_67 = arith.constant 0 : index
      %c0_68 = arith.constant 0 : index
      %164 = vector.load %arg18[%c0_67, %c0_68] : memref<128x128xbf16, #tpu.memory_space<vmem>>, vector<128x128xbf16>
      tpu.vector_store %arg18[%c0_67, %c0_68], %163 {strides = array<i32>} : memref<128x128xbf16, #tpu.memory_space<vmem>>, vector<128x128xbf16>,
      %c0_69 = arith.constant 0 : index
      %c0_70 = arith.constant 0 : index
      %165 = vector.load %arg7[%c0_69, %c0_70] : memref<128x256xbf16, #tpu.memory_space<vmem>>, vector<128x256xbf16>
      %cst_71 = arith.constant dense<0.000000e+00> : vector<128x256xf32>
      %166 = tpu.matmul %163, %165, %cst_71 {dimension_numbers = #tpu.dot_dimension_numbers<[1], [0], [0], [1], [0, 0, 1, 1], [], []>} : vector<128x128xbf16>, vector<128x256xbf16>, vector<128x256xf32> -> vector<128x256xf32>
      %c0_72 = arith.constant 0 : index
      %c0_73 = arith.constant 0 : index
      %167 = vector.load %arg8[%c0_72, %c0_73] : memref<1x256xf32, #tpu.memory_space<vmem>>, vector<1x256xf32>
      %168 = vector.broadcast %167 : vector<1x256xf32> to vector<128x256xf32>
      %169 = arith.addf %166, %168 : vector<128x256xf32>
      %170 = arith.truncf %169 : vector<128x256xf32> to vector<128x256xbf16>
      %c0_74 = arith.constant 0 : index
      %c0_75 = arith.constant 0 : index
      %171 = vector.load %arg19[%c0_74, %c0_75] : memref<128x256xbf16, #tpu.memory_space<vmem>>, vector<128x256xbf16>
      tpu.vector_store %arg19[%c0_74, %c0_75], %170 {strides = array<i32>} : memref<128x256xbf16, #tpu.memory_space<vmem>>, vector<128x256xbf16>,
    } else {
    }
    %c64_i32 = arith.constant 64 : i32
    %3 = arith.muli %arg1, %c64_i32 : i32
    %4 = tpu.assume_multiple %3, 64 : i32
    %c0 = arith.constant 0 : index
    %5 = arith.index_cast %4 : i32 to index
    %c0_1 = arith.constant 0 : index
    %6 = vector.load %arg2[%c0, %5, %c0_1] : memref<1x128x128xf32, #tpu.memory_space<vmem>>, vector<1x64x128xf32>
    %7 = vector.shape_cast %6 : vector<1x64x128xf32> to vector<64x128xf32>
    %8 = arith.index_cast %4 : i32 to index
    %c0_2 = arith.constant 0 : index
    %9 = vector.load %arg18[%8, %c0_2] : memref<128x128xbf16, #tpu.memory_space<vmem>>, vector<64x128xbf16>
    %c0_3 = arith.constant 0 : index
    %c0_4 = arith.constant 0 : index
    %10 = vector.load %arg5[%c0_3, %c0_4] : memref<128x128xbf16, #tpu.memory_space<vmem>>, vector<128x128xbf16>
    %cst = arith.constant dense<0.000000e+00> : vector<64x128xf32>
    %11 = tpu.matmul %9, %10, %cst {dimension_numbers = #tpu.dot_dimension_numbers<[1], [0], [0], [1], [0, 0, 1, 1], [], []>} : vector<64x128xbf16>, vector<128x128xbf16>, vector<64x128xf32> -> vector<64x128xf32>
    %c0_5 = arith.constant 0 : index
    %c0_6 = arith.constant 0 : index
    %12 = vector.load %arg6[%c0_5, %c0_6] : memref<1x128xf32, #tpu.memory_space<vmem>>, vector<1x128xf32>
    %13 = vector.broadcast %12 : vector<1x128xf32> to vector<64x128xf32>
    %14 = arith.addf %11, %13 : vector<64x128xf32>
    %15 = arith.truncf %14 : vector<64x128xf32> to vector<64x128xbf16>
    %c0_7 = arith.constant 0 : index
    %c0_8 = arith.constant 0 : index
    %16 = vector.load %arg19[%c0_7, %c0_8] : memref<128x256xbf16, #tpu.memory_space<vmem>>, vector<128x256xbf16>
    %17 = vector.extract_strided_slice %15 {offsets = [0, 0], sizes = [64, 32], strides = [1, 1]} : vector<64x128xbf16> to vector<64x32xbf16>
    %18 = vector.extract_strided_slice %16 {offsets = [0, 0], sizes = [128, 32], strides = [1, 1]} : vector<128x256xbf16> to vector<128x32xbf16>
    %19 = vector.extract_strided_slice %16 {offsets = [0, 128], sizes = [128, 32], strides = [1, 1]} : vector<128x256xbf16> to vector<128x32xbf16>
    %cst_9 = arith.constant dense<0.000000e+00> : vector<64x128xf32>
    %20 = tpu.matmul %17, %18, %cst_9 {dimension_numbers = #tpu.dot_dimension_numbers<[1], [1], [0], [0], [0, 0, 1, 0], [], []>} : vector<64x32xbf16>, vector<128x32xbf16>, vector<64x128xf32> -> vector<64x128xf32>
    %cst_10 = arith.constant dense<0xFF800000> : vector<64xf32>
    %21 = vector.multi_reduction <maximumf>, %20, %cst_10 [1] : vector<64x128xf32> to vector<64xf32>
    %22 = vector.shape_cast %21 : vector<64xf32> to vector<64x1xf32>
    %23 = vector.broadcast %22 : vector<64x1xf32> to vector<64x128xf32>
    %24 = arith.subf %20, %23 : vector<64x128xf32>
    %25 = math.exp %24 : vector<64x128xf32>
    %cst_11 = arith.constant dense<0.000000e+00> : vector<64xf32>
    %26 = vector.multi_reduction <add>, %25, %cst_11 [1] : vector<64x128xf32> to vector<64xf32>
    %27 = vector.shape_cast %26 : vector<64xf32> to vector<64x1xf32>
    %28 = tpu.reciprocal %27 {approx = true} : vector<64x1xf32> -> vector<64x1xf32>
    %29 = vector.broadcast %28 : vector<64x1xf32> to vector<64x128xf32>
    %30 = arith.mulf %25, %29 : vector<64x128xf32>
    %31 = arith.truncf %30 : vector<64x128xf32> to vector<64x128xbf16>
    %cst_12 = arith.constant dense<0.000000e+00> : vector<64x32xf32>
    %32 = tpu.matmul %31, %19, %cst_12 {dimension_numbers = #tpu.dot_dimension_numbers<[1], [0], [0], [1], [0, 0, 1, 1], [], []>} : vector<64x128xbf16>, vector<128x32xbf16>, vector<64x32xf32> -> vector<64x32xf32>
    %33 = vector.extract_strided_slice %15 {offsets = [0, 32], sizes = [64, 32], strides = [1, 1]} : vector<64x128xbf16> to vector<64x32xbf16>
    %34 = vector.extract_strided_slice %16 {offsets = [0, 32], sizes = [128, 32], strides = [1, 1]} : vector<128x256xbf16> to vector<128x32xbf16>
    %35 = vector.extract_strided_slice %16 {offsets = [0, 160], sizes = [128, 32], strides = [1, 1]} : vector<128x256xbf16> to vector<128x32xbf16>
    %cst_13 = arith.constant dense<0.000000e+00> : vector<64x128xf32>
    %36 = tpu.matmul %33, %34, %cst_13 {dimension_numbers = #tpu.dot_dimension_numbers<[1], [1], [0], [0], [0, 0, 1, 0], [], []>} : vector<64x32xbf16>, vector<128x32xbf16>, vector<64x128xf32> -> vector<64x128xf32>
    %cst_14 = arith.constant dense<0xFF800000> : vector<64xf32>
    %37 = vector.multi_reduction <maximumf>, %36, %cst_14 [1] : vector<64x128xf32> to vector<64xf32>
    %38 = vector.shape_cast %37 : vector<64xf32> to vector<64x1xf32>
    %39 = vector.broadcast %38 : vector<64x1xf32> to vector<64x128xf32>
    %40 = arith.subf %36, %39 : vector<64x128xf32>
    %41 = math.exp %40 : vector<64x128xf32>
    %cst_15 = arith.constant dense<0.000000e+00> : vector<64xf32>
    %42 = vector.multi_reduction <add>, %41, %cst_15 [1] : vector<64x128xf32> to vector<64xf32>
    %43 = vector.shape_cast %42 : vector<64xf32> to vector<64x1xf32>
    %44 = tpu.reciprocal %43 {approx = true} : vector<64x1xf32> -> vector<64x1xf32>
    %45 = vector.broadcast %44 : vector<64x1xf32> to vector<64x128xf32>
    %46 = arith.mulf %41, %45 : vector<64x128xf32>
    %47 = arith.truncf %46 : vector<64x128xf32> to vector<64x128xbf16>
    %cst_16 = arith.constant dense<0.000000e+00> : vector<64x32xf32>
    %48 = tpu.matmul %47, %35, %cst_16 {dimension_numbers = #tpu.dot_dimension_numbers<[1], [0], [0], [1], [0, 0, 1, 1], [], []>} : vector<64x128xbf16>, vector<128x32xbf16>, vector<64x32xf32> -> vector<64x32xf32>
    %49 = vector.extract_strided_slice %15 {offsets = [0, 64], sizes = [64, 32], strides = [1, 1]} : vector<64x128xbf16> to vector<64x32xbf16>
    %50 = vector.extract_strided_slice %16 {offsets = [0, 64], sizes = [128, 32], strides = [1, 1]} : vector<128x256xbf16> to vector<128x32xbf16>
    %51 = vector.extract_strided_slice %16 {offsets = [0, 192], sizes = [128, 32], strides = [1, 1]} : vector<128x256xbf16> to vector<128x32xbf16>
    %cst_17 = arith.constant dense<0.000000e+00> : vector<64x128xf32>
    %52 = tpu.matmul %49, %50, %cst_17 {dimension_numbers = #tpu.dot_dimension_numbers<[1], [1], [0], [0], [0, 0, 1, 0], [], []>} : vector<64x32xbf16>, vector<128x32xbf16>, vector<64x128xf32> -> vector<64x128xf32>
    %cst_18 = arith.constant dense<0xFF800000> : vector<64xf32>
    %53 = vector.multi_reduction <maximumf>, %52, %cst_18 [1] : vector<64x128xf32> to vector<64xf32>
    %54 = vector.shape_cast %53 : vector<64xf32> to vector<64x1xf32>
    %55 = vector.broadcast %54 : vector<64x1xf32> to vector<64x128xf32>
    %56 = arith.subf %52, %55 : vector<64x128xf32>
    %57 = math.exp %56 : vector<64x128xf32>
    %cst_19 = arith.constant dense<0.000000e+00> : vector<64xf32>
    %58 = vector.multi_reduction <add>, %57, %cst_19 [1] : vector<64x128xf32> to vector<64xf32>
    %59 = vector.shape_cast %58 : vector<64xf32> to vector<64x1xf32>
    %60 = tpu.reciprocal %59 {approx = true} : vector<64x1xf32> -> vector<64x1xf32>
    %61 = vector.broadcast %60 : vector<64x1xf32> to vector<64x128xf32>
    %62 = arith.mulf %57, %61 : vector<64x128xf32>
    %63 = arith.truncf %62 : vector<64x128xf32> to vector<64x128xbf16>
    %cst_20 = arith.constant dense<0.000000e+00> : vector<64x32xf32>
    %64 = tpu.matmul %63, %51, %cst_20 {dimension_numbers = #tpu.dot_dimension_numbers<[1], [0], [0], [1], [0, 0, 1, 1], [], []>} : vector<64x128xbf16>, vector<128x32xbf16>, vector<64x32xf32> -> vector<64x32xf32>
    %65 = vector.extract_strided_slice %15 {offsets = [0, 96], sizes = [64, 32], strides = [1, 1]} : vector<64x128xbf16> to vector<64x32xbf16>
    %66 = vector.extract_strided_slice %16 {offsets = [0, 96], sizes = [128, 32], strides = [1, 1]} : vector<128x256xbf16> to vector<128x32xbf16>
    %67 = vector.extract_strided_slice %16 {offsets = [0, 224], sizes = [128, 32], strides = [1, 1]} : vector<128x256xbf16> to vector<128x32xbf16>
    %cst_21 = arith.constant dense<0.000000e+00> : vector<64x128xf32>
    %68 = tpu.matmul %65, %66, %cst_21 {dimension_numbers = #tpu.dot_dimension_numbers<[1], [1], [0], [0], [0, 0, 1, 0], [], []>} : vector<64x32xbf16>, vector<128x32xbf16>, vector<64x128xf32> -> vector<64x128xf32>
    %cst_22 = arith.constant dense<0xFF800000> : vector<64xf32>
    %69 = vector.multi_reduction <maximumf>, %68, %cst_22 [1] : vector<64x128xf32> to vector<64xf32>
    %70 = vector.shape_cast %69 : vector<64xf32> to vector<64x1xf32>
    %71 = vector.broadcast %70 : vector<64x1xf32> to vector<64x128xf32>
    %72 = arith.subf %68, %71 : vector<64x128xf32>
    %73 = math.exp %72 : vector<64x128xf32>
    %cst_23 = arith.constant dense<0.000000e+00> : vector<64xf32>
    %74 = vector.multi_reduction <add>, %73, %cst_23 [1] : vector<64x128xf32> to vector<64xf32>
    %75 = vector.shape_cast %74 : vector<64xf32> to vector<64x1xf32>
    %76 = tpu.reciprocal %75 {approx = true} : vector<64x1xf32> -> vector<64x1xf32>
    %77 = vector.broadcast %76 : vector<64x1xf32> to vector<64x128xf32>
    %78 = arith.mulf %73, %77 : vector<64x128xf32>
    %79 = arith.truncf %78 : vector<64x128xf32> to vector<64x128xbf16>
    %cst_24 = arith.constant dense<0.000000e+00> : vector<64x32xf32>
    %80 = tpu.matmul %79, %67, %cst_24 {dimension_numbers = #tpu.dot_dimension_numbers<[1], [0], [0], [1], [0, 0, 1, 1], [], []>} : vector<64x128xbf16>, vector<128x32xbf16>, vector<64x32xf32> -> vector<64x32xf32>
    %81 = tpu.concatenate %32, %48, %64, %80 in 1 : vector<64x32xf32>, vector<64x32xf32>, vector<64x32xf32>, vector<64x32xf32> -> vector<64x128xf32>
    %82 = arith.truncf %81 : vector<64x128xf32> to vector<64x128xbf16>
    %c0_25 = arith.constant 0 : index
    %c0_26 = arith.constant 0 : index
    %83 = vector.load %arg9[%c0_25, %c0_26] : memref<128x128xbf16, #tpu.memory_space<vmem>>, vector<128x128xbf16>
    %cst_27 = arith.constant dense<0.000000e+00> : vector<64x128xf32>
    %84 = tpu.matmul %82, %83, %cst_27 {dimension_numbers = #tpu.dot_dimension_numbers<[1], [0], [0], [1], [0, 0, 1, 1], [], []>} : vector<64x128xbf16>, vector<128x128xbf16>, vector<64x128xf32> -> vector<64x128xf32>
    %c0_28 = arith.constant 0 : index
    %c0_29 = arith.constant 0 : index
    %85 = vector.load %arg10[%c0_28, %c0_29] : memref<1x128xf32, #tpu.memory_space<vmem>>, vector<1x128xf32>
    %86 = vector.broadcast %85 : vector<1x128xf32> to vector<64x128xf32>
    %87 = arith.addf %84, %86 : vector<64x128xf32>
    %88 = arith.addf %87, %7 : vector<64x128xf32>
    %c0_30 = arith.constant 0 : index
    %c0_31 = arith.constant 0 : index
    %89 = vector.load %arg11[%c0_30, %c0_31] : memref<1x128xf32, #tpu.memory_space<vmem>>, vector<1x128xf32>
    %c0_32 = arith.constant 0 : index
    %c0_33 = arith.constant 0 : index
    %90 = vector.load %arg12[%c0_32, %c0_33] : memref<1x128xf32, #tpu.memory_space<vmem>>, vector<1x128xf32>
    %cst_34 = arith.constant dense<0.000000e+00> : vector<64xf32>
    %91 = vector.multi_reduction <add>, %88, %cst_34 [1] : vector<64x128xf32> to vector<64xf32>
    %92 = vector.shape_cast %91 : vector<64xf32> to vector<64x1xf32>
    %cst_35 = arith.constant 1.280000e+02 : f32
    %93 = vector.broadcast %cst_35 : f32 to vector<64x1xf32>
    %94 = arith.divf %92, %93 : vector<64x1xf32>
    %95 = vector.broadcast %94 : vector<64x1xf32> to vector<64x128xf32>
    %96 = arith.subf %88, %95 : vector<64x128xf32>
    %97 = arith.mulf %96, %96 : vector<64x128xf32>
    %cst_36 = arith.constant dense<0.000000e+00> : vector<64xf32>
    %98 = vector.multi_reduction <add>, %97, %cst_36 [1] : vector<64x128xf32> to vector<64xf32>
    %99 = vector.shape_cast %98 : vector<64xf32> to vector<64x1xf32>
    %cst_37 = arith.constant 1.280000e+02 : f32
    %100 = vector.broadcast %cst_37 : f32 to vector<64x1xf32>
    %101 = arith.divf %99, %100 : vector<64x1xf32>
    %102 = vector.broadcast %94 : vector<64x1xf32> to vector<64x128xf32>
    %103 = arith.subf %88, %102 : vector<64x128xf32>
    %cst_38 = arith.constant 9.99999997E-7 : f32
    %104 = vector.broadcast %cst_38 : f32 to vector<64x1xf32>
    %105 = arith.addf %101, %104 : vector<64x1xf32>
    %106 = math.rsqrt %105 : vector<64x1xf32>
    %107 = vector.broadcast %106 : vector<64x1xf32> to vector<64x128xf32>
    %108 = arith.mulf %103, %107 : vector<64x128xf32>
    %109 = vector.broadcast %89 : vector<1x128xf32> to vector<64x128xf32>
    %110 = arith.mulf %108, %109 : vector<64x128xf32>
    %111 = vector.broadcast %90 : vector<1x128xf32> to vector<64x128xf32>
    %112 = arith.addf %110, %111 : vector<64x128xf32>
    %113 = arith.truncf %112 : vector<64x128xf32> to vector<64x128xbf16>
    %c0_39 = arith.constant 0 : index
    %c0_40 = arith.constant 0 : index
    %114 = vector.load %arg13[%c0_39, %c0_40] : memref<128x256xbf16, #tpu.memory_space<vmem>>, vector<128x256xbf16>
    %cst_41 = arith.constant dense<0.000000e+00> : vector<64x256xf32>
    %115 = tpu.matmul %113, %114, %cst_41 {dimension_numbers = #tpu.dot_dimension_numbers<[1], [0], [0], [1], [0, 0, 1, 1], [], []>} : vector<64x128xbf16>, vector<128x256xbf16>, vector<64x256xf32> -> vector<64x256xf32>
    %c0_42 = arith.constant 0 : index
    %c0_43 = arith.constant 0 : index
    %116 = vector.load %arg14[%c0_42, %c0_43] : memref<1x256xf32, #tpu.memory_space<vmem>>, vector<1x256xf32>
    %117 = vector.broadcast %116 : vector<1x256xf32> to vector<64x256xf32>
    %118 = arith.addf %115, %117 : vector<64x256xf32>
    %cst_44 = arith.constant 5.000000e-01 : f32
    %119 = vector.broadcast %cst_44 : f32 to vector<64x256xf32>
    %120 = arith.mulf %119, %118 : vector<64x256xf32>
    %cst_45 = arith.constant 0.707106769 : f32
    %121 = vector.broadcast %cst_45 : f32 to vector<64x256xf32>
    %122 = arith.mulf %118, %121 : vector<64x256xf32>
    %123 = math.erf %122 : vector<64x256xf32>
    %cst_46 = arith.constant 1.000000e+00 : f32
    %124 = vector.broadcast %cst_46 : f32 to vector<64x256xf32>
    %125 = arith.addf %124, %123 : vector<64x256xf32>
    %126 = arith.mulf %120, %125 : vector<64x256xf32>
    %127 = arith.truncf %126 : vector<64x256xf32> to vector<64x256xbf16>
    %c0_47 = arith.constant 0 : index
    %c0_48 = arith.constant 0 : index
    %128 = vector.load %arg15[%c0_47, %c0_48] : memref<256x128xbf16, #tpu.memory_space<vmem>>, vector<256x128xbf16>
    %cst_49 = arith.constant dense<0.000000e+00> : vector<64x128xf32>
    %129 = tpu.matmul %127, %128, %cst_49 {dimension_numbers = #tpu.dot_dimension_numbers<[1], [0], [0], [1], [0, 0, 1, 1], [], []>} : vector<64x256xbf16>, vector<256x128xbf16>, vector<64x128xf32> -> vector<64x128xf32>
    %c0_50 = arith.constant 0 : index
    %c0_51 = arith.constant 0 : index
    %130 = vector.load %arg16[%c0_50, %c0_51] : memref<1x128xf32, #tpu.memory_space<vmem>>, vector<1x128xf32>
    %131 = vector.broadcast %130 : vector<1x128xf32> to vector<64x128xf32>
    %132 = arith.addf %129, %131 : vector<64x128xf32>
    %133 = arith.addf %132, %88 : vector<64x128xf32>
    %c0_52 = arith.constant 0 : index
    %c0_53 = arith.constant 0 : index
    %c0_54 = arith.constant 0 : index
    %134 = vector.load %arg17[%c0_52, %c0_53, %c0_54] : memref<1x64x128xf32, #tpu.memory_space<vmem>>, vector<1x64x128xf32>
    %135 = vector.shape_cast %134 : vector<1x64x128xf32> to vector<64x128xf32>
    %136 = vector.shape_cast %133 : vector<64x128xf32> to vector<1x64x128xf32>
    tpu.vector_store %arg17[%c0_52, %c0_53, %c0_54], %136 {strides = array<i32>} : memref<1x64x128xf32, #tpu.memory_space<vmem>>, vector<1x64x128xf32>,
    return
  }
  func.func @transform_0(%arg0: i32, %arg1: i32) -> (i32, i32, i32) {
    %c0_i32 = arith.constant 0 : i32
    %c0_i32_0 = arith.constant 0 : i32
    %c0_i32_1 = arith.constant 0 : i32
    return %arg0, %c0_i32, %c0_i32_0 : i32, i32, i32
  }
  func.func @transform_1(%arg0: i32, %arg1: i32) -> (i32, i32) {
    %c0_i32 = arith.constant 0 : i32
    %c0_i32_0 = arith.constant 0 : i32
    %c0_i32_1 = arith.constant 0 : i32
    return %c0_i32, %c0_i32_0 : i32, i32
  }
  func.func @transform_2(%arg0: i32, %arg1: i32) -> (i32, i32) {
    %c0_i32 = arith.constant 0 : i32
    %c0_i32_0 = arith.constant 0 : i32
    %c0_i32_1 = arith.constant 0 : i32
    return %c0_i32, %c0_i32_0 : i32, i32
  }
  func.func @transform_3(%arg0: i32, %arg1: i32) -> (i32, i32) {
    %c0_i32 = arith.constant 0 : i32
    %c0_i32_0 = arith.constant 0 : i32
    %c0_i32_1 = arith.constant 0 : i32
    return %c0_i32, %c0_i32_0 : i32, i32
  }
  func.func @transform_4(%arg0: i32, %arg1: i32) -> (i32, i32) {
    %c0_i32 = arith.constant 0 : i32
    %c0_i32_0 = arith.constant 0 : i32
    %c0_i32_1 = arith.constant 0 : i32
    return %c0_i32, %c0_i32_0 : i32, i32
  }
  func.func @transform_5(%arg0: i32, %arg1: i32) -> (i32, i32) {
    %c0_i32 = arith.constant 0 : i32
    %c0_i32_0 = arith.constant 0 : i32
    %c0_i32_1 = arith.constant 0 : i32
    return %c0_i32, %c0_i32_0 : i32, i32
  }
  func.func @transform_6(%arg0: i32, %arg1: i32) -> (i32, i32) {
    %c0_i32 = arith.constant 0 : i32
    %c0_i32_0 = arith.constant 0 : i32
    %c0_i32_1 = arith.constant 0 : i32
    return %c0_i32, %c0_i32_0 : i32, i32
  }
  func.func @transform_7(%arg0: i32, %arg1: i32) -> (i32, i32) {
    %c0_i32 = arith.constant 0 : i32
    %c0_i32_0 = arith.constant 0 : i32
    %c0_i32_1 = arith.constant 0 : i32
    return %c0_i32, %c0_i32_0 : i32, i32
  }
  func.func @transform_8(%arg0: i32, %arg1: i32) -> (i32, i32) {
    %c0_i32 = arith.constant 0 : i32
    %c0_i32_0 = arith.constant 0 : i32
    %c0_i32_1 = arith.constant 0 : i32
    return %c0_i32, %c0_i32_0 : i32, i32
  }
  func.func @transform_9(%arg0: i32, %arg1: i32) -> (i32, i32) {
    %c0_i32 = arith.constant 0 : i32
    %c0_i32_0 = arith.constant 0 : i32
    %c0_i32_1 = arith.constant 0 : i32
    return %c0_i32, %c0_i32_0 : i32, i32
  }
  func.func @transform_10(%arg0: i32, %arg1: i32) -> (i32, i32) {
    %c0_i32 = arith.constant 0 : i32
    %c0_i32_0 = arith.constant 0 : i32
    %c0_i32_1 = arith.constant 0 : i32
    return %c0_i32, %c0_i32_0 : i32, i32
  }
  func.func @transform_11(%arg0: i32, %arg1: i32) -> (i32, i32) {
    %c0_i32 = arith.constant 0 : i32
    %c0_i32_0 = arith.constant 0 : i32
    %c0_i32_1 = arith.constant 0 : i32
    return %c0_i32, %c0_i32_0 : i32, i32
  }
  func.func @transform_12(%arg0: i32, %arg1: i32) -> (i32, i32) {
    %c0_i32 = arith.constant 0 : i32
    %c0_i32_0 = arith.constant 0 : i32
    %c0_i32_1 = arith.constant 0 : i32
    return %c0_i32, %c0_i32_0 : i32, i32
  }
  func.func @transform_13(%arg0: i32, %arg1: i32) -> (i32, i32) {
    %c0_i32 = arith.constant 0 : i32
    %c0_i32_0 = arith.constant 0 : i32
    %c0_i32_1 = arith.constant 0 : i32
    return %c0_i32, %c0_i32_0 : i32, i32
  }
  func.func @transform_14(%arg0: i32, %arg1: i32) -> (i32, i32) {
    %c0_i32 = arith.constant 0 : i32
    %c0_i32_0 = arith.constant 0 : i32
    %c0_i32_1 = arith.constant 0 : i32
    return %c0_i32, %c0_i32_0 : i32, i32
  }
  func.func @transform_15(%arg0: i32, %arg1: i32) -> (i32, i32, i32) {
    %c0_i32 = arith.constant 0 : i32
    %c0_i32_0 = arith.constant 0 : i32
    return %arg0, %arg1, %c0_i32 : i32, i32, i32
  }
}

</mosaic_0001>

<llo_original>
// kernel: tpu_custom_call.1
$region0: #{tpu_custom_call.1}
  #allocation0 [shape = 'u32[]', space=smem, size = 0x4, offset = 0x4, fixed_abs, tag = 'smem constant byte address 0x4 - core index']
  #allocation1 [shape = 'u32[144,128]{1,0:T(1,128)}', space=vmem, size = 0x12000, scoped, tag = 'internal scratch']
  #allocation2 [shape = 'bf16[128,128]{1,0:T(16,128)(2,1)}', space=vmem, size = 0x8000, scoped, tag = 'scratch operand']
  #allocation3 [shape = 'bf16[128,256]{1,0:T(16,128)(2,1)}', space=vmem, size = 0x10000, scoped, tag = 'scratch operand']
  %s0 = inlined_call_operand.hbm [shape: f32[2,128,128], index: 0, kind: input, shape index: {}]
  %s1 = inlined_call_operand.vmem [shape: f32[1,128], index: 1, kind: input, shape index: {}]
  %s2 = inlined_call_operand.vmem [shape: f32[1,128], index: 2, kind: input, shape index: {}]
  %s3 = inlined_call_operand.hbm [shape: bf16[128,128], index: 3, kind: input, shape index: {}]
  %s4 = inlined_call_operand.vmem [shape: f32[1,128], index: 4, kind: input, shape index: {}]
  %s5 = inlined_call_operand.hbm [shape: bf16[128,256], index: 5, kind: input, shape index: {}]
  %s6 = inlined_call_operand.vmem [shape: f32[1,256], index: 6, kind: input, shape index: {}]
  %s7 = inlined_call_operand.hbm [shape: bf16[128,128], index: 7, kind: input, shape index: {}]
  %s8 = inlined_call_operand.vmem [shape: f32[1,128], index: 8, kind: input, shape index: {}]
  %s9 = inlined_call_operand.vmem [shape: f32[1,128], index: 9, kind: input, shape index: {}]
  %s10 = inlined_call_operand.vmem [shape: f32[1,128], index: 10, kind: input, shape index: {}]
  %s11 = inlined_call_operand.hbm [shape: bf16[128,256], index: 11, kind: input, shape index: {}]
  %s12 = inlined_call_operand.vmem [shape: f32[1,256], index: 12, kind: input, shape index: {}]
  %s13 = inlined_call_operand.hbm [shape: bf16[256,128], index: 13, kind: input, shape index: {}]
  %s14 = inlined_call_operand.vmem [shape: f32[1,128], index: 14, kind: input, shape index: {}]
  %s15 = inlined_call_operand.hbm [shape: f32[2,128,128], index: 15, kind: output, shape index: {}]
  %s16 = sld [smem:[#allocation0]]
  $region121: #{tpu_custom_call.1} parent=0
    _
  %s18 = ssub.s32 1, %s16
  %s19 = scalar_select 0, %s18, %s16
  $region1: #{tpu_custom_call.1} parent=0
    #allocation4 [shape = 'u8[131072]{0}', space=vmem, size = 0x20000, scoped, tag = 'input window, operand 0']
    #allocation5 [shape = 's32[2]{0}', space=sflag, size = 0x8, scoped, tag = 'scoped memory for tpu_custom_call.1']
    #allocation6 [shape = 's32[2]{0}', space=sflag, size = 0x8, scoped, tag = 'scoped memory for tpu_custom_call.1']
    #allocation7 [shape = 'u8[32768]{0}', space=vmem, size = 0x8000, scoped, tag = 'input window, operand 3, single buffered']
    #allocation8 [shape = 's32[1]{0}', space=sflag, size = 0x4, scoped, tag = 'scoped memory for tpu_custom_call.1']
    #allocation9 [shape = 'u8[65536]{0}', space=vmem, size = 0x10000, scoped, tag = 'input window, operand 5, single buffered']
    #allocation10 [shape = 'u8[32768]{0}', space=vmem, size = 0x8000, scoped, tag = 'input window, operand 7, single buffered']
    #allocation11 [shape = 's32[1]{0}', space=sflag, size = 0x4, scoped, tag = 'scoped memory for tpu_custom_call.1']
    #allocation12 [shape = 'u8[65536]{0}', space=vmem, size = 0x10000, scoped, tag = 'input window, operand 11, single buffered']
    #allocation13 [shape = 'u8[65536]{0}', space=vmem, size = 0x10000, scoped, tag = 'input window, operand 13, single buffered']
    #allocation14 [shape = 's32[1]{0}', space=sflag, size = 0x4, scoped, tag = 'scoped memory for tpu_custom_call.1']
    #allocation15 [shape = 'u8[65536]{0}', space=vmem, size = 0x10000, scoped, tag = 'output window, operand 0']
    %20 = vsyncpa [#allocation5], 0
    %s21 = scalar_lea.sflag [#allocation5], 1
    %22 = vsyncpa %s21, 0
    %23 = vsyncpa [#allocation8], 0
    %24 = vsyncpa [#allocation11], 0
    %25 = vsyncpa [#allocation14], 0
    %26 = vsyncpa [#allocation6], 0
    %s27 = scalar_lea.sflag [#allocation6], 1
    %28 = vsyncpa %s27, 0
    loop: start=0, step=1, limit=6
    $region2: #{tpu_custom_call.1} parent=1 // loop_pre_header
      _
    $region3: #{tpu_custom_call.1} parent=1 // loop_header
      %s30 = sphi 0, %s34
      %p31 = scmp.ge.s32.totalorder %s30, 6
      %s37 = sphi 0, %s49
      %s38 = sphi 0, %s45
      %s39 = sphi 0, %s37
      %s40 = sphi 0, %s38
      %s41 = sphi 0, %s39
      %s42 = sphi 0, %s40
      %s52 = sphi 0, %s54
      %s55 = sphi 0, %s52
      %s56 = sphi 0, %s55
      %s72 = sphi 0, %s56
      %s76 = sphi 0, %s76
      %s78 = sphi 0, %s76
      %s79 = sphi 0, %s78
      %s93 = sphi 0, %s79
      %s97 = sphi 0, %s97
      %s99 = sphi 0, %s97
      %s100 = sphi 0, %s99
      %s114 = sphi 0, %s100
      %s118 = sphi 0, %s118
      %s120 = sphi 0, %s118
      %s121 = sphi 0, %s120
      %s135 = sphi 0, %s121
      %s139 = sphi 0, %s139
      %s141 = sphi 0, %s139
      %s142 = sphi 0, %s141
      %s156 = sphi 0, %s142
      %s160 = sphi 0, %s160
      %s162 = sphi 0, %s160
      %s163 = sphi 0, %s162
      %s177 = sphi 0, %s163
      %s181 = sphi 0, %s181
      %s183 = sphi 0, %s181
      %s184 = sphi 0, %s183
      %s198 = sphi 0, %s184
      %s202 = sphi 0, %s202
      %s204 = sphi 0, %s202
      %s205 = sphi 0, %s204
      %s219 = sphi 0, %s205
      %s223 = sphi 0, %s223
      %s225 = sphi 0, %s223
      %s226 = sphi 0, %s225
      %s240 = sphi 0, %s226
      %s244 = sphi 0, %s244
      %s246 = sphi 0, %s244
      %s247 = sphi 0, %s246
      %s261 = sphi 0, %s247
      %s265 = sphi 0, %s265
      %s267 = sphi 0, %s265
      %s268 = sphi 0, %s267
      %s282 = sphi 0, %s268
      %s286 = sphi 0, %s286
      %s288 = sphi 0, %s286
      %s289 = sphi 0, %s288
      %s303 = sphi 0, %s289
      %s307 = sphi 0, %s307
      %s309 = sphi 0, %s307
      %s310 = sphi 0, %s309
      %s324 = sphi 0, %s310
      %s328 = sphi 0, %s328
      %s330 = sphi 0, %s328
      %s331 = sphi 0, %s330
      %s345 = sphi 0, %s331
      %s349 = sphi 0, %s349
      %s351 = sphi 0, %s349
      %s352 = sphi 0, %s351
      %s366 = sphi 0, %s352
      %s374 = sphi 0, %s376
      %s377 = sphi 0, %s374
      %s378 = sphi 0, %s377
      %s394 = sphi 0, %s378
    $region4: #{tpu_custom_call.1} parent=1 // loop_header_branch
      %33 = sbr.rel (%p31) target = $region8
    $region5: #{tpu_custom_call.1} parent=1 // loop_body
      %s35 = ssub.s32 %s30, 1
      %s36 = ssub.s32 %s30, 2
      %s43 = sadd.s32 1, %s38
      %p44 = scmp.ge.s32.totalorder %s43, 2
      %s45 = scalar_select %p44, 0, %s43
      %s46 = sadd.s32 1, %s37
      %s47 = scalar_select %p44, %s46, %s37
      %p48 = scmp.ge.s32.totalorder %s47, 2
      %s49 = scalar_select %p48, 0, %s47
      %s50 = ssub.s32 %s37, %s49
      %p51 = scmp.eq.s32.totalorder %s50, 0
      %s53 = sadd.s32 %s52, 1
      %s54 = scalar_select %p51, %s52, %s53
      %p57 = pneg %p51
      %p58 = scmp.eq.s32.totalorder %s30, 3
      %p59 = por %p57, %p58
      %p60 = scmp.ne.s32.totalorder %s52, %s55
      %p61 = scmp.eq.s32.totalorder %s30, 0
      %p62 = por %p60, %p61
      %p63 = scmp.ne.s32.totalorder %s52, %s55
      %p64 = scmp.eq.s32.totalorder %s35, 3
      %p65 = por %p63, %p64
      %p66 = scmp.ne.s32.totalorder %s55, %s56
      %p67 = scmp.eq.s32.totalorder %s35, 0
      %p68 = por %p66, %p67
      %p69 = scmp.ne.s32.totalorder %s55, %s56
      %p70 = scmp.eq.s32.totalorder %s36, 3
      %p71 = por %p69, %p70
      %p73 = scmp.ne.s32.totalorder %s56, %s72
      %p74 = scmp.eq.s32.totalorder %s36, 0
      %p75 = por %p73, %p74
      %s77 = sadd.s32 %s76, 1
      %p80 = scmp.eq.s32.totalorder %s30, 3
      %p81 = scmp.ne.s32.totalorder %s76, %s78
      %p82 = scmp.eq.s32.totalorder %s30, 0
      %p83 = por %p81, %p82
      %p84 = scmp.ne.s32.totalorder %s76, %s78
      %p85 = scmp.eq.s32.totalorder %s35, 3
      %p86 = por %p84, %p85
      %p87 = scmp.ne.s32.totalorder %s78, %s79
      %p88 = scmp.eq.s32.totalorder %s35, 0
      %p89 = por %p87, %p88
      %p90 = scmp.ne.s32.totalorder %s78, %s79
      %p91 = scmp.eq.s32.totalorder %s36, 3
      %p92 = por %p90, %p91
      %p94 = scmp.ne.s32.totalorder %s79, %s93
      %p95 = scmp.eq.s32.totalorder %s36, 0
      %p96 = por %p94, %p95
      %s98 = sadd.s32 %s97, 1
      %p101 = scmp.eq.s32.totalorder %s30, 3
      %p102 = scmp.ne.s32.totalorder %s97, %s99
      %p103 = scmp.eq.s32.totalorder %s30, 0
      %p104 = por %p102, %p103
      %p105 = scmp.ne.s32.totalorder %s97, %s99
      %p106 = scmp.eq.s32.totalorder %s35, 3
      %p107 = por %p105, %p106
      %p108 = scmp.ne.s32.totalorder %s99, %s100
      %p109 = scmp.eq.s32.totalorder %s35, 0
      %p110 = por %p108, %p109
      %p111 = scmp.ne.s32.totalorder %s99, %s100
      %p112 = scmp.eq.s32.totalorder %s36, 3
      %p113 = por %p111, %p112
      %p115 = scmp.ne.s32.totalorder %s100, %s114
      %p116 = scmp.eq.s32.totalorder %s36, 0
      %p117 = por %p115, %p116
      %s119 = sadd.s32 %s118, 1
      %p122 = scmp.eq.s32.totalorder %s30, 3
      %p123 = scmp.ne.s32.totalorder %s118, %s120
      %p124 = scmp.eq.s32.totalorder %s30, 0
      %p125 = por %p123, %p124
      %p126 = scmp.ne.s32.totalorder %s118, %s120
      %p127 = scmp.eq.s32.totalorder %s35, 3
      %p128 = por %p126, %p127
      %p129 = scmp.ne.s32.totalorder %s120, %s121
      %p130 = scmp.eq.s32.totalorder %s35, 0
      %p131 = por %p129, %p130
      %p132 = scmp.ne.s32.totalorder %s120, %s121
      %p133 = scmp.eq.s32.totalorder %s36, 3
      %p134 = por %p132, %p133
      %p136 = scmp.ne.s32.totalorder %s121, %s135
      %p137 = scmp.eq.s32.totalorder %s36, 0
      %p138 = por %p136, %p137
      %s140 = sadd.s32 %s139, 1
      %p143 = scmp.eq.s32.totalorder %s30, 3
      %p144 = scmp.ne.s32.totalorder %s139, %s141
      %p145 = scmp.eq.s32.totalorder %s30, 0
      %p146 = por %p144, %p145
      %p147 = scmp.ne.s32.totalorder %s139, %s141
      %p148 = scmp.eq.s32.totalorder %s35, 3
      %p149 = por %p147, %p148
      %p150 = scmp.ne.s32.totalorder %s141, %s142
      %p151 = scmp.eq.s32.totalorder %s35, 0
      %p152 = por %p150, %p151
      %p153 = scmp.ne.s32.totalorder %s141, %s142
      %p154 = scmp.eq.s32.totalorder %s36, 3
      %p155 = por %p153, %p154
      %p157 = scmp.ne.s32.totalorder %s142, %s156
      %p158 = scmp.eq.s32.totalorder %s36, 0
      %p159 = por %p157, %p158
      %s161 = sadd.s32 %s160, 1
      %p164 = scmp.eq.s32.totalorder %s30, 3
      %p165 = scmp.ne.s32.totalorder %s160, %s162
      %p166 = scmp.eq.s32.totalorder %s30, 0
      %p167 = por %p165, %p166
      %p168 = scmp.ne.s32.totalorder %s160, %s162
      %p169 = scmp.eq.s32.totalorder %s35, 3
      %p170 = por %p168, %p169
      %p171 = scmp.ne.s32.totalorder %s162, %s163
      %p172 = scmp.eq.s32.totalorder %s35, 0
      %p173 = por %p171, %p172
      %p174 = scmp.ne.s32.totalorder %s162, %s163
      %p175 = scmp.eq.s32.totalorder %s36, 3
      %p176 = por %p174, %p175
      %p178 = scmp.ne.s32.totalorder %s163, %s177
      %p179 = scmp.eq.s32.totalorder %s36, 0
      %p180 = por %p178, %p179
      %s182 = sadd.s32 %s181, 1
      %p185 = scmp.eq.s32.totalorder %s30, 3
      %p186 = scmp.ne.s32.totalorder %s181, %s183
      %p187 = scmp.eq.s32.totalorder %s30, 0
      %p188 = por %p186, %p187
      %p189 = scmp.ne.s32.totalorder %s181, %s183
      %p190 = scmp.eq.s32.totalorder %s35, 3
      %p191 = por %p189, %p190
      %p192 = scmp.ne.s32.totalorder %s183, %s184
      %p193 = scmp.eq.s32.totalorder %s35, 0
      %p194 = por %p192, %p193
      %p195 = scmp.ne.s32.totalorder %s183, %s184
      %p196 = scmp.eq.s32.totalorder %s36, 3
      %p197 = por %p195, %p196
      %p199 = scmp.ne.s32.totalorder %s184, %s198
      %p200 = scmp.eq.s32.totalorder %s36, 0
      %p201 = por %p199, %p200
      %s203 = sadd.s32 %s202, 1
      %p206 = scmp.eq.s32.totalorder %s30, 3
      %p207 = scmp.ne.s32.totalorder %s202, %s204
      %p208 = scmp.eq.s32.totalorder %s30, 0
      %p209 = por %p207, %p208
      %p210 = scmp.ne.s32.totalorder %s202, %s204
      %p211 = scmp.eq.s32.totalorder %s35, 3
      %p212 = por %p210, %p211
      %p213 = scmp.ne.s32.totalorder %s204, %s205
      %p214 = scmp.eq.s32.totalorder %s35, 0
      %p215 = por %p213, %p214
      %p216 = scmp.ne.s32.totalorder %s204, %s205
      %p217 = scmp.eq.s32.totalorder %s36, 3
      %p218 = por %p216, %p217
      %p220 = scmp.ne.s32.totalorder %s205, %s219
      %p221 = scmp.eq.s32.totalorder %s36, 0
      %p222 = por %p220, %p221
      %s224 = sadd.s32 %s223, 1
      %p227 = scmp.eq.s32.totalorder %s30, 3
      %p228 = scmp.ne.s32.totalorder %s223, %s225
      %p229 = scmp.eq.s32.totalorder %s30, 0
      %p230 = por %p228, %p229
      %p231 = scmp.ne.s32.totalorder %s223, %s225
      %p232 = scmp.eq.s32.totalorder %s35, 3
      %p233 = por %p231, %p232
      %p234 = scmp.ne.s32.totalorder %s225, %s226
      %p235 = scmp.eq.s32.totalorder %s35, 0
      %p236 = por %p234, %p235
      %p237 = scmp.ne.s32.totalorder %s225, %s226
      %p238 = scmp.eq.s32.totalorder %s36, 3
      %p239 = por %p237, %p238
      %p241 = scmp.ne.s32.totalorder %s226, %s240
      %p242 = scmp.eq.s32.totalorder %s36, 0
      %p243 = por %p241, %p242
      %s245 = sadd.s32 %s244, 1
      %p248 = scmp.eq.s32.totalorder %s30, 3
      %p249 = scmp.ne.s32.totalorder %s244, %s246
      %p250 = scmp.eq.s32.totalorder %s30, 0
      %p251 = por %p249, %p250
      %p252 = scmp.ne.s32.totalorder %s244, %s246
      %p253 = scmp.eq.s32.totalorder %s35, 3
      %p254 = por %p252, %p253
      %p255 = scmp.ne.s32.totalorder %s246, %s247
      %p256 = scmp.eq.s32.totalorder %s35, 0
      %p257 = por %p255, %p256
      %p258 = scmp.ne.s32.totalorder %s246, %s247
      %p259 = scmp.eq.s32.totalorder %s36, 3
      %p260 = por %p258, %p259
      %p262 = scmp.ne.s32.totalorder %s247, %s261
      %p263 = scmp.eq.s32.totalorder %s36, 0
      %p264 = por %p262, %p263
      %s266 = sadd.s32 %s265, 1
      %p269 = scmp.eq.s32.totalorder %s30, 3
      %p270 = scmp.ne.s32.totalorder %s265, %s267
      %p271 = scmp.eq.s32.totalorder %s30, 0
      %p272 = por %p270, %p271
      %p273 = scmp.ne.s32.totalorder %s265, %s267
      %p274 = scmp.eq.s32.totalorder %s35, 3
      %p275 = por %p273, %p274
      %p276 = scmp.ne.s32.totalorder %s267, %s268
      %p277 = scmp.eq.s32.totalorder %s35, 0
      %p278 = por %p276, %p277
      %p279 = scmp.ne.s32.totalorder %s267, %s268
      %p280 = scmp.eq.s32.totalorder %s36, 3
      %p281 = por %p279, %p280
      %p283 = scmp.ne.s32.totalorder %s268, %s282
      %p284 = scmp.eq.s32.totalorder %s36, 0
      %p285 = por %p283, %p284
      %s287 = sadd.s32 %s286, 1
      %p290 = scmp.eq.s32.totalorder %s30, 3
      %p291 = scmp.ne.s32.totalorder %s286, %s288
      %p292 = scmp.eq.s32.totalorder %s30, 0
      %p293 = por %p291, %p292
      %p294 = scmp.ne.s32.totalorder %s286, %s288
      %p295 = scmp.eq.s32.totalorder %s35, 3
      %p296 = por %p294, %p295
      %p297 = scmp.ne.s32.totalorder %s288, %s289
      %p298 = scmp.eq.s32.totalorder %s35, 0
      %p299 = por %p297, %p298
      %p300 = scmp.ne.s32.totalorder %s288, %s289
      %p301 = scmp.eq.s32.totalorder %s36, 3
      %p302 = por %p300, %p301
      %p304 = scmp.ne.s32.totalorder %s289, %s303
      %p305 = scmp.eq.s32.totalorder %s36, 0
      %p306 = por %p304, %p305
      %s308 = sadd.s32 %s307, 1
      %p311 = scmp.eq.s32.totalorder %s30, 3
      %p312 = scmp.ne.s32.totalorder %s307, %s309
      %p313 = scmp.eq.s32.totalorder %s30, 0
      %p314 = por %p312, %p313
      %p315 = scmp.ne.s32.totalorder %s307, %s309
      %p316 = scmp.eq.s32.totalorder %s35, 3
      %p317 = por %p315, %p316
      %p318 = scmp.ne.s32.totalorder %s309, %s310
      %p319 = scmp.eq.s32.totalorder %s35, 0
      %p320 = por %p318, %p319
      %p321 = scmp.ne.s32.totalorder %s309, %s310
      %p322 = scmp.eq.s32.totalorder %s36, 3
      %p323 = por %p321, %p322
      %p325 = scmp.ne.s32.totalorder %s310, %s324
      %p326 = scmp.eq.s32.totalorder %s36, 0
      %p327 = por %p325, %p326
      %s329 = sadd.s32 %s328, 1
      %p332 = scmp.eq.s32.totalorder %s30, 3
      %p333 = scmp.ne.s32.totalorder %s328, %s330
      %p334 = scmp.eq.s32.totalorder %s30, 0
      %p335 = por %p333, %p334
      %p336 = scmp.ne.s32.totalorder %s328, %s330
      %p337 = scmp.eq.s32.totalorder %s35, 3
      %p338 = por %p336, %p337
      %p339 = scmp.ne.s32.totalorder %s330, %s331
      %p340 = scmp.eq.s32.totalorder %s35, 0
      %p341 = por %p339, %p340
      %p342 = scmp.ne.s32.totalorder %s330, %s331
      %p343 = scmp.eq.s32.totalorder %s36, 3
      %p344 = por %p342, %p343
      %p346 = scmp.ne.s32.totalorder %s331, %s345
      %p347 = scmp.eq.s32.totalorder %s36, 0
      %p348 = por %p346, %p347
      %s350 = sadd.s32 %s349, 1
      %p353 = scmp.eq.s32.totalorder %s30, 3
      %p354 = scmp.ne.s32.totalorder %s349, %s351
      %p355 = scmp.eq.s32.totalorder %s30, 0
      %p356 = por %p354, %p355
      %p357 = scmp.ne.s32.totalorder %s349, %s351
      %p358 = scmp.eq.s32.totalorder %s35, 3
      %p359 = por %p357, %p358
      %p360 = scmp.ne.s32.totalorder %s351, %s352
      %p361 = scmp.eq.s32.totalorder %s35, 0
      %p362 = por %p360, %p361
      %p363 = scmp.ne.s32.totalorder %s351, %s352
      %p364 = scmp.eq.s32.totalorder %s36, 3
      %p365 = por %p363, %p364
      %p367 = scmp.ne.s32.totalorder %s352, %s366
      %p368 = scmp.eq.s32.totalorder %s36, 0
      %p369 = por %p367, %p368
      %s370 = ssub.s32 %s37, %s49
      %s371 = ssub.s32 %s38, %s45
      %s372 = sor.u32 %s370, %s371
      %p373 = scmp.eq.s32.totalorder %s372, 0
      %s375 = sadd.s32 %s374, 1
      %s376 = scalar_select %p373, %s374, %s375
      %p379 = pneg %p373
      %p380 = scmp.eq.s32.totalorder %s30, 3
      %p381 = por %p379, %p380
      %p382 = scmp.ne.s32.totalorder %s374, %s377
      %p383 = scmp.eq.s32.totalorder %s30, 0
      %p384 = por %p382, %p383
      %p385 = scmp.ne.s32.totalorder %s374, %s377
      %p386 = scmp.eq.s32.totalorder %s35, 3
      %p387 = por %p385, %p386
      %p388 = scmp.ne.s32.totalorder %s377, %s378
      %p389 = scmp.eq.s32.totalorder %s35, 0
      %p390 = por %p388, %p389
      %p391 = scmp.ne.s32.totalorder %s377, %s378
      %p392 = scmp.eq.s32.totalorder %s36, 3
      %p393 = por %p391, %p392
      %p395 = scmp.ne.s32.totalorder %s378, %s394
      %p396 = scmp.eq.s32.totalorder %s36, 0
      %p397 = por %p395, %p396
      %p398 = scmp.le.s32.totalorder 1, %s30
      %p399 = scmp.lt.s32.totalorder %s30, 5
      %p400 = pnand %p398, %p399
      %p401 = pneg %p400
      // Predicated region
      $region9: #{tpu_custom_call.1} parent=5 // pred_check
        _
      $region10: #{tpu_custom_call.1} parent=5 // pred_check_branch
        %403 = sbr.rel (%p400) target = $region12
      $region11: #{tpu_custom_call.1} parent=5 // pred_region
        %s404 = ssub.s32 %s30, 1
        // Predicated region
        $region13: #{tpu_custom_call.1} parent=11 // pred_check
          %p405 = pneg %p89
        $region14: #{tpu_custom_call.1} parent=11 // pred_check_branch
          %407 = sbr.rel (%p405) target = $region16
        $region15: #{tpu_custom_call.1} parent=11 // pred_region
          _
        $region16: #{tpu_custom_call.1} parent=11 // pred_fallthru
          _
        // Predicated region
        $region17: #{tpu_custom_call.1} parent=11 // pred_check
          %p408 = pneg %p110
        $region18: #{tpu_custom_call.1} parent=11 // pred_check_branch
          %410 = sbr.rel (%p408) target = $region20
        $region19: #{tpu_custom_call.1} parent=11 // pred_region
          _
        $region20: #{tpu_custom_call.1} parent=11 // pred_fallthru
          _
        // Predicated region
        $region21: #{tpu_custom_call.1} parent=11 // pred_check
          %p411 = pneg %p131
        $region22: #{tpu_custom_call.1} parent=11 // pred_check_branch
          %413 = sbr.rel (%p411) target = $region24
        $region23: #{tpu_custom_call.1} parent=11 // pred_region
          %s415 = ssub.s32 1024, 1024
          %416 = vsyncadd [#allocation8], %s415
          %s417 = sshll.u32 [#allocation7], 4
          %s418 = int_to_ptr.vmem [resolvable:$true] %s417
          %423 = dma.hbm_to_vmem [thread:$0]  %s3, 1024, %s418, [#allocation8], 64, 64, 4
        $region24: #{tpu_custom_call.1} parent=11 // pred_fallthru
          _
        // Predicated region
        $region25: #{tpu_custom_call.1} parent=11 // pred_check
          %p424 = pneg %p152
        $region26: #{tpu_custom_call.1} parent=11 // pred_check_branch
          %426 = sbr.rel (%p424) target = $region28
        $region27: #{tpu_custom_call.1} parent=11 // pred_region
          _
        $region28: #{tpu_custom_call.1} parent=11 // pred_fallthru
          _
        // Predicated region
        $region29: #{tpu_custom_call.1} parent=11 // pred_check
          %p427 = pneg %p173
        $region30: #{tpu_custom_call.1} parent=11 // pred_check_branch
          %429 = sbr.rel (%p427) target = $region32
        $region31: #{tpu_custom_call.1} parent=11 // pred_region
          %s431 = ssub.s32 2048, 2048
          %432 = vsyncadd [#allocation8], %s431
          %s433 = sshll.u32 [#allocation9], 4
          %s434 = int_to_ptr.vmem [resolvable:$true] %s433
          %439 = dma.hbm_to_vmem [thread:$0]  %s5, 2048, %s434, [#allocation8], 128, 128, 8
        $region32: #{tpu_custom_call.1} parent=11 // pred_fallthru
          _
        // Predicated region
        $region33: #{tpu_custom_call.1} parent=11 // pred_check
          %p440 = pneg %p194
        $region34: #{tpu_custom_call.1} parent=11 // pred_check_branch
          %442 = sbr.rel (%p440) target = $region36
        $region35: #{tpu_custom_call.1} parent=11 // pred_region
          _
        $region36: #{tpu_custom_call.1} parent=11 // pred_fallthru
          _
        // Predicated region
        $region37: #{tpu_custom_call.1} parent=11 // pred_check
          %p443 = pneg %p215
        $region38: #{tpu_custom_call.1} parent=11 // pred_check_branch
          %445 = sbr.rel (%p443) target = $region40
        $region39: #{tpu_custom_call.1} parent=11 // pred_region
          %s447 = ssub.s32 1024, 1024
          %448 = vsyncadd [#allocation11], %s447
          %s449 = sshll.u32 [#allocation10], 4
          %s450 = int_to_ptr.vmem [resolvable:$true] %s449
          %455 = dma.hbm_to_vmem [thread:$0]  %s7, 1024, %s450, [#allocation11], 64, 64, 4
        $region40: #{tpu_custom_call.1} parent=11 // pred_fallthru
          _
        // Predicated region
        $region41: #{tpu_custom_call.1} parent=11 // pred_check
          %p456 = pneg %p236
        $region42: #{tpu_custom_call.1} parent=11 // pred_check_branch
          %458 = sbr.rel (%p456) target = $region44
        $region43: #{tpu_custom_call.1} parent=11 // pred_region
          _
        $region44: #{tpu_custom_call.1} parent=11 // pred_fallthru
          _
        // Predicated region
        $region45: #{tpu_custom_call.1} parent=11 // pred_check
          %p459 = pneg %p257
        $region46: #{tpu_custom_call.1} parent=11 // pred_check_branch
          %461 = sbr.rel (%p459) target = $region48
        $region47: #{tpu_custom_call.1} parent=11 // pred_region
          _
        $region48: #{tpu_custom_call.1} parent=11 // pred_fallthru
          _
        // Predicated region
        $region49: #{tpu_custom_call.1} parent=11 // pred_check
          %p462 = pneg %p278
        $region50: #{tpu_custom_call.1} parent=11 // pred_check_branch
          %464 = sbr.rel (%p462) target = $region52
        $region51: #{tpu_custom_call.1} parent=11 // pred_region
          _
        $region52: #{tpu_custom_call.1} parent=11 // pred_fallthru
          _
        // Predicated region
        $region53: #{tpu_custom_call.1} parent=11 // pred_check
          %p465 = pneg %p299
        $region54: #{tpu_custom_call.1} parent=11 // pred_check_branch
          %467 = sbr.rel (%p465) target = $region56
        $region55: #{tpu_custom_call.1} parent=11 // pred_region
          %s469 = ssub.s32 2048, 2048
          %470 = vsyncadd [#allocation11], %s469
          %s471 = sshll.u32 [#allocation12], 4
          %s472 = int_to_ptr.vmem [resolvable:$true] %s471
          %477 = dma.hbm_to_vmem [thread:$0]  %s11, 2048, %s472, [#allocation11], 128, 128, 8
        $region56: #{tpu_custom_call.1} parent=11 // pred_fallthru
          _
        // Predicated region
        $region57: #{tpu_custom_call.1} parent=11 // pred_check
          %p478 = pneg %p320
        $region58: #{tpu_custom_call.1} parent=11 // pred_check_branch
          %480 = sbr.rel (%p478) target = $region60
        $region59: #{tpu_custom_call.1} parent=11 // pred_region
          _
        $region60: #{tpu_custom_call.1} parent=11 // pred_fallthru
          _
        // Predicated region
        $region61: #{tpu_custom_call.1} parent=11 // pred_check
          %p481 = pneg %p341
        $region62: #{tpu_custom_call.1} parent=11 // pred_check_branch
          %483 = sbr.rel (%p481) target = $region64
        $region63: #{tpu_custom_call.1} parent=11 // pred_region
          %s485 = ssub.s32 2048, 2048
          %486 = vsyncadd [#allocation14], %s485
          %s487 = sshll.u32 [#allocation13], 4
          %s488 = int_to_ptr.vmem [resolvable:$true] %s487
          %493 = dma.hbm_to_vmem [thread:$0]  %s13, 2048, %s488, [#allocation14], 64, 64, 4
        $region64: #{tpu_custom_call.1} parent=11 // pred_fallthru
          _
        // Predicated region
        $region65: #{tpu_custom_call.1} parent=11 // pred_check
          %p494 = pneg %p362
        $region66: #{tpu_custom_call.1} parent=11 // pred_check_branch
          %496 = sbr.rel (%p494) target = $region68
        $region67: #{tpu_custom_call.1} parent=11 // pred_region
          _
        $region68: #{tpu_custom_call.1} parent=11 // pred_fallthru
          _
      $region12: #{tpu_custom_call.1} parent=5 // pred_fallthru
        _
      %p497 = scmp.lt.s32.totalorder %s30, 4
      // Predicated region
      $region69: #{tpu_custom_call.1} parent=5 // pred_check
        %p498 = pneg %p497
      $region70: #{tpu_custom_call.1} parent=5 // pred_check_branch
        %500 = sbr.rel (%p498) target = $region72
      $region71: #{tpu_custom_call.1} parent=5 // pred_region
        // Predicated region
        $region73: #{tpu_custom_call.1} parent=71 // pred_check
          %p501 = pneg %p62
        $region74: #{tpu_custom_call.1} parent=71 // pred_check_branch
          %503 = sbr.rel (%p501) target = $region76
        $region75: #{tpu_custom_call.1} parent=71 // pred_region
          %s504 = sand.u32 %s52, 1
          %s505 = scalar_lea.sflag [#allocation5], %s504
          %s506 = sand.u32 %s52, 1
          %s507 = smul.addr %s506, 128
          %s508 = scalar_lea.vmem [#allocation4], %s507
          %s510 = ssub.s32 2048, 2048
          %511 = vsyncadd %s505, %s510
          %s512 = smul.addr %s37, 16
          %s513 = smul.addr %s512, 128
          %s514 = scalar_lea.hbm %s0, %s513
          %s515 = sshll.u32 %s508, 4
          %s516 = int_to_ptr.vmem [resolvable:$true] %s515
          %521 = dma.hbm_to_vmem [thread:$0]  %s514, 2048, %s516, %s505, 128, 128, 8
        $region76: #{tpu_custom_call.1} parent=71 // pred_fallthru
          _
      $region72: #{tpu_custom_call.1} parent=5 // pred_fallthru
        _
      %p522 = scmp.le.s32.totalorder 1, %s30
      %p523 = scmp.lt.s32.totalorder %s30, 5
      %p524 = pnand %p522, %p523
      %p525 = pneg %p524
      // Predicated region
      $region77: #{tpu_custom_call.1} parent=5 // pred_check
        _
      $region78: #{tpu_custom_call.1} parent=5 // pred_check_branch
        %527 = sbr.rel (%p524) target = $region80
      $region79: #{tpu_custom_call.1} parent=5 // pred_region
        %s528 = ssub.s32 %s30, 1
        %s529 = sand.u32 %s55, 1
        %s530 = scalar_lea.sflag [#allocation5], %s529
        %s531 = sand.u32 %s55, 1
        %s532 = smul.addr %s531, 128
        %s533 = scalar_lea.vmem [#allocation4], %s532
        // Predicated region
        $region81: #{tpu_custom_call.1} parent=79 // pred_check
          %p534 = pneg %p68
        $region82: #{tpu_custom_call.1} parent=79 // pred_check_branch
          %536 = sbr.rel (%p534) target = $region84
        $region83: #{tpu_custom_call.1} parent=79 // pred_region
          %537 = dma.done %s530, 2048
        $region84: #{tpu_custom_call.1} parent=79 // pred_fallthru
          _
        // Predicated region
        $region85: #{tpu_custom_call.1} parent=79 // pred_check
          %p538 = pneg %p131
        $region86: #{tpu_custom_call.1} parent=79 // pred_check_branch
          %540 = sbr.rel (%p538) target = $region88
        $region87: #{tpu_custom_call.1} parent=79 // pred_region
          %541 = dma.done [#allocation8], 1024
        $region88: #{tpu_custom_call.1} parent=79 // pred_fallthru
          _
        // Predicated region
        $region89: #{tpu_custom_call.1} parent=79 // pred_check
          %p542 = pneg %p173
        $region90: #{tpu_custom_call.1} parent=79 // pred_check_branch
          %544 = sbr.rel (%p542) target = $region92
        $region91: #{tpu_custom_call.1} parent=79 // pred_region
          %545 = dma.done [#allocation8], 2048
        $region92: #{tpu_custom_call.1} parent=79 // pred_fallthru
          _
        // Predicated region
        $region93: #{tpu_custom_call.1} parent=79 // pred_check
          %p546 = pneg %p215
        $region94: #{tpu_custom_call.1} parent=79 // pred_check_branch
          %548 = sbr.rel (%p546) target = $region96
        $region95: #{tpu_custom_call.1} parent=79 // pred_region
          %549 = dma.done [#allocation11], 1024
        $region96: #{tpu_custom_call.1} parent=79 // pred_fallthru
          _
        // Predicated region
        $region97: #{tpu_custom_call.1} parent=79 // pred_check
          %p550 = pneg %p299
        $region98: #{tpu_custom_call.1} parent=79 // pred_check_branch
          %552 = sbr.rel (%p550) target = $region100
        $region99: #{tpu_custom_call.1} parent=79 // pred_region
          %553 = dma.done [#allocation11], 2048
        $region100: #{tpu_custom_call.1} parent=79 // pred_fallthru
          _
        // Predicated region
        $region101: #{tpu_custom_call.1} parent=79 // pred_check
          %p554 = pneg %p341
        $region102: #{tpu_custom_call.1} parent=79 // pred_check_branch
          %556 = sbr.rel (%p554) target = $region104
        $region103: #{tpu_custom_call.1} parent=79 // pred_region
          %557 = dma.done [#allocation14], 2048
        $region104: #{tpu_custom_call.1} parent=79 // pred_fallthru
          _
        %s558 = sand.u32 %s55, 1
        %s559 = scalar_lea.sflag [#allocation5], %s558
        %s560 = sand.u32 %s55, 1
        %s561 = smul.addr %s560, 128
        %s562 = scalar_lea.vmem [#allocation4], %s561
        %p563 = pneg %p68
        %p564 = pneg %p65
        %p565 = pneg %p89
        %p566 = pneg %p86
        %p567 = pneg %p110
        %p568 = pneg %p107
        %p569 = pneg %p131
        %p570 = pneg %p128
        %p571 = pneg %p152
        %p572 = pneg %p149
        %p573 = pneg %p173
        %p574 = pneg %p170
        %p575 = pneg %p194
        %p576 = pneg %p191
        %p577 = pneg %p215
        %p578 = pneg %p212
        %p579 = pneg %p236
        %p580 = pneg %p233
        %p581 = pneg %p257
        %p582 = pneg %p254
        %p583 = pneg %p278
        %p584 = pneg %p275
        %p585 = pneg %p299
        %p586 = pneg %p296
        %p587 = pneg %p320
        %p588 = pneg %p317
        %p589 = pneg %p341
        %p590 = pneg %p338
        %p591 = pneg %p362
        %p592 = pneg %p359
        %p593 = pneg %p390
        %p594 = pneg %p387
        %s595 = sand.u32 %s377, 1
        %s596 = scalar_lea.sflag [#allocation6], %s595
        %s597 = sand.u32 %s377, 1
        %s598 = smul.addr %s597, 64
        %s599 = scalar_lea.vmem [#allocation15], %s598
        %s600 = smul.u32 8, %s40
        %p602 = scmp.eq.s32.totalorder %s40, 0
        // Predicated region
        $region105: #{tpu_custom_call.1} parent=79 // pred_check
          %p603 = pneg %p602
        $region106: #{tpu_custom_call.1} parent=79 // pred_check_branch
          %605 = sbr.rel (%p603) target = $region108
        $region107: #{tpu_custom_call.1} parent=79 // pred_region
          %v606 = vld [vmem:[%s533] sm:$0xff]
          %v607 = vld [vmem:[%s533 + $0x8] sm:$0xff]
          %v608 = vld [vmem:[%s533 + $0x10] sm:$0xff]
          %v609 = vld [vmem:[%s533 + $0x18] sm:$0xff]
          %v610 = vld [vmem:[%s533 + $0x20] sm:$0xff]
          %v611 = vld [vmem:[%s533 + $0x28] sm:$0xff]
          %v612 = vld [vmem:[%s533 + $0x30] sm:$0xff]
          %v613 = vld [vmem:[%s533 + $0x38] sm:$0xff]
          %v614 = vld [vmem:[%s533 + $0x40] sm:$0xff]
          %v615 = vld [vmem:[%s533 + $0x48] sm:$0xff]
          %v616 = vld [vmem:[%s533 + $0x50] sm:$0xff]
          %v617 = vld [vmem:[%s533 + $0x58] sm:$0xff]
          %v618 = vld [vmem:[%s533 + $0x60] sm:$0xff]
          %v619 = vld [vmem:[%s533 + $0x68] sm:$0xff]
          %v620 = vld [vmem:[%s533 + $0x70] sm:$0xff]
          %v621 = vld [vmem:[%s533 + $0x78] sm:$0xff]
          %v622 = vld [vmem:[%s1] sm:$0x1]
          %v623 = vld [vmem:[%s2] sm:$0x1]
          %624 = vadd.xlane.f32.xlu0 %v606
          %v625 = vpop.xlane.xlu0 %624
          %626 = vadd.xlane.f32.xlu0 %v607
          %v627 = vpop.xlane.xlu0 %626
          %628 = vadd.xlane.f32.xlu0 %v608
          %v629 = vpop.xlane.xlu0 %628
          %630 = vadd.xlane.f32.xlu0 %v609
          %v631 = vpop.xlane.xlu0 %630
          %632 = vadd.xlane.f32.xlu0 %v610
          %v633 = vpop.xlane.xlu0 %632
          %634 = vadd.xlane.f32.xlu0 %v611
          %v635 = vpop.xlane.xlu0 %634
          %636 = vadd.xlane.f32.xlu0 %v612
          %v637 = vpop.xlane.xlu0 %636
          %638 = vadd.xlane.f32.xlu0 %v613
          %v639 = vpop.xlane.xlu0 %638
          %640 = vadd.xlane.f32.xlu0 %v614
          %v641 = vpop.xlane.xlu0 %640
          %642 = vadd.xlane.f32.xlu0 %v615
          %v643 = vpop.xlane.xlu0 %642
          %644 = vadd.xlane.f32.xlu0 %v616
          %v645 = vpop.xlane.xlu0 %644
          %646 = vadd.xlane.f32.xlu0 %v617
          %v647 = vpop.xlane.xlu0 %646
          %648 = vadd.xlane.f32.xlu0 %v618
          %v649 = vpop.xlane.xlu0 %648
          %650 = vadd.xlane.f32.xlu0 %v619
          %v651 = vpop.xlane.xlu0 %650
          %652 = vadd.xlane.f32.xlu0 %v620
          %v653 = vpop.xlane.xlu0 %652
          %654 = vadd.xlane.f32.xlu0 %v621
          %v655 = vpop.xlane.xlu0 %654
          %v656 = vrcp.pop 128.0
          %v657 = vmul.f32 %v625, %v656
          %v658 = vmul.f32 %v627, %v656
          %v659 = vmul.f32 %v629, %v656
          %v660 = vmul.f32 %v631, %v656
          %v661 = vmul.f32 %v633, %v656
          %v662 = vmul.f32 %v635, %v656
          %v663 = vmul.f32 %v637, %v656
          %v664 = vmul.f32 %v639, %v656
          %v665 = vmul.f32 %v641, %v656
          %v666 = vmul.f32 %v643, %v656
          %v667 = vmul.f32 %v645, %v656
          %v668 = vmul.f32 %v647, %v656
          %v669 = vmul.f32 %v649, %v656
          %v670 = vmul.f32 %v651, %v656
          %v671 = vmul.f32 %v653, %v656
          %v672 = vmul.f32 %v655, %v656
          %v673 = vsub.f32 %v606, %v657
          %v674 = vsub.f32 %v607, %v658
          %v675 = vsub.f32 %v608, %v659
          %v676 = vsub.f32 %v609, %v660
          %v677 = vsub.f32 %v610, %v661
          %v678 = vsub.f32 %v611, %v662
          %v679 = vsub.f32 %v612, %v663
          %v680 = vsub.f32 %v613, %v664
          %v681 = vsub.f32 %v614, %v665
          %v682 = vsub.f32 %v615, %v666
          %v683 = vsub.f32 %v616, %v667
          %v684 = vsub.f32 %v617, %v668
          %v685 = vsub.f32 %v618, %v669
          %v686 = vsub.f32 %v619, %v670
          %v687 = vsub.f32 %v620, %v671
          %v688 = vsub.f32 %v621, %v672
          %v689 = vmul.f32 %v673, %v673
          %v690 = vmul.f32 %v674, %v674
          %v691 = vmul.f32 %v675, %v675
          %v692 = vmul.f32 %v676, %v676
          %v693 = vmul.f32 %v677, %v677
          %v694 = vmul.f32 %v678, %v678
          %v695 = vmul.f32 %v679, %v679
          %v696 = vmul.f32 %v680, %v680
          %v697 = vmul.f32 %v681, %v681
          %v698 = vmul.f32 %v682, %v682
          %v699 = vmul.f32 %v683, %v683
          %v700 = vmul.f32 %v684, %v684
          %v701 = vmul.f32 %v685, %v685
          %v702 = vmul.f32 %v686, %v686
          %v703 = vmul.f32 %v687, %v687
          %v704 = vmul.f32 %v688, %v688
          %705 = vadd.xlane.f32.xlu0 %v689
          %v706 = vpop.xlane.xlu0 %705
          %707 = vadd.xlane.f32.xlu0 %v690
          %v708 = vpop.xlane.xlu0 %707
          %709 = vadd.xlane.f32.xlu0 %v691
          %v710 = vpop.xlane.xlu0 %709
          %711 = vadd.xlane.f32.xlu0 %v692
          %v712 = vpop.xlane.xlu0 %711
          %713 = vadd.xlane.f32.xlu0 %v693
          %v714 = vpop.xlane.xlu0 %713
          %715 = vadd.xlane.f32.xlu0 %v694
          %v716 = vpop.xlane.xlu0 %715
          %717 = vadd.xlane.f32.xlu0 %v695
          %v718 = vpop.xlane.xlu0 %717
          %719 = vadd.xlane.f32.xlu0 %v696
          %v720 = vpop.xlane.xlu0 %719
          %721 = vadd.xlane.f32.xlu0 %v697
          %v722 = vpop.xlane.xlu0 %721
          %723 = vadd.xlane.f32.xlu0 %v698
          %v724 = vpop.xlane.xlu0 %723
          %725 = vadd.xlane.f32.xlu0 %v699
          %v726 = vpop.xlane.xlu0 %725
          %727 = vadd.xlane.f32.xlu0 %v700
          %v728 = vpop.xlane.xlu0 %727
          %729 = vadd.xlane.f32.xlu0 %v701
          %v730 = vpop.xlane.xlu0 %729
          %731 = vadd.xlane.f32.xlu0 %v702
          %v732 = vpop.xlane.xlu0 %731
          %733 = vadd.xlane.f32.xlu0 %v703
          %v734 = vpop.xlane.xlu0 %733
          %735 = vadd.xlane.f32.xlu0 %v704
          %v736 = vpop.xlane.xlu0 %735
          %v737 = vmul.f32 %v706, %v656
          %v738 = vmul.f32 %v708, %v656
          %v739 = vmul.f32 %v710, %v656
          %v740 = vmul.f32 %v712, %v656
          %v741 = vmul.f32 %v714, %v656
          %v742 = vmul.f32 %v716, %v656
          %v743 = vmul.f32 %v718, %v656
          %v744 = vmul.f32 %v720, %v656
          %v745 = vmul.f32 %v722, %v656
          %v746 = vmul.f32 %v724, %v656
          %v747 = vmul.f32 %v726, %v656
          %v748 = vmul.f32 %v728, %v656
          %v749 = vmul.f32 %v730, %v656
          %v750 = vmul.f32 %v732, %v656
          %v751 = vmul.f32 %v734, %v656
          %v752 = vmul.f32 %v736, %v656
          %v753 = vadd.f32 %v737, 1e-06
          %v754 = vadd.f32 %v738, 1e-06
          %v755 = vadd.f32 %v739, 1e-06
          %v756 = vadd.f32 %v740, 1e-06
          %v757 = vadd.f32 %v741, 1e-06
          %v758 = vadd.f32 %v742, 1e-06
          %v759 = vadd.f32 %v743, 1e-06
          %v760 = vadd.f32 %v744, 1e-06
          %v761 = vadd.f32 %v745, 1e-06
          %v762 = vadd.f32 %v746, 1e-06
          %v763 = vadd.f32 %v747, 1e-06
          %v764 = vadd.f32 %v748, 1e-06
          %v765 = vadd.f32 %v749, 1e-06
          %v766 = vadd.f32 %v750, 1e-06
          %v767 = vadd.f32 %v751, 1e-06
          %v768 = vadd.f32 %v752, 1e-06
          %v769 = vrsqrt.pop %v753
          %v770 = vrsqrt.pop %v754
          %v771 = vrsqrt.pop %v755
          %v772 = vrsqrt.pop %v756
          %v773 = vrsqrt.pop %v757
          %v774 = vrsqrt.pop %v758
          %v775 = vrsqrt.pop %v759
          %v776 = vrsqrt.pop %v760
          %v777 = vrsqrt.pop %v761
          %v778 = vrsqrt.pop %v762
          %v779 = vrsqrt.pop %v763
          %v780 = vrsqrt.pop %v764
          %v781 = vrsqrt.pop %v765
          %v782 = vrsqrt.pop %v766
          %v783 = vrsqrt.pop %v767
          %v784 = vrsqrt.pop %v768
          %v785 = vmul.f32 %v673, %v769
          %v786 = vmul.f32 %v674, %v770
          %v787 = vmul.f32 %v675, %v771
          %v788 = vmul.f32 %v676, %v772
          %v789 = vmul.f32 %v677, %v773
          %v790 = vmul.f32 %v678, %v774
          %v791 = vmul.f32 %v679, %v775
          %v792 = vmul.f32 %v680, %v776
          %v793 = vmul.f32 %v681, %v777
          %v794 = vmul.f32 %v682, %v778
          %v795 = vmul.f32 %v683, %v779
          %v796 = vmul.f32 %v684, %v780
          %v797 = vmul.f32 %v685, %v781
          %v798 = vmul.f32 %v686, %v782
          %v799 = vmul.f32 %v687, %v783
          %v800 = vmul.f32 %v688, %v784
          %v802 = vlaneseq
          %v803 = vshrl.u32 %v802, 7
          %v804 = vsub.s32 0, %v803
          %v805 = vrot.slane %v622, %v804
          %v807 = vmul.f32 %v785, %v805
          %v808 = vmul.f32 %v786, %v805
          %v809 = vmul.f32 %v787, %v805
          %v810 = vmul.f32 %v788, %v805
          %v811 = vmul.f32 %v789, %v805
          %v812 = vmul.f32 %v790, %v805
          %v813 = vmul.f32 %v791, %v805
          %v814 = vmul.f32 %v792, %v805
          %v815 = vmul.f32 %v793, %v805
          %v816 = vmul.f32 %v794, %v805
          %v817 = vmul.f32 %v795, %v805
          %v818 = vmul.f32 %v796, %v805
          %v819 = vmul.f32 %v797, %v805
          %v820 = vmul.f32 %v798, %v805
          %v821 = vmul.f32 %v799, %v805
          %v822 = vmul.f32 %v800, %v805
          %v824 = vlaneseq
          %v825 = vshrl.u32 %v824, 7
          %v826 = vsub.s32 0, %v825
          %v827 = vrot.slane %v623, %v826
          %v829 = vadd.f32 %v807, %v827
          %v830 = vadd.f32 %v808, %v827
          %v831 = vadd.f32 %v809, %v827
          %v832 = vadd.f32 %v810, %v827
          %v833 = vadd.f32 %v811, %v827
          %v834 = vadd.f32 %v812, %v827
          %v835 = vadd.f32 %v813, %v827
          %v836 = vadd.f32 %v814, %v827
          %v837 = vadd.f32 %v815, %v827
          %v838 = vadd.f32 %v816, %v827
          %v839 = vadd.f32 %v817, %v827
          %v840 = vadd.f32 %v818, %v827
          %v841 = vadd.f32 %v819, %v827
          %v842 = vadd.f32 %v820, %v827
          %v843 = vadd.f32 %v821, %v827
          %v844 = vadd.f32 %v822, %v827
          %v845 = vpack.c.bf16 %v830, %v829
          %v846 = vpack.c.bf16 %v832, %v831
          %v847 = vpack.c.bf16 %v834, %v833
          %v848 = vpack.c.bf16 %v836, %v835
          %v849 = vpack.c.bf16 %v838, %v837
          %v850 = vpack.c.bf16 %v840, %v839
          %v851 = vpack.c.bf16 %v842, %v841
          %v852 = vpack.c.bf16 %v844, %v843
          %853 = vst [vmem:[#allocation2] sm:$0xff] %v845
          %854 = vst [vmem:[#allocation2 + $0x8] sm:$0xff] %v846
          %855 = vst [vmem:[#allocation2 + $0x10] sm:$0xff] %v847
          %856 = vst [vmem:[#allocation2 + $0x18] sm:$0xff] %v848
          %857 = vst [vmem:[#allocation2 + $0x20] sm:$0xff] %v849
          %858 = vst [vmem:[#allocation2 + $0x28] sm:$0xff] %v850
          %859 = vst [vmem:[#allocation2 + $0x30] sm:$0xff] %v851
          %860 = vst [vmem:[#allocation2 + $0x38] sm:$0xff] %v852
          %v861 = vld [vmem:[#allocation9] sm:$0xff]
          %v862 = vld [vmem:[#allocation9 + $0x8] sm:$0xff]
          %v863 = vld [vmem:[#allocation9 + $0x10] sm:$0xff]
          %v864 = vld [vmem:[#allocation9 + $0x18] sm:$0xff]
          %v865 = vld [vmem:[#allocation9 + $0x20] sm:$0xff]
          %v866 = vld [vmem:[#allocation9 + $0x28] sm:$0xff]
          %v867 = vld [vmem:[#allocation9 + $0x30] sm:$0xff]
          %v868 = vld [vmem:[#allocation9 + $0x38] sm:$0xff]
          %v869 = vld [vmem:[#allocation9 + $0x40] sm:$0xff]
          %v870 = vld [vmem:[#allocation9 + $0x48] sm:$0xff]
          %v871 = vld [vmem:[#allocation9 + $0x50] sm:$0xff]
          %v872 = vld [vmem:[#allocation9 + $0x58] sm:$0xff]
          %v873 = vld [vmem:[#allocation9 + $0x60] sm:$0xff]
          %v874 = vld [vmem:[#allocation9 + $0x68] sm:$0xff]
          %v875 = vld [vmem:[#allocation9 + $0x70] sm:$0xff]
          %v876 = vld [vmem:[#allocation9 + $0x78] sm:$0xff]
          %v877 = vld [vmem:[%s6] sm:$0x3]
          %v879 = vlaneseq
          %v880 = vshrl.u32 %v879, 7
          %v881 = vsub.s32 0, %v880
          %v882 = vrot.slane %v877, %v881
          %v883 = vlaneseq
          %v884 = vshrl.u32 %v883, 7
          %v885 = vsub.s32 1, %v884
          %v886 = vrot.slane %v877, %v885
          %v905 = vunpack.c.l.b16 %v861
          %v906 = vunpack.c.h.b16 %v861
          %v907 = vunpack.c.l.b16 %v862
          %v908 = vunpack.c.h.b16 %v862
          %v909 = vunpack.c.l.b16 %v863
          %v910 = vunpack.c.h.b16 %v863
          %v911 = vunpack.c.l.b16 %v864
          %v912 = vunpack.c.h.b16 %v864
          %v913 = vunpack.c.l.b16 %v865
          %v914 = vunpack.c.h.b16 %v865
          %v915 = vunpack.c.l.b16 %v866
          %v916 = vunpack.c.h.b16 %v866
          %v917 = vunpack.c.l.b16 %v867
          %v918 = vunpack.c.h.b16 %v867
          %v919 = vunpack.c.l.b16 %v868
          %v920 = vunpack.c.h.b16 %v868
          %v921 = vunpack.c.l.b16 %v869
          %v922 = vunpack.c.h.b16 %v869
          %v923 = vunpack.c.l.b16 %v870
          %v924 = vunpack.c.h.b16 %v870
          %v925 = vunpack.c.l.b16 %v871
          %v926 = vunpack.c.h.b16 %v871
          %v927 = vunpack.c.l.b16 %v872
          %v928 = vunpack.c.h.b16 %v872
          %v929 = vunpack.c.l.b16 %v873
          %v930 = vunpack.c.h.b16 %v873
          %v931 = vunpack.c.l.b16 %v874
          %v932 = vunpack.c.h.b16 %v874
          %v933 = vunpack.c.l.b16 %v875
          %v934 = vunpack.c.h.b16 %v875
          %v935 = vunpack.c.l.b16 %v876
          %v936 = vunpack.c.h.b16 %v876
          %v937 = vpack.c.b16 %v907, %v905
          %v938 = vpack.c.b16 %v908, %v906
          %v939 = vpack.c.b16 %v911, %v909
          %v940 = vpack.c.b16 %v912, %v910
          %v941 = vpack.c.b16 %v915, %v913
          %v942 = vpack.c.b16 %v916, %v914
          %v943 = vpack.c.b16 %v919, %v917
          %v944 = vpack.c.b16 %v920, %v918
          %v945 = vpack.c.b16 %v923, %v921
          %v946 = vpack.c.b16 %v924, %v922
          %v947 = vpack.c.b16 %v927, %v925
          %v948 = vpack.c.b16 %v928, %v926
          %v949 = vpack.c.b16 %v931, %v929
          %v950 = vpack.c.b16 %v932, %v930
          %v951 = vpack.c.b16 %v935, %v933
          %v952 = vpack.c.b16 %v936, %v934
          %969 = vmatprep.subr.bf16.mxu0 %v938
          %970 = vmatpush1.bf16.msra.mxu0 %v937
          %971 = vmatprep.subr.bf16.mxu0 %v940
          %972 = vmatpush1.bf16.msra.mxu0 %v939
          %973 = vmatprep.subr.bf16.mxu0 %v942
          %974 = vmatpush1.bf16.msra.mxu0 %v941
          %975 = vmatprep.subr.bf16.mxu0 %v944
          %976 = vmatpush1.bf16.msra.mxu0 %v943
          %977 = vmatprep.subr.bf16.mxu0 %v946
          %978 = vmatpush1.bf16.msra.mxu0 %v945
          %979 = vmatprep.subr.bf16.mxu0 %v948
          %980 = vmatpush1.bf16.msra.mxu0 %v947
          %981 = vmatprep.subr.bf16.mxu0 %v950
          %982 = vmatpush1.bf16.msra.mxu0 %v949
          %983 = vmatprep.subr.bf16.mxu0 %v952
          %984 = vmatpush1.bf16.msra.mxu0 %v951
          %985 = vmatprep.subr.bf16.mxu0 0
          %986 = vmatpush1.bf16.msra.mxu0 0
          %987 = vmatprep.subr.bf16.mxu0 0
          %988 = vmatpush1.bf16.msra.mxu0 0
          %989 = vmatprep.subr.bf16.mxu0 0
          %990 = vmatpush1.bf16.msra.mxu0 0
          %991 = vmatprep.subr.bf16.mxu0 0
          %992 = vmatpush1.bf16.msra.mxu0 0
          %993 = vmatprep.subr.bf16.mxu0 0
          %994 = vmatpush1.bf16.msra.mxu0 0
          %995 = vmatprep.subr.bf16.mxu0 0
          %996 = vmatpush1.bf16.msra.mxu0 0
          %997 = vmatprep.subr.bf16.mxu0 0
          %998 = vmatpush1.bf16.msra.mxu0 0
          %999 = vmatprep.subr.bf16.mxu0 0
          %1000 = vmatpush1.bf16.msra.mxu0 0
          %1001 = vmatprep.mubr.bf16.mxu0 0
          %1002 = vmatmul.mubr.bf16.gmra.mrb[0].mxu0 %v845
          %v1003 = vpop.f32.mrb[0].mxu0
          %v1004 = vadd.f32 %v882, %v1003
          %v1005 = vpop.f32.mrb[0].mxu0
          %v1006 = vadd.f32 %v886, %v1005
          %v1007 = vpop.f32.mrb[0].mxu0
          %v1008 = vadd.f32 %v882, %v1007
          %v1009 = vpop.f32.mrb[0].mxu0
          %v1010 = vadd.f32 %v886, %v1009
          %1011 = vmatprep.mubr.bf16.mxu0 0
          %1012 = vmatmul.mubr.bf16.gmra.mrb[0].mxu0 %v846
          %v1013 = vpop.f32.mrb[0].mxu0
          %v1014 = vadd.f32 %v882, %v1013
          %v1015 = vpop.f32.mrb[0].mxu0
          %v1016 = vadd.f32 %v886, %v1015
          %v1017 = vpop.f32.mrb[0].mxu0
          %v1018 = vadd.f32 %v882, %v1017
          %v1019 = vpop.f32.mrb[0].mxu0
          %v1020 = vadd.f32 %v886, %v1019
          %1021 = vmatprep.mubr.bf16.mxu0 0
          %1022 = vmatmul.mubr.bf16.gmra.mrb[0].mxu0 %v847
          %v1023 = vpop.f32.mrb[0].mxu0
          %v1024 = vadd.f32 %v882, %v1023
          %v1025 = vpop.f32.mrb[0].mxu0
          %v1026 = vadd.f32 %v886, %v1025
          %v1027 = vpop.f32.mrb[0].mxu0
          %v1028 = vadd.f32 %v882, %v1027
          %v1029 = vpop.f32.mrb[0].mxu0
          %v1030 = vadd.f32 %v886, %v1029
          %1031 = vmatprep.mubr.bf16.mxu0 0
          %1032 = vmatmul.mubr.bf16.gmra.mrb[0].mxu0 %v848
          %v1033 = vpop.f32.mrb[0].mxu0
          %v1034 = vadd.f32 %v882, %v1033
          %v1035 = vpop.f32.mrb[0].mxu0
          %v1036 = vadd.f32 %v886, %v1035
          %v1037 = vpop.f32.mrb[0].mxu0
          %v1038 = vadd.f32 %v882, %v1037
          %v1039 = vpop.f32.mrb[0].mxu0
          %v1040 = vadd.f32 %v886, %v1039
          %1041 = vmatprep.mubr.bf16.mxu0 0
          %1042 = vmatmul.mubr.bf16.gmra.mrb[0].mxu0 %v849
          %v1043 = vpop.f32.mrb[0].mxu0
          %v1044 = vadd.f32 %v882, %v1043
          %v1045 = vpop.f32.mrb[0].mxu0
          %v1046 = vadd.f32 %v886, %v1045
          %v1047 = vpop.f32.mrb[0].mxu0
          %v1048 = vadd.f32 %v882, %v1047
          %v1049 = vpop.f32.mrb[0].mxu0
          %v1050 = vadd.f32 %v886, %v1049
          %1051 = vmatprep.mubr.bf16.mxu0 0
          %1052 = vmatmul.mubr.bf16.gmra.mrb[0].mxu0 %v850
          %v1053 = vpop.f32.mrb[0].mxu0
          %v1054 = vadd.f32 %v882, %v1053
          %v1055 = vpop.f32.mrb[0].mxu0
          %v1056 = vadd.f32 %v886, %v1055
          %v1057 = vpop.f32.mrb[0].mxu0
          %v1058 = vadd.f32 %v882, %v1057
          %v1059 = vpop.f32.mrb[0].mxu0
          %v1060 = vadd.f32 %v886, %v1059
          %1061 = vmatprep.mubr.bf16.mxu0 0
          %1062 = vmatmul.mubr.bf16.gmra.mrb[0].mxu0 %v851
          %v1063 = vpop.f32.mrb[0].mxu0
          %v1064 = vadd.f32 %v882, %v1063
          %v1065 = vpop.f32.mrb[0].mxu0
          %v1066 = vadd.f32 %v886, %v1065
          %v1067 = vpop.f32.mrb[0].mxu0
          %v1068 = vadd.f32 %v882, %v1067
          %v1069 = vpop.f32.mrb[0].mxu0
          %v1070 = vadd.f32 %v886, %v1069
          %1071 = vmatprep.mubr.bf16.mxu0 0
          %1072 = vmatmul.mubr.bf16.gmra.mrb[0].mxu0 %v852
          %v1073 = vpop.f32.mrb[0].mxu0
          %v1074 = vadd.f32 %v882, %v1073
          %v1075 = vpop.f32.mrb[0].mxu0
          %v1076 = vadd.f32 %v886, %v1075
          %v1077 = vpop.f32.mrb[0].mxu0
          %v1078 = vadd.f32 %v882, %v1077
          %v1079 = vpop.f32.mrb[0].mxu0
          %v1080 = vadd.f32 %v886, %v1079
          %1081 = vdwg.mxu0
          %v1082 = vpack.c.bf16 %v1008, %v1004
          %v1083 = vpack.c.bf16 %v1010, %v1006
          %v1084 = vpack.c.bf16 %v1018, %v1014
          %v1085 = vpack.c.bf16 %v1020, %v1016
          %v1086 = vpack.c.bf16 %v1028, %v1024
          %v1087 = vpack.c.bf16 %v1030, %v1026
          %v1088 = vpack.c.bf16 %v1038, %v1034
          %v1089 = vpack.c.bf16 %v1040, %v1036
          %v1090 = vpack.c.bf16 %v1048, %v1044
          %v1091 = vpack.c.bf16 %v1050, %v1046
          %v1092 = vpack.c.bf16 %v1058, %v1054
          %v1093 = vpack.c.bf16 %v1060, %v1056
          %v1094 = vpack.c.bf16 %v1068, %v1064
          %v1095 = vpack.c.bf16 %v1070, %v1066
          %v1096 = vpack.c.bf16 %v1078, %v1074
          %v1097 = vpack.c.bf16 %v1080, %v1076
          %1098 = vst [vmem:[#allocation3] sm:$0xff] %v1082
          %1099 = vst [vmem:[#allocation3 + $0x8] sm:$0xff] %v1083
          %1100 = vst [vmem:[#allocation3 + $0x10] sm:$0xff] %v1084
          %1101 = vst [vmem:[#allocation3 + $0x18] sm:$0xff] %v1085
          %1102 = vst [vmem:[#allocation3 + $0x20] sm:$0xff] %v1086
          %1103 = vst [vmem:[#allocation3 + $0x28] sm:$0xff] %v1087
          %1104 = vst [vmem:[#allocation3 + $0x30] sm:$0xff] %v1088
          %1105 = vst [vmem:[#allocation3 + $0x38] sm:$0xff] %v1089
          %1106 = vst [vmem:[#allocation3 + $0x40] sm:$0xff] %v1090
          %1107 = vst [vmem:[#allocation3 + $0x48] sm:$0xff] %v1091
          %1108 = vst [vmem:[#allocation3 + $0x50] sm:$0xff] %v1092
          %1109 = vst [vmem:[#allocation3 + $0x58] sm:$0xff] %v1093
          %1110 = vst [vmem:[#allocation3 + $0x60] sm:$0xff] %v1094
          %1111 = vst [vmem:[#allocation3 + $0x68] sm:$0xff] %v1095
          %1112 = vst [vmem:[#allocation3 + $0x70] sm:$0xff] %v1096
          %1113 = vst [vmem:[#allocation3 + $0x78] sm:$0xff] %v1097
        $region108: #{tpu_custom_call.1} parent=79 // pred_fallthru
          _
        %s1114 = smul.u32 %s40, 64
        %s1115 = scalar_lea.vmem %s533, %s1114 [#allocation4]
        %v1116 = vld [vmem:[%s1115] sm:$0xff]
        %v1117 = vld [vmem:[%s1115 + $0x8] sm:$0xff]
        %v1118 = vld [vmem:[%s1115 + $0x10] sm:$0xff]
        %v1119 = vld [vmem:[%s1115 + $0x18] sm:$0xff]
        %v1120 = vld [vmem:[%s1115 + $0x20] sm:$0xff]
        %v1121 = vld [vmem:[%s1115 + $0x28] sm:$0xff]
        %v1122 = vld [vmem:[%s1115 + $0x30] sm:$0xff]
        %v1123 = vld [vmem:[%s1115 + $0x38] sm:$0xff]
        %s1124 = sshra.s32 %s1114, 4
        %s1125 = sand.u32 %s1114, 15
        %s1126 = smul.addr %s1124, 8
        %s1127 = scalar_lea.vmem [#allocation2], %s1126
        %v1128 = vld [vmem:[%s1127] sm:$0xff]
        %v1129 = vld [vmem:[%s1127 + $0x8] sm:$0xff]
        %v1130 = vld [vmem:[%s1127 + $0x10] sm:$0xff]
        %v1131 = vld [vmem:[%s1127 + $0x18] sm:$0xff]
        %v1132 = vld [vmem:[#allocation7] sm:$0xf]
        %v1133 = vld [vmem:[#allocation7 + $0x4] sm:$0xf]
        %v1134 = vld [vmem:[#allocation7 + $0x8] sm:$0xf]
        %v1135 = vld [vmem:[#allocation7 + $0xc] sm:$0xf]
        %v1136 = vld [vmem:[#allocation7 + $0x10] sm:$0xf]
        %v1137 = vld [vmem:[#allocation7 + $0x14] sm:$0xf]
        %v1138 = vld [vmem:[#allocation7 + $0x18] sm:$0xf]
        %v1139 = vld [vmem:[#allocation7 + $0x1c] sm:$0xf]
        %v1140 = vld [vmem:[#allocation7 + $0x20] sm:$0xf]
        %v1141 = vld [vmem:[#allocation7 + $0x24] sm:$0xf]
        %v1142 = vld [vmem:[#allocation7 + $0x28] sm:$0xf]
        %v1143 = vld [vmem:[#allocation7 + $0x2c] sm:$0xf]
        %v1144 = vld [vmem:[#allocation7 + $0x30] sm:$0xf]
        %v1145 = vld [vmem:[#allocation7 + $0x34] sm:$0xf]
        %v1146 = vld [vmem:[#allocation7 + $0x38] sm:$0xf]
        %v1147 = vld [vmem:[#allocation7 + $0x3c] sm:$0xf]
        %v1148 = vld [vmem:[%s4] sm:$0x1]
        %v1150 = vlaneseq
        %v1151 = vshrl.u32 %v1150, 7
        %v1152 = vsub.s32 0, %v1151
        %v1153 = vrot.slane %v1148, %v1152
        %v1171 = vunpack.c.l.b16 %v1132
        %v1172 = vunpack.c.l.b16 %v1133
        %v1173 = vunpack.c.l.b16 %v1134
        %v1174 = vunpack.c.l.b16 %v1135
        %v1175 = vunpack.c.l.b16 %v1136
        %v1176 = vunpack.c.l.b16 %v1137
        %v1177 = vunpack.c.l.b16 %v1138
        %v1178 = vunpack.c.l.b16 %v1139
        %v1179 = vunpack.c.l.b16 %v1140
        %v1180 = vunpack.c.l.b16 %v1141
        %v1181 = vunpack.c.l.b16 %v1142
        %v1182 = vunpack.c.l.b16 %v1143
        %v1183 = vunpack.c.l.b16 %v1144
        %v1184 = vunpack.c.l.b16 %v1145
        %v1185 = vunpack.c.l.b16 %v1146
        %v1186 = vunpack.c.l.b16 %v1147
        %v1187 = vpack.c.b16 %v1172, %v1171
        %v1188 = vpack.c.b16 %v1174, %v1173
        %v1189 = vpack.c.b16 %v1176, %v1175
        %v1190 = vpack.c.b16 %v1178, %v1177
        %v1191 = vpack.c.b16 %v1180, %v1179
        %v1192 = vpack.c.b16 %v1182, %v1181
        %v1193 = vpack.c.b16 %v1184, %v1183
        %v1194 = vpack.c.b16 %v1186, %v1185
        %1203 = vmatprep.subr.bf16.mxu0 0
        %1204 = vmatpush1.bf16.msra.mxu0 %v1187
        %1205 = vmatprep.subr.bf16.mxu0 0
        %1206 = vmatpush1.bf16.msra.mxu0 %v1188
        %1207 = vmatprep.subr.bf16.mxu0 0
        %1208 = vmatpush1.bf16.msra.mxu0 %v1189
        %1209 = vmatprep.subr.bf16.mxu0 0
        %1210 = vmatpush1.bf16.msra.mxu0 %v1190
        %1211 = vmatprep.subr.bf16.mxu0 0
        %1212 = vmatpush1.bf16.msra.mxu0 %v1191
        %1213 = vmatprep.subr.bf16.mxu0 0
        %1214 = vmatpush1.bf16.msra.mxu0 %v1192
        %1215 = vmatprep.subr.bf16.mxu0 0
        %1216 = vmatpush1.bf16.msra.mxu0 %v1193
        %1217 = vmatprep.subr.bf16.mxu0 0
        %1218 = vmatpush1.bf16.msra.mxu0 %v1194
        %1219 = vmatprep.subr.bf16.mxu0 0
        %1220 = vmatpush1.bf16.msra.mxu0 0
        %1221 = vmatprep.subr.bf16.mxu0 0
        %1222 = vmatpush1.bf16.msra.mxu0 0
        %1223 = vmatprep.subr.bf16.mxu0 0
        %1224 = vmatpush1.bf16.msra.mxu0 0
        %1225 = vmatprep.subr.bf16.mxu0 0
        %1226 = vmatpush1.bf16.msra.mxu0 0
        %1227 = vmatprep.subr.bf16.mxu0 0
        %1228 = vmatpush1.bf16.msra.mxu0 0
        %1229 = vmatprep.subr.bf16.mxu0 0
        %1230 = vmatpush1.bf16.msra.mxu0 0
        %1231 = vmatprep.subr.bf16.mxu0 0
        %1232 = vmatpush1.bf16.msra.mxu0 0
        %1233 = vmatprep.subr.bf16.mxu0 0
        %1234 = vmatpush1.bf16.msra.mxu0 0
        %1235 = vmatprep.mubr.bf16.mxu0 0
        %1236 = vmatmul.mubr.bf16.gmra.mrb[0].mxu0 %v1128
        %v1237 = vpop.f32.mrb[0].mxu0
        %v1238 = vadd.f32 %v1153, %v1237
        %v1239 = vpop.f32.mrb[0].mxu0
        %v1240 = vpop.f32.mrb[0].mxu0
        %v1241 = vadd.f32 %v1153, %v1240
        %v1242 = vpop.f32.mrb[0].mxu0
        %1243 = vmatprep.mubr.bf16.mxu0 0
        %1244 = vmatmul.mubr.bf16.gmra.mrb[0].mxu0 %v1129
        %v1245 = vpop.f32.mrb[0].mxu0
        %v1246 = vadd.f32 %v1153, %v1245
        %v1247 = vpop.f32.mrb[0].mxu0
        %v1248 = vpop.f32.mrb[0].mxu0
        %v1249 = vadd.f32 %v1153, %v1248
        %v1250 = vpop.f32.mrb[0].mxu0
        %1251 = vmatprep.mubr.bf16.mxu0 0
        %1252 = vmatmul.mubr.bf16.gmra.mrb[0].mxu0 %v1130
        %v1253 = vpop.f32.mrb[0].mxu0
        %v1254 = vadd.f32 %v1153, %v1253
        %v1255 = vpop.f32.mrb[0].mxu0
        %v1256 = vpop.f32.mrb[0].mxu0
        %v1257 = vadd.f32 %v1153, %v1256
        %v1258 = vpop.f32.mrb[0].mxu0
        %1259 = vmatprep.mubr.bf16.mxu0 0
        %1260 = vmatmul.mubr.bf16.gmra.mrb[0].mxu0 %v1131
        %v1261 = vpop.f32.mrb[0].mxu0
        %v1262 = vadd.f32 %v1153, %v1261
        %v1263 = vpop.f32.mrb[0].mxu0
        %v1264 = vpop.f32.mrb[0].mxu0
        %v1265 = vadd.f32 %v1153, %v1264
        %v1266 = vpop.f32.mrb[0].mxu0
        %1267 = vdwg.mxu0
        %v1268 = vpack.c.bf16 %v1241, %v1238
        %v1269 = vpack.c.bf16 %v1249, %v1246
        %v1270 = vpack.c.bf16 %v1257, %v1254
        %v1271 = vpack.c.bf16 %v1265, %v1262
        %v1272 = vld [vmem:[#allocation3] sm:$0xff]
        %v1273 = vld [vmem:[#allocation3 + $0x8] sm:$0xff]
        %v1274 = vld [vmem:[#allocation3 + $0x10] sm:$0xff]
        %v1275 = vld [vmem:[#allocation3 + $0x18] sm:$0xff]
        %v1276 = vld [vmem:[#allocation3 + $0x20] sm:$0xff]
        %v1277 = vld [vmem:[#allocation3 + $0x28] sm:$0xff]
        %v1278 = vld [vmem:[#allocation3 + $0x30] sm:$0xff]
        %v1279 = vld [vmem:[#allocation3 + $0x38] sm:$0xff]
        %v1280 = vld [vmem:[#allocation3 + $0x40] sm:$0xff]
        %v1281 = vld [vmem:[#allocation3 + $0x48] sm:$0xff]
        %v1282 = vld [vmem:[#allocation3 + $0x50] sm:$0xff]
        %v1283 = vld [vmem:[#allocation3 + $0x58] sm:$0xff]
        %v1284 = vld [vmem:[#allocation3 + $0x60] sm:$0xff]
        %v1285 = vld [vmem:[#allocation3 + $0x68] sm:$0xff]
        %v1286 = vld [vmem:[#allocation3 + $0x70] sm:$0xff]
        %v1287 = vld [vmem:[#allocation3 + $0x78] sm:$0xff]
        %vm1288 = vcmask 261120
        %v1290 = vsel %vm1288, %v1268, 0
        %v1293 = vsel %vm1288, %v1269, 0
        %v1296 = vsel %vm1288, %v1270, 0
        %v1299 = vsel %vm1288, %v1271, 0
        %v1302 = vsel %vm1288, %v1272, 0
        %v1305 = vsel %vm1288, %v1274, 0
        %v1308 = vsel %vm1288, %v1276, 0
        %v1311 = vsel %vm1288, %v1278, 0
        %v1314 = vsel %vm1288, %v1280, 0
        %v1317 = vsel %vm1288, %v1282, 0
        %v1320 = vsel %vm1288, %v1284, 0
        %v1323 = vsel %vm1288, %v1286, 0
        %1325 = vmatprep.subr.bf16.mxu0 0
        %1326 = vmatpush1.bf16.xpose.msra.mxu0 %v1302
        %1327 = vmatprep.subr.bf16.mxu0 0
        %1328 = vmatpush1.bf16.xpose.msra.mxu0 %v1305
        %1329 = vmatprep.subr.bf16.mxu0 0
        %1330 = vmatpush1.bf16.xpose.msra.mxu0 %v1308
        %1331 = vmatprep.subr.bf16.mxu0 0
        %1332 = vmatpush1.bf16.xpose.msra.mxu0 %v1311
        %1333 = vmatprep.subr.bf16.mxu0 0
        %1334 = vmatpush1.bf16.xpose.msra.mxu0 %v1314
        %1335 = vmatprep.subr.bf16.mxu0 0
        %1336 = vmatpush1.bf16.xpose.msra.mxu0 %v1317
        %1337 = vmatprep.subr.bf16.mxu0 0
        %1338 = vmatpush1.bf16.xpose.msra.mxu0 %v1320
        %1339 = vmatprep.subr.bf16.mxu0 0
        %1340 = vmatpush1.bf16.xpose.msra.mxu0 %v1323
        %1341 = vmatprep.subr.bf16.mxu0 0
        %1342 = vmatpush1.bf16.xpose.msra.mxu0 0
        %1343 = vmatprep.subr.bf16.mxu0 0
        %1344 = vmatpush1.bf16.xpose.msra.mxu0 0
        %1345 = vmatprep.subr.bf16.mxu0 0
        %1346 = vmatpush1.bf16.xpose.msra.mxu0 0
        %1347 = vmatprep.subr.bf16.mxu0 0
        %1348 = vmatpush1.bf16.xpose.msra.mxu0 0
        %1349 = vmatprep.subr.bf16.mxu0 0
        %1350 = vmatpush1.bf16.xpose.msra.mxu0 0
        %1351 = vmatprep.subr.bf16.mxu0 0
        %1352 = vmatpush1.bf16.xpose.msra.mxu0 0
        %1353 = vmatprep.subr.bf16.mxu0 0
        %1354 = vmatpush1.bf16.xpose.msra.mxu0 0
        %1355 = vmatprep.subr.bf16.mxu0 0
        %1356 = vmatpush1.bf16.xpose.msra.mxu0 0
        %1357 = vmatprep.mubr.bf16.mxu0 0
        %1358 = vmatmul.mubr.bf16.gmra.mrb[0].mxu0 %v1290
        %v1359 = vpop.f32.mrb[0].mxu0
        %v1360 = vadd.f32 0.0, %v1359
        %v1361 = vpop.f32.mrb[0].mxu0
        %v1362 = vpop.f32.mrb[0].mxu0
        %v1363 = vadd.f32 0.0, %v1362
        %v1364 = vpop.f32.mrb[0].mxu0
        %1365 = vmatprep.mubr.bf16.mxu0 0
        %1366 = vmatmul.mubr.bf16.gmra.mrb[0].mxu0 %v1293
        %v1367 = vpop.f32.mrb[0].mxu0
        %v1368 = vadd.f32 0.0, %v1367
        %v1369 = vpop.f32.mrb[0].mxu0
        %v1370 = vpop.f32.mrb[0].mxu0
        %v1371 = vadd.f32 0.0, %v1370
        %v1372 = vpop.f32.mrb[0].mxu0
        %1373 = vmatprep.mubr.bf16.mxu0 0
        %1374 = vmatmul.mubr.bf16.gmra.mrb[0].mxu0 %v1296
        %v1375 = vpop.f32.mrb[0].mxu0
        %v1376 = vadd.f32 0.0, %v1375
        %v1377 = vpop.f32.mrb[0].mxu0
        %v1378 = vpop.f32.mrb[0].mxu0
        %v1379 = vadd.f32 0.0, %v1378
        %v1380 = vpop.f32.mrb[0].mxu0
        %1381 = vmatprep.mubr.bf16.mxu0 0
        %1382 = vmatmul.mubr.bf16.gmra.mrb[0].mxu0 %v1299
        %v1383 = vpop.f32.mrb[0].mxu0
        %v1384 = vadd.f32 0.0, %v1383
        %v1385 = vpop.f32.mrb[0].mxu0
        %v1386 = vpop.f32.mrb[0].mxu0
        %v1387 = vadd.f32 0.0, %v1386
        %v1388 = vpop.f32.mrb[0].mxu0
        %1389 = vdwg.mxu0
        %1390 = vmax.xlane.f32.xlu0 %v1360
        %v1391 = vpop.xlane.xlu0 %1390
        %1392 = vmax.xlane.f32.xlu0 %v1363
        %v1393 = vpop.xlane.xlu0 %1392
        %1394 = vmax.xlane.f32.xlu0 %v1368
        %v1395 = vpop.xlane.xlu0 %1394
        %1396 = vmax.xlane.f32.xlu0 %v1371
        %v1397 = vpop.xlane.xlu0 %1396
        %1398 = vmax.xlane.f32.xlu0 %v1376
        %v1399 = vpop.xlane.xlu0 %1398
        %1400 = vmax.xlane.f32.xlu0 %v1379
        %v1401 = vpop.xlane.xlu0 %1400
        %1402 = vmax.xlane.f32.xlu0 %v1384
        %v1403 = vpop.xlane.xlu0 %1402
        %1404 = vmax.xlane.f32.xlu0 %v1387
        %v1405 = vpop.xlane.xlu0 %1404
        %v1406 = vsub.f32 %v1360, %v1391
        %v1407 = vsub.f32 %v1363, %v1393
        %v1408 = vsub.f32 %v1368, %v1395
        %v1409 = vsub.f32 %v1371, %v1397
        %v1410 = vsub.f32 %v1376, %v1399
        %v1411 = vsub.f32 %v1379, %v1401
        %v1412 = vsub.f32 %v1384, %v1403
        %v1413 = vsub.f32 %v1387, %v1405
        %v1414 = vmul.f32 %v1406, 1.442695
        %v1415 = vpow.pop %v1414
        %v1416 = vmul.f32 %v1407, 1.442695
        %v1417 = vpow.pop %v1416
        %v1418 = vmul.f32 %v1408, 1.442695
        %v1419 = vpow.pop %v1418
        %v1420 = vmul.f32 %v1409, 1.442695
        %v1421 = vpow.pop %v1420
        %v1422 = vmul.f32 %v1410, 1.442695
        %v1423 = vpow.pop %v1422
        %v1424 = vmul.f32 %v1411, 1.442695
        %v1425 = vpow.pop %v1424
        %v1426 = vmul.f32 %v1412, 1.442695
        %v1427 = vpow.pop %v1426
        %v1428 = vmul.f32 %v1413, 1.442695
        %v1429 = vpow.pop %v1428
        %1430 = vadd.xlane.f32.xlu0 %v1415
        %v1431 = vpop.xlane.xlu0 %1430
        %1432 = vadd.xlane.f32.xlu0 %v1417
        %v1433 = vpop.xlane.xlu0 %1432
        %1434 = vadd.xlane.f32.xlu0 %v1419
        %v1435 = vpop.xlane.xlu0 %1434
        %1436 = vadd.xlane.f32.xlu0 %v1421
        %v1437 = vpop.xlane.xlu0 %1436
        %1438 = vadd.xlane.f32.xlu0 %v1423
        %v1439 = vpop.xlane.xlu0 %1438
        %1440 = vadd.xlane.f32.xlu0 %v1425
        %v1441 = vpop.xlane.xlu0 %1440
        %1442 = vadd.xlane.f32.xlu0 %v1427
        %v1443 = vpop.xlane.xlu0 %1442
        %1444 = vadd.xlane.f32.xlu0 %v1429
        %v1445 = vpop.xlane.xlu0 %1444
        %v1446 = vrcp.pop %v1431
        %v1447 = vrcp.pop %v1433
        %v1448 = vrcp.pop %v1435
        %v1449 = vrcp.pop %v1437
        %v1450 = vrcp.pop %v1439
        %v1451 = vrcp.pop %v1441
        %v1452 = vrcp.pop %v1443
        %v1453 = vrcp.pop %v1445
        %v1454 = vmul.f32 %v1415, %v1446
        %v1455 = vmul.f32 %v1417, %v1447
        %v1456 = vmul.f32 %v1419, %v1448
        %v1457 = vmul.f32 %v1421, %v1449
        %v1458 = vmul.f32 %v1423, %v1450
        %v1459 = vmul.f32 %v1425, %v1451
        %v1460 = vmul.f32 %v1427, %v1452
        %v1461 = vmul.f32 %v1429, %v1453
        %v1462 = vpack.c.bf16 %v1455, %v1454
        %v1463 = vpack.c.bf16 %v1457, %v1456
        %v1464 = vpack.c.bf16 %v1459, %v1458
        %v1465 = vpack.c.bf16 %v1461, %v1460
        %1466 = vmatprep.subr.bf16.mxu0 0
        %1467 = vmatpush1.bf16.msra.mxu0 %v1273
        %1468 = vmatprep.subr.bf16.mxu0 0
        %1469 = vmatpush1.bf16.msra.mxu0 %v1275
        %1470 = vmatprep.subr.bf16.mxu0 0
        %1471 = vmatpush1.bf16.msra.mxu0 %v1277
        %1472 = vmatprep.subr.bf16.mxu0 0
        %1473 = vmatpush1.bf16.msra.mxu0 %v1279
        %1474 = vmatprep.subr.bf16.mxu0 0
        %1475 = vmatpush1.bf16.msra.mxu0 %v1281
        %1476 = vmatprep.subr.bf16.mxu0 0
        %1477 = vmatpush1.bf16.msra.mxu0 %v1283
        %1478 = vmatprep.subr.bf16.mxu0 0
        %1479 = vmatpush1.bf16.msra.mxu0 %v1285
        %1480 = vmatprep.subr.bf16.mxu0 0
        %1481 = vmatpush1.bf16.msra.mxu0 %v1287
        %1482 = vmatprep.subr.bf16.mxu0 0
        %1483 = vmatpush1.bf16.msra.mxu0 0
        %1484 = vmatprep.subr.bf16.mxu0 0
        %1485 = vmatpush1.bf16.msra.mxu0 0
        %1486 = vmatprep.subr.bf16.mxu0 0
        %1487 = vmatpush1.bf16.msra.mxu0 0
        %1488 = vmatprep.subr.bf16.mxu0 0
        %1489 = vmatpush1.bf16.msra.mxu0 0
        %1490 = vmatprep.subr.bf16.mxu0 0
        %1491 = vmatpush1.bf16.msra.mxu0 0
        %1492 = vmatprep.subr.bf16.mxu0 0
        %1493 = vmatpush1.bf16.msra.mxu0 0
        %1494 = vmatprep.subr.bf16.mxu0 0
        %1495 = vmatpush1.bf16.msra.mxu0 0
        %1496 = vmatprep.subr.bf16.mxu0 0
        %1497 = vmatpush1.bf16.msra.mxu0 0
        %1498 = vmatprep.mubr.bf16.mxu0 0
        %1499 = vmatmul.mubr.bf16.gmra.mrb[0].mxu0 %v1462
        %v1500 = vpop.f32.mrb[0].mxu0
        %v1501 = vadd.f32 0.0, %v1500
        %v1502 = vpop.f32.mrb[0].mxu0
        %v1503 = vpop.f32.mrb[0].mxu0
        %v1504 = vadd.f32 0.0, %v1503
        %v1505 = vpop.f32.mrb[0].mxu0
        %1506 = vmatprep.mubr.bf16.mxu0 0
        %1507 = vmatmul.mubr.bf16.gmra.mrb[0].mxu0 %v1463
        %v1508 = vpop.f32.mrb[0].mxu0
        %v1509 = vadd.f32 0.0, %v1508
        %v1510 = vpop.f32.mrb[0].mxu0
        %v1511 = vpop.f32.mrb[0].mxu0
        %v1512 = vadd.f32 0.0, %v1511
        %v1513 = vpop.f32.mrb[0].mxu0
        %1514 = vmatprep.mubr.bf16.mxu0 0
        %1515 = vmatmul.mubr.bf16.gmra.mrb[0].mxu0 %v1464
        %v1516 = vpop.f32.mrb[0].mxu0
        %v1517 = vadd.f32 0.0, %v1516
        %v1518 = vpop.f32.mrb[0].mxu0
        %v1519 = vpop.f32.mrb[0].mxu0
        %v1520 = vadd.f32 0.0, %v1519
        %v1521 = vpop.f32.mrb[0].mxu0
        %1522 = vmatprep.mubr.bf16.mxu0 0
        %1523 = vmatmul.mubr.bf16.gmra.mrb[0].mxu0 %v1465
        %v1524 = vpop.f32.mrb[0].mxu0
        %v1525 = vadd.f32 0.0, %v1524
        %v1526 = vpop.f32.mrb[0].mxu0
        %v1527 = vpop.f32.mrb[0].mxu0
        %v1528 = vadd.f32 0.0, %v1527
        %v1529 = vpop.f32.mrb[0].mxu0
        %1530 = vdwg.mxu0
        %1535 = vrot.lane.b32.xlu0 %v1268, 96
        %v1536 = vpop.permute.xlu0 %1535
        %1537 = vrot.lane.b32.xlu0 %v1269, 96
        %v1538 = vpop.permute.xlu0 %1537
        %1539 = vrot.lane.b32.xlu0 %v1270, 96
        %v1540 = vpop.permute.xlu0 %1539
        %1541 = vrot.lane.b32.xlu0 %v1271, 96
        %v1542 = vpop.permute.xlu0 %1541
        %1551 = vrot.lane.b32.xlu0 %v1272, 96
        %v1552 = vpop.permute.xlu0 %1551
        %1553 = vrot.lane.b32.xlu0 %v1274, 96
        %v1554 = vpop.permute.xlu0 %1553
        %1555 = vrot.lane.b32.xlu0 %v1276, 96
        %v1556 = vpop.permute.xlu0 %1555
        %1557 = vrot.lane.b32.xlu0 %v1278, 96
        %v1558 = vpop.permute.xlu0 %1557
        %1559 = vrot.lane.b32.xlu0 %v1280, 96
        %v1560 = vpop.permute.xlu0 %1559
        %1561 = vrot.lane.b32.xlu0 %v1282, 96
        %v1562 = vpop.permute.xlu0 %1561
        %1563 = vrot.lane.b32.xlu0 %v1284, 96
        %v1564 = vpop.permute.xlu0 %1563
        %1565 = vrot.lane.b32.xlu0 %v1286, 96
        %v1566 = vpop.permute.xlu0 %1565
        %v1568 = vsel %vm1288, %v1536, 0
        %v1571 = vsel %vm1288, %v1538, 0
        %v1574 = vsel %vm1288, %v1540, 0
        %v1577 = vsel %vm1288, %v1542, 0
        %v1580 = vsel %vm1288, %v1552, 0
        %v1583 = vsel %vm1288, %v1554, 0
        %v1586 = vsel %vm1288, %v1556, 0
        %v1589 = vsel %vm1288, %v1558, 0
        %v1592 = vsel %vm1288, %v1560, 0
        %v1595 = vsel %vm1288, %v1562, 0
        %v1598 = vsel %vm1288, %v1564, 0
        %v1601 = vsel %vm1288, %v1566, 0
        %1603 = vmatprep.subr.bf16.mxu0 0
        %1604 = vmatpush1.bf16.xpose.msra.mxu0 %v1580
        %1605 = vmatprep.subr.bf16.mxu0 0
        %1606 = vmatpush1.bf16.xpose.msra.mxu0 %v1583
        %1607 = vmatprep.subr.bf16.mxu0 0
        %1608 = vmatpush1.bf16.xpose.msra.mxu0 %v1586
        %1609 = vmatprep.subr.bf16.mxu0 0
        %1610 = vmatpush1.bf16.xpose.msra.mxu0 %v1589
        %1611 = vmatprep.subr.bf16.mxu0 0
        %1612 = vmatpush1.bf16.xpose.msra.mxu0 %v1592
        %1613 = vmatprep.subr.bf16.mxu0 0
        %1614 = vmatpush1.bf16.xpose.msra.mxu0 %v1595
        %1615 = vmatprep.subr.bf16.mxu0 0
        %1616 = vmatpush1.bf16.xpose.msra.mxu0 %v1598
        %1617 = vmatprep.subr.bf16.mxu0 0
        %1618 = vmatpush1.bf16.xpose.msra.mxu0 %v1601
        %1619 = vmatprep.subr.bf16.mxu0 0
        %1620 = vmatpush1.bf16.xpose.msra.mxu0 0
        %1621 = vmatprep.subr.bf16.mxu0 0
        %1622 = vmatpush1.bf16.xpose.msra.mxu0 0
        %1623 = vmatprep.subr.bf16.mxu0 0
        %1624 = vmatpush1.bf16.xpose.msra.mxu0 0
        %1625 = vmatprep.subr.bf16.mxu0 0
        %1626 = vmatpush1.bf16.xpose.msra.mxu0 0
        %1627 = vmatprep.subr.bf16.mxu0 0
        %1628 = vmatpush1.bf16.xpose.msra.mxu0 0
        %1629 = vmatprep.subr.bf16.mxu0 0
        %1630 = vmatpush1.bf16.xpose.msra.mxu0 0
        %1631 = vmatprep.subr.bf16.mxu0 0
        %1632 = vmatpush1.bf16.xpose.msra.mxu0 0
        %1633 = vmatprep.subr.bf16.mxu0 0
        %1634 = vmatpush1.bf16.xpose.msra.mxu0 0
        %1635 = vmatprep.mubr.bf16.mxu0 0
        %1636 = vmatmul.mubr.bf16.gmra.mrb[0].mxu0 %v1568
        %v1637 = vpop.f32.mrb[0].mxu0
        %v1638 = vadd.f32 0.0, %v1637
        %v1639 = vpop.f32.mrb[0].mxu0
        %v1640 = vpop.f32.mrb[0].mxu0
        %v1641 = vadd.f32 0.0, %v1640
        %v1642 = vpop.f32.mrb[0].mxu0
        %1643 = vmatprep.mubr.bf16.mxu0 0
        %1644 = vmatmul.mubr.bf16.gmra.mrb[0].mxu0 %v1571
        %v1645 = vpop.f32.mrb[0].mxu0
        %v1646 = vadd.f32 0.0, %v1645
        %v1647 = vpop.f32.mrb[0].mxu0
        %v1648 = vpop.f32.mrb[0].mxu0
        %v1649 = vadd.f32 0.0, %v1648
        %v1650 = vpop.f32.mrb[0].mxu0
        %1651 = vmatprep.mubr.bf16.mxu0 0
        %1652 = vmatmul.mubr.bf16.gmra.mrb[0].mxu0 %v1574
        %v1653 = vpop.f32.mrb[0].mxu0
        %v1654 = vadd.f32 0.0, %v1653
        %v1655 = vpop.f32.mrb[0].mxu0
        %v1656 = vpop.f32.mrb[0].mxu0
        %v1657 = vadd.f32 0.0, %v1656
        %v1658 = vpop.f32.mrb[0].mxu0
        %1659 = vmatprep.mubr.bf16.mxu0 0
        %1660 = vmatmul.mubr.bf16.gmra.mrb[0].mxu0 %v1577
        %v1661 = vpop.f32.mrb[0].mxu0
        %v1662 = vadd.f32 0.0, %v1661
        %v1663 = vpop.f32.mrb[0].mxu0
        %v1664 = vpop.f32.mrb[0].mxu0
        %v1665 = vadd.f32 0.0, %v1664
        %v1666 = vpop.f32.mrb[0].mxu0
        %1667 = vdwg.mxu0
        %1668 = vmax.xlane.f32.xlu0 %v1638
        %v1669 = vpop.xlane.xlu0 %1668
        %1670 = vmax.xlane.f32.xlu0 %v1641
        %v1671 = vpop.xlane.xlu0 %1670
        %1672 = vmax.xlane.f32.xlu0 %v1646
        %v1673 = vpop.xlane.xlu0 %1672
        %1674 = vmax.xlane.f32.xlu0 %v1649
        %v1675 = vpop.xlane.xlu0 %1674
        %1676 = vmax.xlane.f32.xlu0 %v1654
        %v1677 = vpop.xlane.xlu0 %1676
        %1678 = vmax.xlane.f32.xlu0 %v1657
        %v1679 = vpop.xlane.xlu0 %1678
        %1680 = vmax.xlane.f32.xlu0 %v1662
        %v1681 = vpop.xlane.xlu0 %1680
        %1682 = vmax.xlane.f32.xlu0 %v1665
        %v1683 = vpop.xlane.xlu0 %1682
        %v1684 = vsub.f32 %v1638, %v1669
        %v1685 = vsub.f32 %v1641, %v1671
        %v1686 = vsub.f32 %v1646, %v1673
        %v1687 = vsub.f32 %v1649, %v1675
        %v1688 = vsub.f32 %v1654, %v1677
        %v1689 = vsub.f32 %v1657, %v1679
        %v1690 = vsub.f32 %v1662, %v1681
        %v1691 = vsub.f32 %v1665, %v1683
        %v1692 = vmul.f32 %v1684, 1.442695
        %v1693 = vpow.pop %v1692
        %v1694 = vmul.f32 %v1685, 1.442695
        %v1695 = vpow.pop %v1694
        %v1696 = vmul.f32 %v1686, 1.442695
        %v1697 = vpow.pop %v1696
        %v1698 = vmul.f32 %v1687, 1.442695
        %v1699 = vpow.pop %v1698
        %v1700 = vmul.f32 %v1688, 1.442695
        %v1701 = vpow.pop %v1700
        %v1702 = vmul.f32 %v1689, 1.442695
        %v1703 = vpow.pop %v1702
        %v1704 = vmul.f32 %v1690, 1.442695
        %v1705 = vpow.pop %v1704
        %v1706 = vmul.f32 %v1691, 1.442695
        %v1707 = vpow.pop %v1706
        %1708 = vadd.xlane.f32.xlu0 %v1693
        %v1709 = vpop.xlane.xlu0 %1708
        %1710 = vadd.xlane.f32.xlu0 %v1695
        %v1711 = vpop.xlane.xlu0 %1710
        %1712 = vadd.xlane.f32.xlu0 %v1697
        %v1713 = vpop.xlane.xlu0 %1712
        %1714 = vadd.xlane.f32.xlu0 %v1699
        %v1715 = vpop.xlane.xlu0 %1714
        %1716 = vadd.xlane.f32.xlu0 %v1701
        %v1717 = vpop.xlane.xlu0 %1716
        %1718 = vadd.xlane.f32.xlu0 %v1703
        %v1719 = vpop.xlane.xlu0 %1718
        %1720 = vadd.xlane.f32.xlu0 %v1705
        %v1721 = vpop.xlane.xlu0 %1720
        %1722 = vadd.xlane.f32.xlu0 %v1707
        %v1723 = vpop.xlane.xlu0 %1722
        %v1724 = vrcp.pop %v1709
        %v1725 = vrcp.pop %v1711
        %v1726 = vrcp.pop %v1713
        %v1727 = vrcp.pop %v1715
        %v1728 = vrcp.pop %v1717
        %v1729 = vrcp.pop %v1719
        %v1730 = vrcp.pop %v1721
        %v1731 = vrcp.pop %v1723
        %v1732 = vmul.f32 %v1693, %v1724
        %v1733 = vmul.f32 %v1695, %v1725
        %v1734 = vmul.f32 %v1697, %v1726
        %v1735 = vmul.f32 %v1699, %v1727
        %v1736 = vmul.f32 %v1701, %v1728
        %v1737 = vmul.f32 %v1703, %v1729
        %v1738 = vmul.f32 %v1705, %v1730
        %v1739 = vmul.f32 %v1707, %v1731
        %v1740 = vpack.c.bf16 %v1733, %v1732
        %v1741 = vpack.c.bf16 %v1735, %v1734
        %v1742 = vpack.c.bf16 %v1737, %v1736
        %v1743 = vpack.c.bf16 %v1739, %v1738
        %1752 = vrot.lane.b32.xlu0 %v1273, 96
        %v1753 = vpop.permute.xlu0 %1752
        %1754 = vrot.lane.b32.xlu0 %v1275, 96
        %v1755 = vpop.permute.xlu0 %1754
        %1756 = vrot.lane.b32.xlu0 %v1277, 96
        %v1757 = vpop.permute.xlu0 %1756
        %1758 = vrot.lane.b32.xlu0 %v1279, 96
        %v1759 = vpop.permute.xlu0 %1758
        %1760 = vrot.lane.b32.xlu0 %v1281, 96
        %v1761 = vpop.permute.xlu0 %1760
        %1762 = vrot.lane.b32.xlu0 %v1283, 96
        %v1763 = vpop.permute.xlu0 %1762
        %1764 = vrot.lane.b32.xlu0 %v1285, 96
        %v1765 = vpop.permute.xlu0 %1764
        %1766 = vrot.lane.b32.xlu0 %v1287, 96
        %v1767 = vpop.permute.xlu0 %1766
        %1776 = vmatprep.subr.bf16.mxu0 0
        %1777 = vmatpush1.bf16.msra.mxu0 %v1753
        %1778 = vmatprep.subr.bf16.mxu0 0
        %1779 = vmatpush1.bf16.msra.mxu0 %v1755
        %1780 = vmatprep.subr.bf16.mxu0 0
        %1781 = vmatpush1.bf16.msra.mxu0 %v1757
        %1782 = vmatprep.subr.bf16.mxu0 0
        %1783 = vmatpush1.bf16.msra.mxu0 %v1759
        %1784 = vmatprep.subr.bf16.mxu0 0
        %1785 = vmatpush1.bf16.msra.mxu0 %v1761
        %1786 = vmatprep.subr.bf16.mxu0 0
        %1787 = vmatpush1.bf16.msra.mxu0 %v1763
        %1788 = vmatprep.subr.bf16.mxu0 0
        %1789 = vmatpush1.bf16.msra.mxu0 %v1765
        %1790 = vmatprep.subr.bf16.mxu0 0
        %1791 = vmatpush1.bf16.msra.mxu0 %v1767
        %1792 = vmatprep.subr.bf16.mxu0 0
        %1793 = vmatpush1.bf16.msra.mxu0 0
        %1794 = vmatprep.subr.bf16.mxu0 0
        %1795 = vmatpush1.bf16.msra.mxu0 0
        %1796 = vmatprep.subr.bf16.mxu0 0
        %1797 = vmatpush1.bf16.msra.mxu0 0
        %1798 = vmatprep.subr.bf16.mxu0 0
        %1799 = vmatpush1.bf16.msra.mxu0 0
        %1800 = vmatprep.subr.bf16.mxu0 0
        %1801 = vmatpush1.bf16.msra.mxu0 0
        %1802 = vmatprep.subr.bf16.mxu0 0
        %1803 = vmatpush1.bf16.msra.mxu0 0
        %1804 = vmatprep.subr.bf16.mxu0 0
        %1805 = vmatpush1.bf16.msra.mxu0 0
        %1806 = vmatprep.subr.bf16.mxu0 0
        %1807 = vmatpush1.bf16.msra.mxu0 0
        %1808 = vmatprep.mubr.bf16.mxu0 0
        %1809 = vmatmul.mubr.bf16.gmra.mrb[0].mxu0 %v1740
        %v1810 = vpop.f32.mrb[0].mxu0
        %v1811 = vadd.f32 0.0, %v1810
        %v1812 = vpop.f32.mrb[0].mxu0
        %v1813 = vpop.f32.mrb[0].mxu0
        %v1814 = vadd.f32 0.0, %v1813
        %v1815 = vpop.f32.mrb[0].mxu0
        %1816 = vmatprep.mubr.bf16.mxu0 0
        %1817 = vmatmul.mubr.bf16.gmra.mrb[0].mxu0 %v1741
        %v1818 = vpop.f32.mrb[0].mxu0
        %v1819 = vadd.f32 0.0, %v1818
        %v1820 = vpop.f32.mrb[0].mxu0
        %v1821 = vpop.f32.mrb[0].mxu0
        %v1822 = vadd.f32 0.0, %v1821
        %v1823 = vpop.f32.mrb[0].mxu0
        %1824 = vmatprep.mubr.bf16.mxu0 0
        %1825 = vmatmul.mubr.bf16.gmra.mrb[0].mxu0 %v1742
        %v1826 = vpop.f32.mrb[0].mxu0
        %v1827 = vadd.f32 0.0, %v1826
        %v1828 = vpop.f32.mrb[0].mxu0
        %v1829 = vpop.f32.mrb[0].mxu0
        %v1830 = vadd.f32 0.0, %v1829
        %v1831 = vpop.f32.mrb[0].mxu0
        %1832 = vmatprep.mubr.bf16.mxu0 0
        %1833 = vmatmul.mubr.bf16.gmra.mrb[0].mxu0 %v1743
        %v1834 = vpop.f32.mrb[0].mxu0
        %v1835 = vadd.f32 0.0, %v1834
        %v1836 = vpop.f32.mrb[0].mxu0
        %v1837 = vpop.f32.mrb[0].mxu0
        %v1838 = vadd.f32 0.0, %v1837
        %v1839 = vpop.f32.mrb[0].mxu0
        %1840 = vdwg.mxu0
        %1841 = vrot.lane.b32.xlu0 %v1268, 64
        %v1842 = vpop.permute.xlu0 %1841
        %1843 = vrot.lane.b32.xlu0 %v1269, 64
        %v1844 = vpop.permute.xlu0 %1843
        %1845 = vrot.lane.b32.xlu0 %v1270, 64
        %v1846 = vpop.permute.xlu0 %1845
        %1847 = vrot.lane.b32.xlu0 %v1271, 64
        %v1848 = vpop.permute.xlu0 %1847
        %1849 = vrot.lane.b32.xlu0 %v1272, 64
        %v1850 = vpop.permute.xlu0 %1849
        %1851 = vrot.lane.b32.xlu0 %v1274, 64
        %v1852 = vpop.permute.xlu0 %1851
        %1853 = vrot.lane.b32.xlu0 %v1276, 64
        %v1854 = vpop.permute.xlu0 %1853
        %1855 = vrot.lane.b32.xlu0 %v1278, 64
        %v1856 = vpop.permute.xlu0 %1855
        %1857 = vrot.lane.b32.xlu0 %v1280, 64
        %v1858 = vpop.permute.xlu0 %1857
        %1859 = vrot.lane.b32.xlu0 %v1282, 64
        %v1860 = vpop.permute.xlu0 %1859
        %1861 = vrot.lane.b32.xlu0 %v1284, 64
        %v1862 = vpop.permute.xlu0 %1861
        %1863 = vrot.lane.b32.xlu0 %v1286, 64
        %v1864 = vpop.permute.xlu0 %1863
        %v1866 = vsel %vm1288, %v1842, 0
        %v1869 = vsel %vm1288, %v1844, 0
        %v1872 = vsel %vm1288, %v1846, 0
        %v1875 = vsel %vm1288, %v1848, 0
        %v1878 = vsel %vm1288, %v1850, 0
        %v1881 = vsel %vm1288, %v1852, 0
        %v1884 = vsel %vm1288, %v1854, 0
        %v1887 = vsel %vm1288, %v1856, 0
        %v1890 = vsel %vm1288, %v1858, 0
        %v1893 = vsel %vm1288, %v1860, 0
        %v1896 = vsel %vm1288, %v1862, 0
        %v1899 = vsel %vm1288, %v1864, 0
        %1901 = vmatprep.subr.bf16.mxu0 0
        %1902 = vmatpush1.bf16.xpose.msra.mxu0 %v1878
        %1903 = vmatprep.subr.bf16.mxu0 0
        %1904 = vmatpush1.bf16.xpose.msra.mxu0 %v1881
        %1905 = vmatprep.subr.bf16.mxu0 0
        %1906 = vmatpush1.bf16.xpose.msra.mxu0 %v1884
        %1907 = vmatprep.subr.bf16.mxu0 0
        %1908 = vmatpush1.bf16.xpose.msra.mxu0 %v1887
        %1909 = vmatprep.subr.bf16.mxu0 0
        %1910 = vmatpush1.bf16.xpose.msra.mxu0 %v1890
        %1911 = vmatprep.subr.bf16.mxu0 0
        %1912 = vmatpush1.bf16.xpose.msra.mxu0 %v1893
        %1913 = vmatprep.subr.bf16.mxu0 0
        %1914 = vmatpush1.bf16.xpose.msra.mxu0 %v1896
        %1915 = vmatprep.subr.bf16.mxu0 0
        %1916 = vmatpush1.bf16.xpose.msra.mxu0 %v1899
        %1917 = vmatprep.subr.bf16.mxu0 0
        %1918 = vmatpush1.bf16.xpose.msra.mxu0 0
        %1919 = vmatprep.subr.bf16.mxu0 0
        %1920 = vmatpush1.bf16.xpose.msra.mxu0 0
        %1921 = vmatprep.subr.bf16.mxu0 0
        %1922 = vmatpush1.bf16.xpose.msra.mxu0 0
        %1923 = vmatprep.subr.bf16.mxu0 0
        %1924 = vmatpush1.bf16.xpose.msra.mxu0 0
        %1925 = vmatprep.subr.bf16.mxu0 0
        %1926 = vmatpush1.bf16.xpose.msra.mxu0 0
        %1927 = vmatprep.subr.bf16.mxu0 0
        %1928 = vmatpush1.bf16.xpose.msra.mxu0 0
        %1929 = vmatprep.subr.bf16.mxu0 0
        %1930 = vmatpush1.bf16.xpose.msra.mxu0 0
        %1931 = vmatprep.subr.bf16.mxu0 0
        %1932 = vmatpush1.bf16.xpose.msra.mxu0 0
        %1933 = vmatprep.mubr.bf16.mxu0 0
        %1934 = vmatmul.mubr.bf16.gmra.mrb[0].mxu0 %v1866
        %v1935 = vpop.f32.mrb[0].mxu0
        %v1936 = vadd.f32 0.0, %v1935
        %v1937 = vpop.f32.mrb[0].mxu0
        %v1938 = vpop.f32.mrb[0].mxu0
        %v1939 = vadd.f32 0.0, %v1938
        %v1940 = vpop.f32.mrb[0].mxu0
        %1941 = vmatprep.mubr.bf16.mxu0 0
        %1942 = vmatmul.mubr.bf16.gmra.mrb[0].mxu0 %v1869
        %v1943 = vpop.f32.mrb[0].mxu0
        %v1944 = vadd.f32 0.0, %v1943
        %v1945 = vpop.f32.mrb[0].mxu0
        %v1946 = vpop.f32.mrb[0].mxu0
        %v1947 = vadd.f32 0.0, %v1946
        %v1948 = vpop.f32.mrb[0].mxu0
        %1949 = vmatprep.mubr.bf16.mxu0 0
        %1950 = vmatmul.mubr.bf16.gmra.mrb[0].mxu0 %v1872
        %v1951 = vpop.f32.mrb[0].mxu0
        %v1952 = vadd.f32 0.0, %v1951
        %v1953 = vpop.f32.mrb[0].mxu0
        %v1954 = vpop.f32.mrb[0].mxu0
        %v1955 = vadd.f32 0.0, %v1954
        %v1956 = vpop.f32.mrb[0].mxu0
        %1957 = vmatprep.mubr.bf16.mxu0 0
        %1958 = vmatmul.mubr.bf16.gmra.mrb[0].mxu0 %v1875
        %v1959 = vpop.f32.mrb[0].mxu0
        %v1960 = vadd.f32 0.0, %v1959
        %v1961 = vpop.f32.mrb[0].mxu0
        %v1962 = vpop.f32.mrb[0].mxu0
        %v1963 = vadd.f32 0.0, %v1962
        %v1964 = vpop.f32.mrb[0].mxu0
        %1965 = vdwg.mxu0
        %1966 = vmax.xlane.f32.xlu0 %v1936
        %v1967 = vpop.xlane.xlu0 %1966
        %1968 = vmax.xlane.f32.xlu0 %v1939
        %v1969 = vpop.xlane.xlu0 %1968
        %1970 = vmax.xlane.f32.xlu0 %v1944
        %v1971 = vpop.xlane.xlu0 %1970
        %1972 = vmax.xlane.f32.xlu0 %v1947
        %v1973 = vpop.xlane.xlu0 %1972
        %1974 = vmax.xlane.f32.xlu0 %v1952
        %v1975 = vpop.xlane.xlu0 %1974
        %1976 = vmax.xlane.f32.xlu0 %v1955
        %v1977 = vpop.xlane.xlu0 %1976
        %1978 = vmax.xlane.f32.xlu0 %v1960
        %v1979 = vpop.xlane.xlu0 %1978
        %1980 = vmax.xlane.f32.xlu0 %v1963
        %v1981 = vpop.xlane.xlu0 %1980
        %v1982 = vsub.f32 %v1936, %v1967
        %v1983 = vsub.f32 %v1939, %v1969
        %v1984 = vsub.f32 %v1944, %v1971
        %v1985 = vsub.f32 %v1947, %v1973
        %v1986 = vsub.f32 %v1952, %v1975
        %v1987 = vsub.f32 %v1955, %v1977
        %v1988 = vsub.f32 %v1960, %v1979
        %v1989 = vsub.f32 %v1963, %v1981
        %v1990 = vmul.f32 %v1982, 1.442695
        %v1991 = vpow.pop %v1990
        %v1992 = vmul.f32 %v1983, 1.442695
        %v1993 = vpow.pop %v1992
        %v1994 = vmul.f32 %v1984, 1.442695
        %v1995 = vpow.pop %v1994
        %v1996 = vmul.f32 %v1985, 1.442695
        %v1997 = vpow.pop %v1996
        %v1998 = vmul.f32 %v1986, 1.442695
        %v1999 = vpow.pop %v1998
        %v2000 = vmul.f32 %v1987, 1.442695
        %v2001 = vpow.pop %v2000
        %v2002 = vmul.f32 %v1988, 1.442695
        %v2003 = vpow.pop %v2002
        %v2004 = vmul.f32 %v1989, 1.442695
        %v2005 = vpow.pop %v2004
        %2006 = vadd.xlane.f32.xlu0 %v1991
        %v2007 = vpop.xlane.xlu0 %2006
        %2008 = vadd.xlane.f32.xlu0 %v1993
        %v2009 = vpop.xlane.xlu0 %2008
        %2010 = vadd.xlane.f32.xlu0 %v1995
        %v2011 = vpop.xlane.xlu0 %2010
        %2012 = vadd.xlane.f32.xlu0 %v1997
        %v2013 = vpop.xlane.xlu0 %2012
        %2014 = vadd.xlane.f32.xlu0 %v1999
        %v2015 = vpop.xlane.xlu0 %2014
        %2016 = vadd.xlane.f32.xlu0 %v2001
        %v2017 = vpop.xlane.xlu0 %2016
        %2018 = vadd.xlane.f32.xlu0 %v2003
        %v2019 = vpop.xlane.xlu0 %2018
        %2020 = vadd.xlane.f32.xlu0 %v2005
        %v2021 = vpop.xlane.xlu0 %2020
        %v2022 = vrcp.pop %v2007
        %v2023 = vrcp.pop %v2009
        %v2024 = vrcp.pop %v2011
        %v2025 = vrcp.pop %v2013
        %v2026 = vrcp.pop %v2015
        %v2027 = vrcp.pop %v2017
        %v2028 = vrcp.pop %v2019
        %v2029 = vrcp.pop %v2021
        %v2030 = vmul.f32 %v1991, %v2022
        %v2031 = vmul.f32 %v1993, %v2023
        %v2032 = vmul.f32 %v1995, %v2024
        %v2033 = vmul.f32 %v1997, %v2025
        %v2034 = vmul.f32 %v1999, %v2026
        %v2035 = vmul.f32 %v2001, %v2027
        %v2036 = vmul.f32 %v2003, %v2028
        %v2037 = vmul.f32 %v2005, %v2029
        %v2038 = vpack.c.bf16 %v2031, %v2030
        %v2039 = vpack.c.bf16 %v2033, %v2032
        %v2040 = vpack.c.bf16 %v2035, %v2034
        %v2041 = vpack.c.bf16 %v2037, %v2036
        %2042 = vrot.lane.b32.xlu0 %v1273, 64
        %v2043 = vpop.permute.xlu0 %2042
        %2044 = vrot.lane.b32.xlu0 %v1275, 64
        %v2045 = vpop.permute.xlu0 %2044
        %2046 = vrot.lane.b32.xlu0 %v1277, 64
        %v2047 = vpop.permute.xlu0 %2046
        %2048 = vrot.lane.b32.xlu0 %v1279, 64
        %v2049 = vpop.permute.xlu0 %2048
        %2050 = vrot.lane.b32.xlu0 %v1281, 64
        %v2051 = vpop.permute.xlu0 %2050
        %2052 = vrot.lane.b32.xlu0 %v1283, 64
        %v2053 = vpop.permute.xlu0 %2052
        %2054 = vrot.lane.b32.xlu0 %v1285, 64
        %v2055 = vpop.permute.xlu0 %2054
        %2056 = vrot.lane.b32.xlu0 %v1287, 64
        %v2057 = vpop.permute.xlu0 %2056
        %2066 = vmatprep.subr.bf16.mxu0 0
        %2067 = vmatpush1.bf16.msra.mxu0 %v2043
        %2068 = vmatprep.subr.bf16.mxu0 0
        %2069 = vmatpush1.bf16.msra.mxu0 %v2045
        %2070 = vmatprep.subr.bf16.mxu0 0
        %2071 = vmatpush1.bf16.msra.mxu0 %v2047
        %2072 = vmatprep.subr.bf16.mxu0 0
        %2073 = vmatpush1.bf16.msra.mxu0 %v2049
        %2074 = vmatprep.subr.bf16.mxu0 0
        %2075 = vmatpush1.bf16.msra.mxu0 %v2051
        %2076 = vmatprep.subr.bf16.mxu0 0
        %2077 = vmatpush1.bf16.msra.mxu0 %v2053
        %2078 = vmatprep.subr.bf16.mxu0 0
        %2079 = vmatpush1.bf16.msra.mxu0 %v2055
        %2080 = vmatprep.subr.bf16.mxu0 0
        %2081 = vmatpush1.bf16.msra.mxu0 %v2057
        %2082 = vmatprep.subr.bf16.mxu0 0
        %2083 = vmatpush1.bf16.msra.mxu0 0
        %2084 = vmatprep.subr.bf16.mxu0 0
        %2085 = vmatpush1.bf16.msra.mxu0 0
        %2086 = vmatprep.subr.bf16.mxu0 0
        %2087 = vmatpush1.bf16.msra.mxu0 0
        %2088 = vmatprep.subr.bf16.mxu0 0
        %2089 = vmatpush1.bf16.msra.mxu0 0
        %2090 = vmatprep.subr.bf16.mxu0 0
        %2091 = vmatpush1.bf16.msra.mxu0 0
        %2092 = vmatprep.subr.bf16.mxu0 0
        %2093 = vmatpush1.bf16.msra.mxu0 0
        %2094 = vmatprep.subr.bf16.mxu0 0
        %2095 = vmatpush1.bf16.msra.mxu0 0
        %2096 = vmatprep.subr.bf16.mxu0 0
        %2097 = vmatpush1.bf16.msra.mxu0 0
        %2098 = vmatprep.mubr.bf16.mxu0 0
        %2099 = vmatmul.mubr.bf16.gmra.mrb[0].mxu0 %v2038
        %v2100 = vpop.f32.mrb[0].mxu0
        %v2101 = vadd.f32 0.0, %v2100
        %v2102 = vpop.f32.mrb[0].mxu0
        %v2103 = vpop.f32.mrb[0].mxu0
        %v2104 = vadd.f32 0.0, %v2103
        %v2105 = vpop.f32.mrb[0].mxu0
        %2106 = vmatprep.mubr.bf16.mxu0 0
        %2107 = vmatmul.mubr.bf16.gmra.mrb[0].mxu0 %v2039
        %v2108 = vpop.f32.mrb[0].mxu0
        %v2109 = vadd.f32 0.0, %v2108
        %v2110 = vpop.f32.mrb[0].mxu0
        %v2111 = vpop.f32.mrb[0].mxu0
        %v2112 = vadd.f32 0.0, %v2111
        %v2113 = vpop.f32.mrb[0].mxu0
        %2114 = vmatprep.mubr.bf16.mxu0 0
        %2115 = vmatmul.mubr.bf16.gmra.mrb[0].mxu0 %v2040
        %v2116 = vpop.f32.mrb[0].mxu0
        %v2117 = vadd.f32 0.0, %v2116
        %v2118 = vpop.f32.mrb[0].mxu0
        %v2119 = vpop.f32.mrb[0].mxu0
        %v2120 = vadd.f32 0.0, %v2119
        %v2121 = vpop.f32.mrb[0].mxu0
        %2122 = vmatprep.mubr.bf16.mxu0 0
        %2123 = vmatmul.mubr.bf16.gmra.mrb[0].mxu0 %v2041
        %v2124 = vpop.f32.mrb[0].mxu0
        %v2125 = vadd.f32 0.0, %v2124
        %v2126 = vpop.f32.mrb[0].mxu0
        %v2127 = vpop.f32.mrb[0].mxu0
        %v2128 = vadd.f32 0.0, %v2127
        %v2129 = vpop.f32.mrb[0].mxu0
        %2130 = vdwg.mxu0
        %2131 = vrot.lane.b32.xlu0 %v1268, 32
        %v2132 = vpop.permute.xlu0 %2131
        %2133 = vrot.lane.b32.xlu0 %v1269, 32
        %v2134 = vpop.permute.xlu0 %2133
        %2135 = vrot.lane.b32.xlu0 %v1270, 32
        %v2136 = vpop.permute.xlu0 %2135
        %2137 = vrot.lane.b32.xlu0 %v1271, 32
        %v2138 = vpop.permute.xlu0 %2137
        %2139 = vrot.lane.b32.xlu0 %v1272, 32
        %v2140 = vpop.permute.xlu0 %2139
        %2141 = vrot.lane.b32.xlu0 %v1274, 32
        %v2142 = vpop.permute.xlu0 %2141
        %2143 = vrot.lane.b32.xlu0 %v1276, 32
        %v2144 = vpop.permute.xlu0 %2143
        %2145 = vrot.lane.b32.xlu0 %v1278, 32
        %v2146 = vpop.permute.xlu0 %2145
        %2147 = vrot.lane.b32.xlu0 %v1280, 32
        %v2148 = vpop.permute.xlu0 %2147
        %2149 = vrot.lane.b32.xlu0 %v1282, 32
        %v2150 = vpop.permute.xlu0 %2149
        %2151 = vrot.lane.b32.xlu0 %v1284, 32
        %v2152 = vpop.permute.xlu0 %2151
        %2153 = vrot.lane.b32.xlu0 %v1286, 32
        %v2154 = vpop.permute.xlu0 %2153
        %v2156 = vsel %vm1288, %v2132, 0
        %v2159 = vsel %vm1288, %v2134, 0
        %v2162 = vsel %vm1288, %v2136, 0
        %v2165 = vsel %vm1288, %v2138, 0
        %v2168 = vsel %vm1288, %v2140, 0
        %v2171 = vsel %vm1288, %v2142, 0
        %v2174 = vsel %vm1288, %v2144, 0
        %v2177 = vsel %vm1288, %v2146, 0
        %v2180 = vsel %vm1288, %v2148, 0
        %v2183 = vsel %vm1288, %v2150, 0
        %v2186 = vsel %vm1288, %v2152, 0
        %v2189 = vsel %vm1288, %v2154, 0
        %2191 = vmatprep.subr.bf16.mxu0 0
        %2192 = vmatpush1.bf16.xpose.msra.mxu0 %v2168
        %2193 = vmatprep.subr.bf16.mxu0 0
        %2194 = vmatpush1.bf16.xpose.msra.mxu0 %v2171
        %2195 = vmatprep.subr.bf16.mxu0 0
        %2196 = vmatpush1.bf16.xpose.msra.mxu0 %v2174
        %2197 = vmatprep.subr.bf16.mxu0 0
        %2198 = vmatpush1.bf16.xpose.msra.mxu0 %v2177
        %2199 = vmatprep.subr.bf16.mxu0 0
        %2200 = vmatpush1.bf16.xpose.msra.mxu0 %v2180
        %2201 = vmatprep.subr.bf16.mxu0 0
        %2202 = vmatpush1.bf16.xpose.msra.mxu0 %v2183
        %2203 = vmatprep.subr.bf16.mxu0 0
        %2204 = vmatpush1.bf16.xpose.msra.mxu0 %v2186
        %2205 = vmatprep.subr.bf16.mxu0 0
        %2206 = vmatpush1.bf16.xpose.msra.mxu0 %v2189
        %2207 = vmatprep.subr.bf16.mxu0 0
        %2208 = vmatpush1.bf16.xpose.msra.mxu0 0
        %2209 = vmatprep.subr.bf16.mxu0 0
        %2210 = vmatpush1.bf16.xpose.msra.mxu0 0
        %2211 = vmatprep.subr.bf16.mxu0 0
        %2212 = vmatpush1.bf16.xpose.msra.mxu0 0
        %2213 = vmatprep.subr.bf16.mxu0 0
        %2214 = vmatpush1.bf16.xpose.msra.mxu0 0
        %2215 = vmatprep.subr.bf16.mxu0 0
        %2216 = vmatpush1.bf16.xpose.msra.mxu0 0
        %2217 = vmatprep.subr.bf16.mxu0 0
        %2218 = vmatpush1.bf16.xpose.msra.mxu0 0
        %2219 = vmatprep.subr.bf16.mxu0 0
        %2220 = vmatpush1.bf16.xpose.msra.mxu0 0
        %2221 = vmatprep.subr.bf16.mxu0 0
        %2222 = vmatpush1.bf16.xpose.msra.mxu0 0
        %2223 = vmatprep.mubr.bf16.mxu0 0
        %2224 = vmatmul.mubr.bf16.gmra.mrb[0].mxu0 %v2156
        %v2225 = vpop.f32.mrb[0].mxu0
        %v2226 = vadd.f32 0.0, %v2225
        %v2227 = vpop.f32.mrb[0].mxu0
        %v2228 = vpop.f32.mrb[0].mxu0
        %v2229 = vadd.f32 0.0, %v2228
        %v2230 = vpop.f32.mrb[0].mxu0
        %2231 = vmatprep.mubr.bf16.mxu0 0
        %2232 = vmatmul.mubr.bf16.gmra.mrb[0].mxu0 %v2159
        %v2233 = vpop.f32.mrb[0].mxu0
        %v2234 = vadd.f32 0.0, %v2233
        %v2235 = vpop.f32.mrb[0].mxu0
        %v2236 = vpop.f32.mrb[0].mxu0
        %v2237 = vadd.f32 0.0, %v2236
        %v2238 = vpop.f32.mrb[0].mxu0
        %2239 = vmatprep.mubr.bf16.mxu0 0
        %2240 = vmatmul.mubr.bf16.gmra.mrb[0].mxu0 %v2162
        %v2241 = vpop.f32.mrb[0].mxu0
        %v2242 = vadd.f32 0.0, %v2241
        %v2243 = vpop.f32.mrb[0].mxu0
        %v2244 = vpop.f32.mrb[0].mxu0
        %v2245 = vadd.f32 0.0, %v2244
        %v2246 = vpop.f32.mrb[0].mxu0
        %2247 = vmatprep.mubr.bf16.mxu0 0
        %2248 = vmatmul.mubr.bf16.gmra.mrb[0].mxu0 %v2165
        %v2249 = vpop.f32.mrb[0].mxu0
        %v2250 = vadd.f32 0.0, %v2249
        %v2251 = vpop.f32.mrb[0].mxu0
        %v2252 = vpop.f32.mrb[0].mxu0
        %v2253 = vadd.f32 0.0, %v2252
        %v2254 = vpop.f32.mrb[0].mxu0
        %2255 = vdwg.mxu0
        %2256 = vmax.xlane.f32.xlu0 %v2226
        %v2257 = vpop.xlane.xlu0 %2256
        %2258 = vmax.xlane.f32.xlu0 %v2229
        %v2259 = vpop.xlane.xlu0 %2258
        %2260 = vmax.xlane.f32.xlu0 %v2234
        %v2261 = vpop.xlane.xlu0 %2260
        %2262 = vmax.xlane.f32.xlu0 %v2237
        %v2263 = vpop.xlane.xlu0 %2262
        %2264 = vmax.xlane.f32.xlu0 %v2242
        %v2265 = vpop.xlane.xlu0 %2264
        %2266 = vmax.xlane.f32.xlu0 %v2245
        %v2267 = vpop.xlane.xlu0 %2266
        %2268 = vmax.xlane.f32.xlu0 %v2250
        %v2269 = vpop.xlane.xlu0 %2268
        %2270 = vmax.xlane.f32.xlu0 %v2253
        %v2271 = vpop.xlane.xlu0 %2270
        %v2272 = vsub.f32 %v2226, %v2257
        %v2273 = vsub.f32 %v2229, %v2259
        %v2274 = vsub.f32 %v2234, %v2261
        %v2275 = vsub.f32 %v2237, %v2263
        %v2276 = vsub.f32 %v2242, %v2265
        %v2277 = vsub.f32 %v2245, %v2267
        %v2278 = vsub.f32 %v2250, %v2269
        %v2279 = vsub.f32 %v2253, %v2271
        %v2280 = vmul.f32 %v2272, 1.442695
        %v2281 = vpow.pop %v2280
        %v2282 = vmul.f32 %v2273, 1.442695
        %v2283 = vpow.pop %v2282
        %v2284 = vmul.f32 %v2274, 1.442695
        %v2285 = vpow.pop %v2284
        %v2286 = vmul.f32 %v2275, 1.442695
        %v2287 = vpow.pop %v2286
        %v2288 = vmul.f32 %v2276, 1.442695
        %v2289 = vpow.pop %v2288
        %v2290 = vmul.f32 %v2277, 1.442695
        %v2291 = vpow.pop %v2290
        %v2292 = vmul.f32 %v2278, 1.442695
        %v2293 = vpow.pop %v2292
        %v2294 = vmul.f32 %v2279, 1.442695
        %v2295 = vpow.pop %v2294
        %2296 = vadd.xlane.f32.xlu0 %v2281
        %v2297 = vpop.xlane.xlu0 %2296
        %2298 = vadd.xlane.f32.xlu0 %v2283
        %v2299 = vpop.xlane.xlu0 %2298
        %2300 = vadd.xlane.f32.xlu0 %v2285
        %v2301 = vpop.xlane.xlu0 %2300
        %2302 = vadd.xlane.f32.xlu0 %v2287
        %v2303 = vpop.xlane.xlu0 %2302
        %2304 = vadd.xlane.f32.xlu0 %v2289
        %v2305 = vpop.xlane.xlu0 %2304
        %2306 = vadd.xlane.f32.xlu0 %v2291
        %v2307 = vpop.xlane.xlu0 %2306
        %2308 = vadd.xlane.f32.xlu0 %v2293
        %v2309 = vpop.xlane.xlu0 %2308
        %2310 = vadd.xlane.f32.xlu0 %v2295
        %v2311 = vpop.xlane.xlu0 %2310
        %v2312 = vrcp.pop %v2297
        %v2313 = vrcp.pop %v2299
        %v2314 = vrcp.pop %v2301
        %v2315 = vrcp.pop %v2303
        %v2316 = vrcp.pop %v2305
        %v2317 = vrcp.pop %v2307
        %v2318 = vrcp.pop %v2309
        %v2319 = vrcp.pop %v2311
        %v2320 = vmul.f32 %v2281, %v2312
        %v2321 = vmul.f32 %v2283, %v2313
        %v2322 = vmul.f32 %v2285, %v2314
        %v2323 = vmul.f32 %v2287, %v2315
        %v2324 = vmul.f32 %v2289, %v2316
        %v2325 = vmul.f32 %v2291, %v2317
        %v2326 = vmul.f32 %v2293, %v2318
        %v2327 = vmul.f32 %v2295, %v2319
        %v2328 = vpack.c.bf16 %v2321, %v2320
        %v2329 = vpack.c.bf16 %v2323, %v2322
        %v2330 = vpack.c.bf16 %v2325, %v2324
        %v2331 = vpack.c.bf16 %v2327, %v2326
        %2332 = vrot.lane.b32.xlu0 %v1273, 32
        %v2333 = vpop.permute.xlu0 %2332
        %2334 = vrot.lane.b32.xlu0 %v1275, 32
        %v2335 = vpop.permute.xlu0 %2334
        %2336 = vrot.lane.b32.xlu0 %v1277, 32
        %v2337 = vpop.permute.xlu0 %2336
        %2338 = vrot.lane.b32.xlu0 %v1279, 32
        %v2339 = vpop.permute.xlu0 %2338
        %2340 = vrot.lane.b32.xlu0 %v1281, 32
        %v2341 = vpop.permute.xlu0 %2340
        %2342 = vrot.lane.b32.xlu0 %v1283, 32
        %v2343 = vpop.permute.xlu0 %2342
        %2344 = vrot.lane.b32.xlu0 %v1285, 32
        %v2345 = vpop.permute.xlu0 %2344
        %2346 = vrot.lane.b32.xlu0 %v1287, 32
        %v2347 = vpop.permute.xlu0 %2346
        %2356 = vmatprep.subr.bf16.mxu0 0
        %2357 = vmatpush1.bf16.msra.mxu0 %v2333
        %2358 = vmatprep.subr.bf16.mxu0 0
        %2359 = vmatpush1.bf16.msra.mxu0 %v2335
        %2360 = vmatprep.subr.bf16.mxu0 0
        %2361 = vmatpush1.bf16.msra.mxu0 %v2337
        %2362 = vmatprep.subr.bf16.mxu0 0
        %2363 = vmatpush1.bf16.msra.mxu0 %v2339
        %2364 = vmatprep.subr.bf16.mxu0 0
        %2365 = vmatpush1.bf16.msra.mxu0 %v2341
        %2366 = vmatprep.subr.bf16.mxu0 0
        %2367 = vmatpush1.bf16.msra.mxu0 %v2343
        %2368 = vmatprep.subr.bf16.mxu0 0
        %2369 = vmatpush1.bf16.msra.mxu0 %v2345
        %2370 = vmatprep.subr.bf16.mxu0 0
        %2371 = vmatpush1.bf16.msra.mxu0 %v2347
        %2372 = vmatprep.subr.bf16.mxu0 0
        %2373 = vmatpush1.bf16.msra.mxu0 0
        %2374 = vmatprep.subr.bf16.mxu0 0
        %2375 = vmatpush1.bf16.msra.mxu0 0
        %2376 = vmatprep.subr.bf16.mxu0 0
        %2377 = vmatpush1.bf16.msra.mxu0 0
        %2378 = vmatprep.subr.bf16.mxu0 0
        %2379 = vmatpush1.bf16.msra.mxu0 0
        %2380 = vmatprep.subr.bf16.mxu0 0
        %2381 = vmatpush1.bf16.msra.mxu0 0
        %2382 = vmatprep.subr.bf16.mxu0 0
        %2383 = vmatpush1.bf16.msra.mxu0 0
        %2384 = vmatprep.subr.bf16.mxu0 0
        %2385 = vmatpush1.bf16.msra.mxu0 0
        %2386 = vmatprep.subr.bf16.mxu0 0
        %2387 = vmatpush1.bf16.msra.mxu0 0
        %2388 = vmatprep.mubr.bf16.mxu0 0
        %2389 = vmatmul.mubr.bf16.gmra.mrb[0].mxu0 %v2328
        %v2390 = vpop.f32.mrb[0].mxu0
        %v2391 = vadd.f32 0.0, %v2390
        %v2392 = vpop.f32.mrb[0].mxu0
        %v2393 = vpop.f32.mrb[0].mxu0
        %v2394 = vadd.f32 0.0, %v2393
        %v2395 = vpop.f32.mrb[0].mxu0
        %2396 = vmatprep.mubr.bf16.mxu0 0
        %2397 = vmatmul.mubr.bf16.gmra.mrb[0].mxu0 %v2329
        %v2398 = vpop.f32.mrb[0].mxu0
        %v2399 = vadd.f32 0.0, %v2398
        %v2400 = vpop.f32.mrb[0].mxu0
        %v2401 = vpop.f32.mrb[0].mxu0
        %v2402 = vadd.f32 0.0, %v2401
        %v2403 = vpop.f32.mrb[0].mxu0
        %2404 = vmatprep.mubr.bf16.mxu0 0
        %2405 = vmatmul.mubr.bf16.gmra.mrb[0].mxu0 %v2330
        %v2406 = vpop.f32.mrb[0].mxu0
        %v2407 = vadd.f32 0.0, %v2406
        %v2408 = vpop.f32.mrb[0].mxu0
        %v2409 = vpop.f32.mrb[0].mxu0
        %v2410 = vadd.f32 0.0, %v2409
        %v2411 = vpop.f32.mrb[0].mxu0
        %2412 = vmatprep.mubr.bf16.mxu0 0
        %2413 = vmatmul.mubr.bf16.gmra.mrb[0].mxu0 %v2331
        %v2414 = vpop.f32.mrb[0].mxu0
        %v2415 = vadd.f32 0.0, %v2414
        %v2416 = vpop.f32.mrb[0].mxu0
        %v2417 = vpop.f32.mrb[0].mxu0
        %v2418 = vadd.f32 0.0, %v2417
        %v2419 = vpop.f32.mrb[0].mxu0
        %2420 = vdwg.mxu0
        %2429 = vrot.lane.b32.xlu0 %v1811, 32
        %v2430 = vpop.permute.xlu0 %2429
        %2431 = vrot.lane.b32.xlu0 %v1814, 32
        %v2432 = vpop.permute.xlu0 %2431
        %2433 = vrot.lane.b32.xlu0 %v1819, 32
        %v2434 = vpop.permute.xlu0 %2433
        %2435 = vrot.lane.b32.xlu0 %v1822, 32
        %v2436 = vpop.permute.xlu0 %2435
        %2437 = vrot.lane.b32.xlu0 %v1827, 32
        %v2438 = vpop.permute.xlu0 %2437
        %2439 = vrot.lane.b32.xlu0 %v1830, 32
        %v2440 = vpop.permute.xlu0 %2439
        %2441 = vrot.lane.b32.xlu0 %v1835, 32
        %v2442 = vpop.permute.xlu0 %2441
        %2443 = vrot.lane.b32.xlu0 %v1838, 32
        %v2444 = vpop.permute.xlu0 %2443
        %2461 = vrot.lane.b32.xlu0 %v2101, 64
        %v2462 = vpop.permute.xlu0 %2461
        %2463 = vrot.lane.b32.xlu0 %v2104, 64
        %v2464 = vpop.permute.xlu0 %2463
        %2465 = vrot.lane.b32.xlu0 %v2109, 64
        %v2466 = vpop.permute.xlu0 %2465
        %2467 = vrot.lane.b32.xlu0 %v2112, 64
        %v2468 = vpop.permute.xlu0 %2467
        %2469 = vrot.lane.b32.xlu0 %v2117, 64
        %v2470 = vpop.permute.xlu0 %2469
        %2471 = vrot.lane.b32.xlu0 %v2120, 64
        %v2472 = vpop.permute.xlu0 %2471
        %2473 = vrot.lane.b32.xlu0 %v2125, 64
        %v2474 = vpop.permute.xlu0 %2473
        %2475 = vrot.lane.b32.xlu0 %v2128, 64
        %v2476 = vpop.permute.xlu0 %2475
        %2493 = vrot.lane.b32.xlu0 %v2391, 96
        %v2494 = vpop.permute.xlu0 %2493
        %2495 = vrot.lane.b32.xlu0 %v2394, 96
        %v2496 = vpop.permute.xlu0 %2495
        %2497 = vrot.lane.b32.xlu0 %v2399, 96
        %v2498 = vpop.permute.xlu0 %2497
        %2499 = vrot.lane.b32.xlu0 %v2402, 96
        %v2500 = vpop.permute.xlu0 %2499
        %2501 = vrot.lane.b32.xlu0 %v2407, 96
        %v2502 = vpop.permute.xlu0 %2501
        %2503 = vrot.lane.b32.xlu0 %v2410, 96
        %v2504 = vpop.permute.xlu0 %2503
        %2505 = vrot.lane.b32.xlu0 %v2415, 96
        %v2506 = vpop.permute.xlu0 %2505
        %2507 = vrot.lane.b32.xlu0 %v2418, 96
        %v2508 = vpop.permute.xlu0 %2507
        %v2517 = vsel %vm1288, %v1501, %v2430
        %v2518 = vsel %vm1288, %v1504, %v2432
        %v2519 = vsel %vm1288, %v1509, %v2434
        %v2520 = vsel %vm1288, %v1512, %v2436
        %v2521 = vsel %vm1288, %v1517, %v2438
        %v2522 = vsel %vm1288, %v1520, %v2440
        %v2523 = vsel %vm1288, %v1525, %v2442
        %v2524 = vsel %vm1288, %v1528, %v2444
        %vm2525 = vcmask 523264
        %v2526 = vsel %vm2525, %v2517, %v2462
        %v2527 = vsel %vm2525, %v2518, %v2464
        %v2528 = vsel %vm2525, %v2519, %v2466
        %v2529 = vsel %vm2525, %v2520, %v2468
        %v2530 = vsel %vm2525, %v2521, %v2470
        %v2531 = vsel %vm2525, %v2522, %v2472
        %v2532 = vsel %vm2525, %v2523, %v2474
        %v2533 = vsel %vm2525, %v2524, %v2476
        %vm2534 = vcmask 785408
        %v2535 = vsel %vm2534, %v2526, %v2494
        %v2536 = vsel %vm2534, %v2527, %v2496
        %v2537 = vsel %vm2534, %v2528, %v2498
        %v2538 = vsel %vm2534, %v2529, %v2500
        %v2539 = vsel %vm2534, %v2530, %v2502
        %v2540 = vsel %vm2534, %v2531, %v2504
        %v2541 = vsel %vm2534, %v2532, %v2506
        %v2542 = vsel %vm2534, %v2533, %v2508
        %v2543 = vpack.c.bf16 %v2536, %v2535
        %v2544 = vpack.c.bf16 %v2538, %v2537
        %v2545 = vpack.c.bf16 %v2540, %v2539
        %v2546 = vpack.c.bf16 %v2542, %v2541
        %v2547 = vld [vmem:[#allocation10] sm:$0xf]
        %v2548 = vld [vmem:[#allocation10 + $0x4] sm:$0xf]
        %v2549 = vld [vmem:[#allocation10 + $0x8] sm:$0xf]
        %v2550 = vld [vmem:[#allocation10 + $0xc] sm:$0xf]
        %v2551 = vld [vmem:[#allocation10 + $0x10] sm:$0xf]
        %v2552 = vld [vmem:[#allocation10 + $0x14] sm:$0xf]
        %v2553 = vld [vmem:[#allocation10 + $0x18] sm:$0xf]
        %v2554 = vld [vmem:[#allocation10 + $0x1c] sm:$0xf]
        %v2555 = vld [vmem:[#allocation10 + $0x20] sm:$0xf]
        %v2556 = vld [vmem:[#allocation10 + $0x24] sm:$0xf]
        %v2557 = vld [vmem:[#allocation10 + $0x28] sm:$0xf]
        %v2558 = vld [vmem:[#allocation10 + $0x2c] sm:$0xf]
        %v2559 = vld [vmem:[#allocation10 + $0x30] sm:$0xf]
        %v2560 = vld [vmem:[#allocation10 + $0x34] sm:$0xf]
        %v2561 = vld [vmem:[#allocation10 + $0x38] sm:$0xf]
        %v2562 = vld [vmem:[#allocation10 + $0x3c] sm:$0xf]
        %v2563 = vld [vmem:[%s8] sm:$0x1]
        %v2565 = vlaneseq
        %v2566 = vshrl.u32 %v2565, 7
        %v2567 = vsub.s32 0, %v2566
        %v2568 = vrot.slane %v2563, %v2567
        %v2586 = vunpack.c.l.b16 %v2547
        %v2587 = vunpack.c.l.b16 %v2548
        %v2588 = vunpack.c.l.b16 %v2549
        %v2589 = vunpack.c.l.b16 %v2550
        %v2590 = vunpack.c.l.b16 %v2551
        %v2591 = vunpack.c.l.b16 %v2552
        %v2592 = vunpack.c.l.b16 %v2553
        %v2593 = vunpack.c.l.b16 %v2554
        %v2594 = vunpack.c.l.b16 %v2555
        %v2595 = vunpack.c.l.b16 %v2556
        %v2596 = vunpack.c.l.b16 %v2557
        %v2597 = vunpack.c.l.b16 %v2558
        %v2598 = vunpack.c.l.b16 %v2559
        %v2599 = vunpack.c.l.b16 %v2560
        %v2600 = vunpack.c.l.b16 %v2561
        %v2601 = vunpack.c.l.b16 %v2562
        %v2602 = vpack.c.b16 %v2587, %v2586
        %v2603 = vpack.c.b16 %v2589, %v2588
        %v2604 = vpack.c.b16 %v2591, %v2590
        %v2605 = vpack.c.b16 %v2593, %v2592
        %v2606 = vpack.c.b16 %v2595, %v2594
        %v2607 = vpack.c.b16 %v2597, %v2596
        %v2608 = vpack.c.b16 %v2599, %v2598
        %v2609 = vpack.c.b16 %v2601, %v2600
        %2618 = vmatprep.subr.bf16.mxu0 0
        %2619 = vmatpush1.bf16.msra.mxu0 %v2602
        %2620 = vmatprep.subr.bf16.mxu0 0
        %2621 = vmatpush1.bf16.msra.mxu0 %v2603
        %2622 = vmatprep.subr.bf16.mxu0 0
        %2623 = vmatpush1.bf16.msra.mxu0 %v2604
        %2624 = vmatprep.subr.bf16.mxu0 0
        %2625 = vmatpush1.bf16.msra.mxu0 %v2605
        %2626 = vmatprep.subr.bf16.mxu0 0
        %2627 = vmatpush1.bf16.msra.mxu0 %v2606
        %2628 = vmatprep.subr.bf16.mxu0 0
        %2629 = vmatpush1.bf16.msra.mxu0 %v2607
        %2630 = vmatprep.subr.bf16.mxu0 0
        %2631 = vmatpush1.bf16.msra.mxu0 %v2608
        %2632 = vmatprep.subr.bf16.mxu0 0
        %2633 = vmatpush1.bf16.msra.mxu0 %v2609
        %2634 = vmatprep.subr.bf16.mxu0 0
        %2635 = vmatpush1.bf16.msra.mxu0 0
        %2636 = vmatprep.subr.bf16.mxu0 0
        %2637 = vmatpush1.bf16.msra.mxu0 0
        %2638 = vmatprep.subr.bf16.mxu0 0
        %2639 = vmatpush1.bf16.msra.mxu0 0
        %2640 = vmatprep.subr.bf16.mxu0 0
        %2641 = vmatpush1.bf16.msra.mxu0 0
        %2642 = vmatprep.subr.bf16.mxu0 0
        %2643 = vmatpush1.bf16.msra.mxu0 0
        %2644 = vmatprep.subr.bf16.mxu0 0
        %2645 = vmatpush1.bf16.msra.mxu0 0
        %2646 = vmatprep.subr.bf16.mxu0 0
        %2647 = vmatpush1.bf16.msra.mxu0 0
        %2648 = vmatprep.subr.bf16.mxu0 0
        %2649 = vmatpush1.bf16.msra.mxu0 0
        %2650 = vmatprep.mubr.bf16.mxu0 0
        %2651 = vmatmul.mubr.bf16.gmra.mrb[0].mxu0 %v2543
        %v2652 = vpop.f32.mrb[0].mxu0
        %v2653 = vadd.f32 %v2568, %v2652
        %v2654 = vpop.f32.mrb[0].mxu0
        %v2655 = vpop.f32.mrb[0].mxu0
        %v2656 = vadd.f32 %v2568, %v2655
        %v2657 = vpop.f32.mrb[0].mxu0
        %2658 = vmatprep.mubr.bf16.mxu0 0
        %2659 = vmatmul.mubr.bf16.gmra.mrb[0].mxu0 %v2544
        %v2660 = vpop.f32.mrb[0].mxu0
        %v2661 = vadd.f32 %v2568, %v2660
        %v2662 = vpop.f32.mrb[0].mxu0
        %v2663 = vpop.f32.mrb[0].mxu0
        %v2664 = vadd.f32 %v2568, %v2663
        %v2665 = vpop.f32.mrb[0].mxu0
        %2666 = vmatprep.mubr.bf16.mxu0 0
        %2667 = vmatmul.mubr.bf16.gmra.mrb[0].mxu0 %v2545
        %v2668 = vpop.f32.mrb[0].mxu0
        %v2669 = vadd.f32 %v2568, %v2668
        %v2670 = vpop.f32.mrb[0].mxu0
        %v2671 = vpop.f32.mrb[0].mxu0
        %v2672 = vadd.f32 %v2568, %v2671
        %v2673 = vpop.f32.mrb[0].mxu0
        %2674 = vmatprep.mubr.bf16.mxu0 0
        %2675 = vmatmul.mubr.bf16.gmra.mrb[0].mxu0 %v2546
        %v2676 = vpop.f32.mrb[0].mxu0
        %v2677 = vadd.f32 %v2568, %v2676
        %v2678 = vpop.f32.mrb[0].mxu0
        %v2679 = vpop.f32.mrb[0].mxu0
        %v2680 = vadd.f32 %v2568, %v2679
        %v2681 = vpop.f32.mrb[0].mxu0
        %2682 = vdwg.mxu0
        %v2683 = vadd.f32 %v2653, %v1116
        %v2684 = vadd.f32 %v2656, %v1117
        %v2685 = vadd.f32 %v2661, %v1118
        %v2686 = vadd.f32 %v2664, %v1119
        %v2687 = vadd.f32 %v2669, %v1120
        %v2688 = vadd.f32 %v2672, %v1121
        %v2689 = vadd.f32 %v2677, %v1122
        %v2690 = vadd.f32 %v2680, %v1123
        %v2691 = vld [vmem:[%s9] sm:$0x1]
        %v2692 = vld [vmem:[%s10] sm:$0x1]
        %2693 = vadd.xlane.f32.xlu0 %v2683
        %v2694 = vpop.xlane.xlu0 %2693
        %2695 = vadd.xlane.f32.xlu0 %v2684
        %v2696 = vpop.xlane.xlu0 %2695
        %2697 = vadd.xlane.f32.xlu0 %v2685
        %v2698 = vpop.xlane.xlu0 %2697
        %2699 = vadd.xlane.f32.xlu0 %v2686
        %v2700 = vpop.xlane.xlu0 %2699
        %2701 = vadd.xlane.f32.xlu0 %v2687
        %v2702 = vpop.xlane.xlu0 %2701
        %2703 = vadd.xlane.f32.xlu0 %v2688
        %v2704 = vpop.xlane.xlu0 %2703
        %2705 = vadd.xlane.f32.xlu0 %v2689
        %v2706 = vpop.xlane.xlu0 %2705
        %2707 = vadd.xlane.f32.xlu0 %v2690
        %v2708 = vpop.xlane.xlu0 %2707
        %v2709 = vrcp.pop 128.0
        %v2710 = vmul.f32 %v2694, %v2709
        %v2711 = vmul.f32 %v2696, %v2709
        %v2712 = vmul.f32 %v2698, %v2709
        %v2713 = vmul.f32 %v2700, %v2709
        %v2714 = vmul.f32 %v2702, %v2709
        %v2715 = vmul.f32 %v2704, %v2709
        %v2716 = vmul.f32 %v2706, %v2709
        %v2717 = vmul.f32 %v2708, %v2709
        %v2718 = vsub.f32 %v2683, %v2710
        %v2719 = vsub.f32 %v2684, %v2711
        %v2720 = vsub.f32 %v2685, %v2712
        %v2721 = vsub.f32 %v2686, %v2713
        %v2722 = vsub.f32 %v2687, %v2714
        %v2723 = vsub.f32 %v2688, %v2715
        %v2724 = vsub.f32 %v2689, %v2716
        %v2725 = vsub.f32 %v2690, %v2717
        %v2726 = vmul.f32 %v2718, %v2718
        %v2727 = vmul.f32 %v2719, %v2719
        %v2728 = vmul.f32 %v2720, %v2720
        %v2729 = vmul.f32 %v2721, %v2721
        %v2730 = vmul.f32 %v2722, %v2722
        %v2731 = vmul.f32 %v2723, %v2723
        %v2732 = vmul.f32 %v2724, %v2724
        %v2733 = vmul.f32 %v2725, %v2725
        %2734 = vadd.xlane.f32.xlu0 %v2726
        %v2735 = vpop.xlane.xlu0 %2734
        %2736 = vadd.xlane.f32.xlu0 %v2727
        %v2737 = vpop.xlane.xlu0 %2736
        %2738 = vadd.xlane.f32.xlu0 %v2728
        %v2739 = vpop.xlane.xlu0 %2738
        %2740 = vadd.xlane.f32.xlu0 %v2729
        %v2741 = vpop.xlane.xlu0 %2740
        %2742 = vadd.xlane.f32.xlu0 %v2730
        %v2743 = vpop.xlane.xlu0 %2742
        %2744 = vadd.xlane.f32.xlu0 %v2731
        %v2745 = vpop.xlane.xlu0 %2744
        %2746 = vadd.xlane.f32.xlu0 %v2732
        %v2747 = vpop.xlane.xlu0 %2746
        %2748 = vadd.xlane.f32.xlu0 %v2733
        %v2749 = vpop.xlane.xlu0 %2748
        %v2750 = vmul.f32 %v2735, %v2709
        %v2751 = vmul.f32 %v2737, %v2709
        %v2752 = vmul.f32 %v2739, %v2709
        %v2753 = vmul.f32 %v2741, %v2709
        %v2754 = vmul.f32 %v2743, %v2709
        %v2755 = vmul.f32 %v2745, %v2709
        %v2756 = vmul.f32 %v2747, %v2709
        %v2757 = vmul.f32 %v2749, %v2709
        %v2758 = vadd.f32 %v2750, 1e-06
        %v2759 = vadd.f32 %v2751, 1e-06
        %v2760 = vadd.f32 %v2752, 1e-06
        %v2761 = vadd.f32 %v2753, 1e-06
        %v2762 = vadd.f32 %v2754, 1e-06
        %v2763 = vadd.f32 %v2755, 1e-06
        %v2764 = vadd.f32 %v2756, 1e-06
        %v2765 = vadd.f32 %v2757, 1e-06
        %v2766 = vrsqrt.pop %v2758
        %v2767 = vrsqrt.pop %v2759
        %v2768 = vrsqrt.pop %v2760
        %v2769 = vrsqrt.pop %v2761
        %v2770 = vrsqrt.pop %v2762
        %v2771 = vrsqrt.pop %v2763
        %v2772 = vrsqrt.pop %v2764
        %v2773 = vrsqrt.pop %v2765
        %v2774 = vmul.f32 %v2718, %v2766
        %v2775 = vmul.f32 %v2719, %v2767
        %v2776 = vmul.f32 %v2720, %v2768
        %v2777 = vmul.f32 %v2721, %v2769
        %v2778 = vmul.f32 %v2722, %v2770
        %v2779 = vmul.f32 %v2723, %v2771
        %v2780 = vmul.f32 %v2724, %v2772
        %v2781 = vmul.f32 %v2725, %v2773
        %v2783 = vlaneseq
        %v2784 = vshrl.u32 %v2783, 7
        %v2785 = vsub.s32 0, %v2784
        %v2786 = vrot.slane %v2691, %v2785
        %v2788 = vmul.f32 %v2774, %v2786
        %v2789 = vmul.f32 %v2775, %v2786
        %v2790 = vmul.f32 %v2776, %v2786
        %v2791 = vmul.f32 %v2777, %v2786
        %v2792 = vmul.f32 %v2778, %v2786
        %v2793 = vmul.f32 %v2779, %v2786
        %v2794 = vmul.f32 %v2780, %v2786
        %v2795 = vmul.f32 %v2781, %v2786
        %v2797 = vlaneseq
        %v2798 = vshrl.u32 %v2797, 7
        %v2799 = vsub.s32 0, %v2798
        %v2800 = vrot.slane %v2692, %v2799
        %v2802 = vadd.f32 %v2788, %v2800
        %v2803 = vadd.f32 %v2789, %v2800
        %v2804 = vadd.f32 %v2790, %v2800
        %v2805 = vadd.f32 %v2791, %v2800
        %v2806 = vadd.f32 %v2792, %v2800
        %v2807 = vadd.f32 %v2793, %v2800
        %v2808 = vadd.f32 %v2794, %v2800
        %v2809 = vadd.f32 %v2795, %v2800
        %v2810 = vpack.c.bf16 %v2803, %v2802
        %v2811 = vpack.c.bf16 %v2805, %v2804
        %v2812 = vpack.c.bf16 %v2807, %v2806
        %v2813 = vpack.c.bf16 %v2809, %v2808
        %v2814 = vld [vmem:[#allocation12] sm:$0xff]
        %v2815 = vld [vmem:[#allocation12 + $0x8] sm:$0xff]
        %v2816 = vld [vmem:[#allocation12 + $0x10] sm:$0xff]
        %v2817 = vld [vmem:[#allocation12 + $0x18] sm:$0xff]
        %v2818 = vld [vmem:[#allocation12 + $0x20] sm:$0xff]
        %v2819 = vld [vmem:[#allocation12 + $0x28] sm:$0xff]
        %v2820 = vld [vmem:[#allocation12 + $0x30] sm:$0xff]
        %v2821 = vld [vmem:[#allocation12 + $0x38] sm:$0xff]
        %v2822 = vld [vmem:[#allocation12 + $0x40] sm:$0xff]
        %v2823 = vld [vmem:[#allocation12 + $0x48] sm:$0xff]
        %v2824 = vld [vmem:[#allocation12 + $0x50] sm:$0xff]
        %v2825 = vld [vmem:[#allocation12 + $0x58] sm:$0xff]
        %v2826 = vld [vmem:[#allocation12 + $0x60] sm:$0xff]
        %v2827 = vld [vmem:[#allocation12 + $0x68] sm:$0xff]
        %v2828 = vld [vmem:[#allocation12 + $0x70] sm:$0xff]
        %v2829 = vld [vmem:[#allocation12 + $0x78] sm:$0xff]
        %v2830 = vld [vmem:[%s12] sm:$0x3]
        %v2832 = vlaneseq
        %v2833 = vshrl.u32 %v2832, 7
        %v2834 = vsub.s32 0, %v2833
        %v2835 = vrot.slane %v2830, %v2834
        %v2836 = vlaneseq
        %v2837 = vshrl.u32 %v2836, 7
        %v2838 = vsub.s32 1, %v2837
        %v2839 = vrot.slane %v2830, %v2838
        %v2858 = vunpack.c.l.b16 %v2814
        %v2859 = vunpack.c.h.b16 %v2814
        %v2860 = vunpack.c.l.b16 %v2815
        %v2861 = vunpack.c.h.b16 %v2815
        %v2862 = vunpack.c.l.b16 %v2816
        %v2863 = vunpack.c.h.b16 %v2816
        %v2864 = vunpack.c.l.b16 %v2817
        %v2865 = vunpack.c.h.b16 %v2817
        %v2866 = vunpack.c.l.b16 %v2818
        %v2867 = vunpack.c.h.b16 %v2818
        %v2868 = vunpack.c.l.b16 %v2819
        %v2869 = vunpack.c.h.b16 %v2819
        %v2870 = vunpack.c.l.b16 %v2820
        %v2871 = vunpack.c.h.b16 %v2820
        %v2872 = vunpack.c.l.b16 %v2821
        %v2873 = vunpack.c.h.b16 %v2821
        %v2874 = vunpack.c.l.b16 %v2822
        %v2875 = vunpack.c.h.b16 %v2822
        %v2876 = vunpack.c.l.b16 %v2823
        %v2877 = vunpack.c.h.b16 %v2823
        %v2878 = vunpack.c.l.b16 %v2824
        %v2879 = vunpack.c.h.b16 %v2824
        %v2880 = vunpack.c.l.b16 %v2825
        %v2881 = vunpack.c.h.b16 %v2825
        %v2882 = vunpack.c.l.b16 %v2826
        %v2883 = vunpack.c.h.b16 %v2826
        %v2884 = vunpack.c.l.b16 %v2827
        %v2885 = vunpack.c.h.b16 %v2827
        %v2886 = vunpack.c.l.b16 %v2828
        %v2887 = vunpack.c.h.b16 %v2828
        %v2888 = vunpack.c.l.b16 %v2829
        %v2889 = vunpack.c.h.b16 %v2829
        %v2890 = vpack.c.b16 %v2860, %v2858
        %v2891 = vpack.c.b16 %v2861, %v2859
        %v2892 = vpack.c.b16 %v2864, %v2862
        %v2893 = vpack.c.b16 %v2865, %v2863
        %v2894 = vpack.c.b16 %v2868, %v2866
        %v2895 = vpack.c.b16 %v2869, %v2867
        %v2896 = vpack.c.b16 %v2872, %v2870
        %v2897 = vpack.c.b16 %v2873, %v2871
        %v2898 = vpack.c.b16 %v2876, %v2874
        %v2899 = vpack.c.b16 %v2877, %v2875
        %v2900 = vpack.c.b16 %v2880, %v2878
        %v2901 = vpack.c.b16 %v2881, %v2879
        %v2902 = vpack.c.b16 %v2884, %v2882
        %v2903 = vpack.c.b16 %v2885, %v2883
        %v2904 = vpack.c.b16 %v2888, %v2886
        %v2905 = vpack.c.b16 %v2889, %v2887
        %2922 = vmatprep.subr.bf16.mxu0 %v2891
        %2923 = vmatpush1.bf16.msra.mxu0 %v2890
        %2924 = vmatprep.subr.bf16.mxu0 %v2893
        %2925 = vmatpush1.bf16.msra.mxu0 %v2892
        %2926 = vmatprep.subr.bf16.mxu0 %v2895
        %2927 = vmatpush1.bf16.msra.mxu0 %v2894
        %2928 = vmatprep.subr.bf16.mxu0 %v2897
        %2929 = vmatpush1.bf16.msra.mxu0 %v2896
        %2930 = vmatprep.subr.bf16.mxu0 %v2899
        %2931 = vmatpush1.bf16.msra.mxu0 %v2898
        %2932 = vmatprep.subr.bf16.mxu0 %v2901
        %2933 = vmatpush1.bf16.msra.mxu0 %v2900
        %2934 = vmatprep.subr.bf16.mxu0 %v2903
        %2935 = vmatpush1.bf16.msra.mxu0 %v2902
        %2936 = vmatprep.subr.bf16.mxu0 %v2905
        %2937 = vmatpush1.bf16.msra.mxu0 %v2904
        %2938 = vmatprep.subr.bf16.mxu0 0
        %2939 = vmatpush1.bf16.msra.mxu0 0
        %2940 = vmatprep.subr.bf16.mxu0 0
        %2941 = vmatpush1.bf16.msra.mxu0 0
        %2942 = vmatprep.subr.bf16.mxu0 0
        %2943 = vmatpush1.bf16.msra.mxu0 0
        %2944 = vmatprep.subr.bf16.mxu0 0
        %2945 = vmatpush1.bf16.msra.mxu0 0
        %2946 = vmatprep.subr.bf16.mxu0 0
        %2947 = vmatpush1.bf16.msra.mxu0 0
        %2948 = vmatprep.subr.bf16.mxu0 0
        %2949 = vmatpush1.bf16.msra.mxu0 0
        %2950 = vmatprep.subr.bf16.mxu0 0
        %2951 = vmatpush1.bf16.msra.mxu0 0
        %2952 = vmatprep.subr.bf16.mxu0 0
        %2953 = vmatpush1.bf16.msra.mxu0 0
        %2954 = vmatprep.mubr.bf16.mxu0 0
        %2955 = vmatmul.mubr.bf16.gmra.mrb[0].mxu0 %v2810
        %v2956 = vpop.f32.mrb[0].mxu0
        %v2957 = vadd.f32 %v2835, %v2956
        %v2958 = vpop.f32.mrb[0].mxu0
        %v2959 = vadd.f32 %v2839, %v2958
        %v2960 = vpop.f32.mrb[0].mxu0
        %v2961 = vadd.f32 %v2835, %v2960
        %v2962 = vpop.f32.mrb[0].mxu0
        %v2963 = vadd.f32 %v2839, %v2962
        %2964 = vmatprep.mubr.bf16.mxu0 0
        %2965 = vmatmul.mubr.bf16.gmra.mrb[0].mxu0 %v2811
        %v2966 = vpop.f32.mrb[0].mxu0
        %v2967 = vadd.f32 %v2835, %v2966
        %v2968 = vpop.f32.mrb[0].mxu0
        %v2969 = vadd.f32 %v2839, %v2968
        %v2970 = vpop.f32.mrb[0].mxu0
        %v2971 = vadd.f32 %v2835, %v2970
        %v2972 = vpop.f32.mrb[0].mxu0
        %v2973 = vadd.f32 %v2839, %v2972
        %2974 = vmatprep.mubr.bf16.mxu0 0
        %2975 = vmatmul.mubr.bf16.gmra.mrb[0].mxu0 %v2812
        %v2976 = vpop.f32.mrb[0].mxu0
        %v2977 = vadd.f32 %v2835, %v2976
        %v2978 = vpop.f32.mrb[0].mxu0
        %v2979 = vadd.f32 %v2839, %v2978
        %v2980 = vpop.f32.mrb[0].mxu0
        %v2981 = vadd.f32 %v2835, %v2980
        %v2982 = vpop.f32.mrb[0].mxu0
        %v2983 = vadd.f32 %v2839, %v2982
        %2984 = vmatprep.mubr.bf16.mxu0 0
        %2985 = vmatmul.mubr.bf16.gmra.mrb[0].mxu0 %v2813
        %v2986 = vpop.f32.mrb[0].mxu0
        %v2987 = vadd.f32 %v2835, %v2986
        %v2988 = vpop.f32.mrb[0].mxu0
        %v2989 = vadd.f32 %v2839, %v2988
        %v2990 = vpop.f32.mrb[0].mxu0
        %v2991 = vadd.f32 %v2835, %v2990
        %v2992 = vpop.f32.mrb[0].mxu0
        %v2993 = vadd.f32 %v2839, %v2992
        %2994 = vdwg.mxu0
        %v2995 = vmul.f32 %v2957, 0.5
        %v2996 = vmul.f32 %v2959, 0.5
        %v2997 = vmul.f32 %v2961, 0.5
        %v2998 = vmul.f32 %v2963, 0.5
        %v2999 = vmul.f32 %v2967, 0.5
        %v3000 = vmul.f32 %v2969, 0.5
        %v3001 = vmul.f32 %v2971, 0.5
        %v3002 = vmul.f32 %v2973, 0.5
        %v3003 = vmul.f32 %v2977, 0.5
        %v3004 = vmul.f32 %v2979, 0.5
        %v3005 = vmul.f32 %v2981, 0.5
        %v3006 = vmul.f32 %v2983, 0.5
        %v3007 = vmul.f32 %v2987, 0.5
        %v3008 = vmul.f32 %v2989, 0.5
        %v3009 = vmul.f32 %v2991, 0.5
        %v3010 = vmul.f32 %v2993, 0.5
        %v3011 = vmul.f32 %v2957, 0.70710677
        %v3012 = vmul.f32 %v2959, 0.70710677
        %v3013 = vmul.f32 %v2961, 0.70710677
        %v3014 = vmul.f32 %v2963, 0.70710677
        %v3015 = vmul.f32 %v2967, 0.70710677
        %v3016 = vmul.f32 %v2969, 0.70710677
        %v3017 = vmul.f32 %v2971, 0.70710677
        %v3018 = vmul.f32 %v2973, 0.70710677
        %v3019 = vmul.f32 %v2977, 0.70710677
        %v3020 = vmul.f32 %v2979, 0.70710677
        %v3021 = vmul.f32 %v2981, 0.70710677
        %v3022 = vmul.f32 %v2983, 0.70710677
        %v3023 = vmul.f32 %v2987, 0.70710677
        %v3024 = vmul.f32 %v2989, 0.70710677
        %v3025 = vmul.f32 %v2991, 0.70710677
        %v3026 = vmul.f32 %v2993, 0.70710677
        %v3027 = verf.f32.pop %v3011
        %v3028 = verf.f32.pop %v3012
        %v3029 = verf.f32.pop %v3013
        %v3030 = verf.f32.pop %v3014
        %v3031 = verf.f32.pop %v3015
        %v3032 = verf.f32.pop %v3016
        %v3033 = verf.f32.pop %v3017
        %v3034 = verf.f32.pop %v3018
        %v3035 = verf.f32.pop %v3019
        %v3036 = verf.f32.pop %v3020
        %v3037 = verf.f32.pop %v3021
        %v3038 = verf.f32.pop %v3022
        %v3039 = verf.f32.pop %v3023
        %v3040 = verf.f32.pop %v3024
        %v3041 = verf.f32.pop %v3025
        %v3042 = verf.f32.pop %v3026
        %v3043 = vadd.f32 %v3027, 1.0
        %v3044 = vadd.f32 %v3028, 1.0
        %v3045 = vadd.f32 %v3029, 1.0
        %v3046 = vadd.f32 %v3030, 1.0
        %v3047 = vadd.f32 %v3031, 1.0
        %v3048 = vadd.f32 %v3032, 1.0
        %v3049 = vadd.f32 %v3033, 1.0
        %v3050 = vadd.f32 %v3034, 1.0
        %v3051 = vadd.f32 %v3035, 1.0
        %v3052 = vadd.f32 %v3036, 1.0
        %v3053 = vadd.f32 %v3037, 1.0
        %v3054 = vadd.f32 %v3038, 1.0
        %v3055 = vadd.f32 %v3039, 1.0
        %v3056 = vadd.f32 %v3040, 1.0
        %v3057 = vadd.f32 %v3041, 1.0
        %v3058 = vadd.f32 %v3042, 1.0
        %v3059 = vmul.f32 %v2995, %v3043
        %v3060 = vmul.f32 %v2996, %v3044
        %v3061 = vmul.f32 %v2997, %v3045
        %v3062 = vmul.f32 %v2998, %v3046
        %v3063 = vmul.f32 %v2999, %v3047
        %v3064 = vmul.f32 %v3000, %v3048
        %v3065 = vmul.f32 %v3001, %v3049
        %v3066 = vmul.f32 %v3002, %v3050
        %v3067 = vmul.f32 %v3003, %v3051
        %v3068 = vmul.f32 %v3004, %v3052
        %v3069 = vmul.f32 %v3005, %v3053
        %v3070 = vmul.f32 %v3006, %v3054
        %v3071 = vmul.f32 %v3007, %v3055
        %v3072 = vmul.f32 %v3008, %v3056
        %v3073 = vmul.f32 %v3009, %v3057
        %v3074 = vmul.f32 %v3010, %v3058
        %v3075 = vpack.c.bf16 %v3061, %v3059
        %v3076 = vpack.c.bf16 %v3062, %v3060
        %v3077 = vpack.c.bf16 %v3065, %v3063
        %v3078 = vpack.c.bf16 %v3066, %v3064
        %v3079 = vpack.c.bf16 %v3069, %v3067
        %v3080 = vpack.c.bf16 %v3070, %v3068
        %v3081 = vpack.c.bf16 %v3073, %v3071
        %v3082 = vpack.c.bf16 %v3074, %v3072
        %v3083 = vld [vmem:[#allocation13] sm:$0xf]
        %v3084 = vld [vmem:[#allocation13 + $0x4] sm:$0xf]
        %v3085 = vld [vmem:[#allocation13 + $0x8] sm:$0xf]
        %v3086 = vld [vmem:[#allocation13 + $0xc] sm:$0xf]
        %v3087 = vld [vmem:[#allocation13 + $0x10] sm:$0xf]
        %v3088 = vld [vmem:[#allocation13 + $0x14] sm:$0xf]
        %v3089 = vld [vmem:[#allocation13 + $0x18] sm:$0xf]
        %v3090 = vld [vmem:[#allocation13 + $0x1c] sm:$0xf]
        %v3091 = vld [vmem:[#allocation13 + $0x20] sm:$0xf]
        %v3092 = vld [vmem:[#allocation13 + $0x24] sm:$0xf]
        %v3093 = vld [vmem:[#allocation13 + $0x28] sm:$0xf]
        %v3094 = vld [vmem:[#allocation13 + $0x2c] sm:$0xf]
        %v3095 = vld [vmem:[#allocation13 + $0x30] sm:$0xf]
        %v3096 = vld [vmem:[#allocation13 + $0x34] sm:$0xf]
        %v3097 = vld [vmem:[#allocation13 + $0x38] sm:$0xf]
        %v3098 = vld [vmem:[#allocation13 + $0x3c] sm:$0xf]
        %v3099 = vld [vmem:[#allocation13 + $0x40] sm:$0xf]
        %v3100 = vld [vmem:[#allocation13 + $0x44] sm:$0xf]
        %v3101 = vld [vmem:[#allocation13 + $0x48] sm:$0xf]
        %v3102 = vld [vmem:[#allocation13 + $0x4c] sm:$0xf]
        %v3103 = vld [vmem:[#allocation13 + $0x50] sm:$0xf]
        %v3104 = vld [vmem:[#allocation13 + $0x54] sm:$0xf]
        %v3105 = vld [vmem:[#allocation13 + $0x58] sm:$0xf]
        %v3106 = vld [vmem:[#allocation13 + $0x5c] sm:$0xf]
        %v3107 = vld [vmem:[#allocation13 + $0x60] sm:$0xf]
        %v3108 = vld [vmem:[#allocation13 + $0x64] sm:$0xf]
        %v3109 = vld [vmem:[#allocation13 + $0x68] sm:$0xf]
        %v3110 = vld [vmem:[#allocation13 + $0x6c] sm:$0xf]
        %v3111 = vld [vmem:[#allocation13 + $0x70] sm:$0xf]
        %v3112 = vld [vmem:[#allocation13 + $0x74] sm:$0xf]
        %v3113 = vld [vmem:[#allocation13 + $0x78] sm:$0xf]
        %v3114 = vld [vmem:[#allocation13 + $0x7c] sm:$0xf]
        %v3115 = vld [vmem:[%s14] sm:$0x1]
        %v3117 = vlaneseq
        %v3118 = vshrl.u32 %v3117, 7
        %v3119 = vsub.s32 0, %v3118
        %v3120 = vrot.slane %v3115, %v3119
        %v3154 = vunpack.c.l.b16 %v3083
        %v3155 = vunpack.c.l.b16 %v3084
        %v3156 = vunpack.c.l.b16 %v3085
        %v3157 = vunpack.c.l.b16 %v3086
        %v3158 = vunpack.c.l.b16 %v3087
        %v3159 = vunpack.c.l.b16 %v3088
        %v3160 = vunpack.c.l.b16 %v3089
        %v3161 = vunpack.c.l.b16 %v3090
        %v3162 = vunpack.c.l.b16 %v3091
        %v3163 = vunpack.c.l.b16 %v3092
        %v3164 = vunpack.c.l.b16 %v3093
        %v3165 = vunpack.c.l.b16 %v3094
        %v3166 = vunpack.c.l.b16 %v3095
        %v3167 = vunpack.c.l.b16 %v3096
        %v3168 = vunpack.c.l.b16 %v3097
        %v3169 = vunpack.c.l.b16 %v3098
        %v3170 = vunpack.c.l.b16 %v3099
        %v3171 = vunpack.c.l.b16 %v3100
        %v3172 = vunpack.c.l.b16 %v3101
        %v3173 = vunpack.c.l.b16 %v3102
        %v3174 = vunpack.c.l.b16 %v3103
        %v3175 = vunpack.c.l.b16 %v3104
        %v3176 = vunpack.c.l.b16 %v3105
        %v3177 = vunpack.c.l.b16 %v3106
        %v3178 = vunpack.c.l.b16 %v3107
        %v3179 = vunpack.c.l.b16 %v3108
        %v3180 = vunpack.c.l.b16 %v3109
        %v3181 = vunpack.c.l.b16 %v3110
        %v3182 = vunpack.c.l.b16 %v3111
        %v3183 = vunpack.c.l.b16 %v3112
        %v3184 = vunpack.c.l.b16 %v3113
        %v3185 = vunpack.c.l.b16 %v3114
        %v3186 = vpack.c.b16 %v3155, %v3154
        %v3187 = vpack.c.b16 %v3157, %v3156
        %v3188 = vpack.c.b16 %v3159, %v3158
        %v3189 = vpack.c.b16 %v3161, %v3160
        %v3190 = vpack.c.b16 %v3163, %v3162
        %v3191 = vpack.c.b16 %v3165, %v3164
        %v3192 = vpack.c.b16 %v3167, %v3166
        %v3193 = vpack.c.b16 %v3169, %v3168
        %v3194 = vpack.c.b16 %v3171, %v3170
        %v3195 = vpack.c.b16 %v3173, %v3172
        %v3196 = vpack.c.b16 %v3175, %v3174
        %v3197 = vpack.c.b16 %v3177, %v3176
        %v3198 = vpack.c.b16 %v3179, %v3178
        %v3199 = vpack.c.b16 %v3181, %v3180
        %v3200 = vpack.c.b16 %v3183, %v3182
        %v3201 = vpack.c.b16 %v3185, %v3184
        %3218 = vmatprep.subr.bf16.mxu0 0
        %3219 = vmatpush1.bf16.msra.mxu0 %v3186
        %3220 = vmatprep.subr.bf16.mxu0 0
        %3221 = vmatpush1.bf16.msra.mxu0 %v3187
        %3222 = vmatprep.subr.bf16.mxu0 0
        %3223 = vmatpush1.bf16.msra.mxu0 %v3188
        %3224 = vmatprep.subr.bf16.mxu0 0
        %3225 = vmatpush1.bf16.msra.mxu0 %v3189
        %3226 = vmatprep.subr.bf16.mxu0 0
        %3227 = vmatpush1.bf16.msra.mxu0 %v3190
        %3228 = vmatprep.subr.bf16.mxu0 0
        %3229 = vmatpush1.bf16.msra.mxu0 %v3191
        %3230 = vmatprep.subr.bf16.mxu0 0
        %3231 = vmatpush1.bf16.msra.mxu0 %v3192
        %3232 = vmatprep.subr.bf16.mxu0 0
        %3233 = vmatpush1.bf16.msra.mxu0 %v3193
        %3234 = vmatprep.subr.bf16.mxu0 0
        %3235 = vmatpush1.bf16.msra.mxu0 %v3194
        %3236 = vmatprep.subr.bf16.mxu0 0
        %3237 = vmatpush1.bf16.msra.mxu0 %v3195
        %3238 = vmatprep.subr.bf16.mxu0 0
        %3239 = vmatpush1.bf16.msra.mxu0 %v3196
        %3240 = vmatprep.subr.bf16.mxu0 0
        %3241 = vmatpush1.bf16.msra.mxu0 %v3197
        %3242 = vmatprep.subr.bf16.mxu0 0
        %3243 = vmatpush1.bf16.msra.mxu0 %v3198
        %3244 = vmatprep.subr.bf16.mxu0 0
        %3245 = vmatpush1.bf16.msra.mxu0 %v3199
        %3246 = vmatprep.subr.bf16.mxu0 0
        %3247 = vmatpush1.bf16.msra.mxu0 %v3200
        %3248 = vmatprep.subr.bf16.mxu0 0
        %3249 = vmatpush1.bf16.msra.mxu0 %v3201
        %3250 = vmatprep.mubr.bf16.mxu0 %v3076
        %3251 = vmatmul.mubr.bf16.gmra.mrb[0].mxu0 %v3075
        %v3252 = vpop.f32.mrb[0].mxu0
        %v3253 = vadd.f32 %v3120, %v3252
        %v3254 = vpop.f32.mrb[0].mxu0
        %v3255 = vpop.f32.mrb[0].mxu0
        %v3256 = vadd.f32 %v3120, %v3255
        %v3257 = vpop.f32.mrb[0].mxu0
        %3258 = vmatprep.mubr.bf16.mxu0 %v3078
        %3259 = vmatmul.mubr.bf16.gmra.mrb[0].mxu0 %v3077
        %v3260 = vpop.f32.mrb[0].mxu0
        %v3261 = vadd.f32 %v3120, %v3260
        %v3262 = vpop.f32.mrb[0].mxu0
        %v3263 = vpop.f32.mrb[0].mxu0
        %v3264 = vadd.f32 %v3120, %v3263
        %v3265 = vpop.f32.mrb[0].mxu0
        %3266 = vmatprep.mubr.bf16.mxu0 %v3080
        %3267 = vmatmul.mubr.bf16.gmra.mrb[0].mxu0 %v3079
        %v3268 = vpop.f32.mrb[0].mxu0
        %v3269 = vadd.f32 %v3120, %v3268
        %v3270 = vpop.f32.mrb[0].mxu0
        %v3271 = vpop.f32.mrb[0].mxu0
        %v3272 = vadd.f32 %v3120, %v3271
        %v3273 = vpop.f32.mrb[0].mxu0
        %3274 = vmatprep.mubr.bf16.mxu0 %v3082
        %3275 = vmatmul.mubr.bf16.gmra.mrb[0].mxu0 %v3081
        %v3276 = vpop.f32.mrb[0].mxu0
        %v3277 = vadd.f32 %v3120, %v3276
        %v3278 = vpop.f32.mrb[0].mxu0
        %v3279 = vpop.f32.mrb[0].mxu0
        %v3280 = vadd.f32 %v3120, %v3279
        %v3281 = vpop.f32.mrb[0].mxu0
        %3282 = vdwg.mxu0
        %v3283 = vadd.f32 %v3253, %v2683
        %v3284 = vadd.f32 %v3256, %v2684
        %v3285 = vadd.f32 %v3261, %v2685
        %v3286 = vadd.f32 %v3264, %v2686
        %v3287 = vadd.f32 %v3269, %v2687
        %v3288 = vadd.f32 %v3272, %v2688
        %v3289 = vadd.f32 %v3277, %v2689
        %v3290 = vadd.f32 %v3280, %v2690
        %3291 = vst [vmem:[%s599] sm:$0xff] %v3283
        %3292 = vst [vmem:[%s599 + $0x8] sm:$0xff] %v3284
        %3293 = vst [vmem:[%s599 + $0x10] sm:$0xff] %v3285
        %3294 = vst [vmem:[%s599 + $0x18] sm:$0xff] %v3286
        %3295 = vst [vmem:[%s599 + $0x20] sm:$0xff] %v3287
        %3296 = vst [vmem:[%s599 + $0x28] sm:$0xff] %v3288
        %3297 = vst [vmem:[%s599 + $0x30] sm:$0xff] %v3289
        %3298 = vst [vmem:[%s599 + $0x38] sm:$0xff] %v3290
        %s3299 = sand.u32 %s377, 1
        %s3300 = scalar_lea.sflag [#allocation6], %s3299
        %s3301 = sand.u32 %s377, 1
        %s3302 = smul.addr %s3301, 64
        %s3303 = scalar_lea.vmem [#allocation15], %s3302
        // Predicated region
        $region109: #{tpu_custom_call.1} parent=79 // pred_check
          %p3304 = pneg %p387
        $region110: #{tpu_custom_call.1} parent=79 // pred_check_branch
          %3306 = sbr.rel (%p3304) target = $region112
        $region111: #{tpu_custom_call.1} parent=79 // pred_region
          %s3307 = smul.u32 8, %s40
          %s3309 = ssub.s32 1024, 1024
          %3310 = vsyncadd %s3300, %s3309
          %s3311 = smul.addr %s39, 16
          %s3312 = sadd.s32 %s3307, %s3311
          %s3313 = smul.addr %s3312, 128
          %s3314 = scalar_lea.hbm %s15, %s3313
          %s3315 = sshll.u32 %s3303, 4
          %s3316 = int_to_ptr.vmem [resolvable:$true] %s3315
          %3321 = dma.vmem_to_hbm [thread:$0]  %s3316, 1024, %s3314, %s3300, 128, 128, 8
        $region112: #{tpu_custom_call.1} parent=79 // pred_fallthru
          _
      $region80: #{tpu_custom_call.1} parent=5 // pred_fallthru
        _
      %p3322 = scmp.le.s32.totalorder 2, %s30
      // Predicated region
      $region113: #{tpu_custom_call.1} parent=5 // pred_check
        %p3323 = pneg %p3322
      $region114: #{tpu_custom_call.1} parent=5 // pred_check_branch
        %3325 = sbr.rel (%p3323) target = $region116
      $region115: #{tpu_custom_call.1} parent=5 // pred_region
        %s3326 = ssub.s32 %s30, 2
        // Predicated region
        $region117: #{tpu_custom_call.1} parent=115 // pred_check
          %p3327 = pneg %p393
        $region118: #{tpu_custom_call.1} parent=115 // pred_check_branch
          %3329 = sbr.rel (%p3327) target = $region120
        $region119: #{tpu_custom_call.1} parent=115 // pred_region
          %s3330 = sand.u32 %s378, 1
          %s3331 = scalar_lea.sflag [#allocation6], %s3330
          %s3332 = sand.u32 %s378, 1
          %s3333 = smul.addr %s3332, 64
          %s3334 = scalar_lea.vmem [#allocation15], %s3333
          %3335 = dma.done %s3331, 1024
        $region120: #{tpu_custom_call.1} parent=115 // pred_fallthru
          _
      $region116: #{tpu_custom_call.1} parent=5 // pred_fallthru
        _
    $region6: #{tpu_custom_call.1} parent=1 // loop_footer
      %s34 = sadd.s32 1, %s30
    $region7: #{tpu_custom_call.1} parent=1 // loop_footer_branch
      %29 = sbr.rel target = $region3
    $region8: #{tpu_custom_call.1} parent=1 // loop_exit
      _
    %3336 = vsyncpa [#allocation5], 1
    %s3337 = scalar_lea.sflag [#allocation5], 1
    %3338 = vsyncpa %s3337, 1
    %3339 = vsyncpa [#allocation8], 1
    %3340 = vsyncpa [#allocation11], 1
    %3341 = vsyncpa [#allocation14], 1
    %3342 = vsyncpa [#allocation6], 1
    %s3343 = scalar_lea.sflag [#allocation6], 1
    %3344 = vsyncpa %s3343, 1

</llo_original>
